<compile_context>
chip_gen: v7x
topology: tpu7x:2x2x1
jax: 0.10.0
libtpu: 0.0.40
codegen_flags: <defaults>
</compile_context>

<pallas_src>
import functools

import jax
import jax.numpy as jnp
from jax.experimental import pallas as pl
from jax.experimental.pallas import tpu as pltpu


def _convt_kernel(w_ref, x_ref, o_ref, *, offsets, lane_tile):
    # w_ref: (kH*kW, Cout, Cin) bf16 -- spatially flipped weights, resident.
    # x_ref: (B, Cin, S_in)     bf16 -- B time-shifted samples, padded+flattened
    #                                   spatial, extra zero tail so every tap
    #                                   slice of length lane_tile is in range.
    # o_ref: (B, Cout, lane_tile) f32 -- row-strided output (valid pixel (ph,pw)
    #                                   sits at lane ph*Wpad + pw).
    n_b = x_ref.shape[0]
    c_out = o_ref.shape[1]
    n_taps = w_ref.shape[0]

    # TODO(synk): AbstractConvT.neuron is abstract (None in __init__); concrete
    # subclasses plug a spiking neuron here.  Identity is used.

    # Load the (tiny) flipped-weight taps from VMEM once per grid step.
    w_taps = [w_ref[k] for k in range(n_taps)]            # each (Cout, Cin) bf16

    # One f32 accumulator per sample (B vregs); tap-outer ordering keeps the
    # per-tap weight tile hot and the B matmuls per tap independent.
    accs = [jnp.zeros((c_out, lane_tile), jnp.float32) for _ in range(n_b)]
    for k, d in enumerate(offsets):
        w_k = w_taps[k]
        for b in range(n_b):
            # contiguous lane slice == tap (kh, kw) for every output pixel
            tap = x_ref[b, :, d:d + lane_tile]             # (Cin, lane_tile) bf16
            accs[b] = accs[b] + jnp.dot(w_k, tap,
                                        preferred_element_type=jnp.float32)
    for b in range(n_b):
        o_ref[b] = accs[b]                                 # dense (Cout, lane_tile) store


def _pick_block(nt, lane_pad, target_lanes=2048):
    """Largest divisor of nt that keeps >=2 grid steps and <= ~2K lanes/block."""
    best = 1
    for b in range(2, nt):
        if nt % b == 0 and b * lane_pad <= target_lanes:
            best = b
    return best


def abstract_convT_forward(x, weight, *, padding=0):
    """AbstractConvT.forward: synapse (convT) -> neuron (identity) -> step_delay.

    x      : (N, Cin, H, W, T) float32
    weight : (Cin, Cout, kH, kW) float32   (torch ConvTranspose2d weight layout)
    Supports stride=1, dilation=1, groups=1, output_padding=0.
    """
    N, Cin, H, W, T = x.shape
    Cin_w, Cout, kH, kW = weight.shape
    assert Cin_w == Cin
    assert padding <= kH - 1 and padding <= kW - 1, \
        "padding > kernel_size - 1 not supported"

    pph = kH - 1 - padding
    ppw = kW - 1 - padding
    Hout = H + kH - 1 - 2 * padding
    Wout = W + kW - 1 - 2 * padding
    Hpad = H + 2 * pph
    Wpad = W + 2 * ppw
    KK = kH * kW
    NT = N * T

    # Lane layout: the row-strided span holding all valid output pixels,
    # rounded up to a multiple of 128 for dense, unmasked stores.
    Lvalid = Hout * Wpad
    Lpad = ((Lvalid + 127) // 128) * 128
    d_max = (kH - 1) * Wpad + (kW - 1)
    S_in = d_max + Lpad                      # per-sample flattened input length
    offsets = tuple(kh * Wpad + kw for kh in range(kH) for kw in range(kW))

    # --- weight prep: convT (stride=1) == correlation with the flipped kernel.
    w_flip = weight[:, :, ::-1, ::-1]                               # (Cin,Cout,kH,kW)
    w_k = jnp.transpose(w_flip, (2, 3, 1, 0)).reshape(KK, Cout, Cin)
    w_k = w_k.astype(jnp.bfloat16)

    # --- input prep (one fused XLA pass over the small input tensor):
    # step_delay fused on the input side: out[..., t] = convT(x[..., t-1]).
    xs = jnp.pad(x, ((0, 0), (0, 0), (0, 0), (0, 0), (1, 0)))[..., :T]
    xr = jnp.transpose(xs, (0, 4, 1, 2, 3)).reshape(NT, Cin, H, W)
    xp = jnp.pad(xr, ((0, 0), (0, 0), (pph, pph), (ppw, ppw)))      # (NT,Cin,Hpad,Wpad)
    xf = xp.reshape(NT, Cin, Hpad * Wpad)
    xf = jnp.pad(xf, ((0, 0), (0, 0), (0, S_in - Hpad * Wpad)))
    xf = xf.astype(jnp.bfloat16)                                    # (NT, Cin, S_in)

    B = _pick_block(NT, Lpad)
    grid = (NT // B,)

    kernel = functools.partial(_convt_kernel, offsets=offsets, lane_tile=Lpad)
    out = pl.pallas_call(
        kernel,
        out_shape=jax.ShapeDtypeStruct((NT, Cout, Lpad), jnp.float32),
        grid_spec=pltpu.PrefetchScalarGridSpec(
            num_scalar_prefetch=0,
            grid=grid,
            in_specs=[
                pl.BlockSpec((KK, Cout, Cin), lambda i: (0, 0, 0)),   # weights, resident
                pl.BlockSpec((B, Cin, S_in), lambda i: (i, 0, 0)),    # B samples / step
            ],
            out_specs=pl.BlockSpec((B, Cout, Lpad), lambda i: (i, 0, 0)),
        ),
        compiler_params=pltpu.CompilerParams(
            dimension_semantics=("parallel",),
            vmem_limit_bytes=32 * 1024 * 1024,
        ),
    )(w_k, xf)

    # --- epilogue (single fused slice + transpose): drop the row-end junk lanes
    # and return the slayer layout (N, Cout, Hout, Wout, T).
    z = out[:, :, :Hout * Wpad].reshape(N, T, Cout, Hout, Wpad)[..., :Wout]
    y = jnp.transpose(z, (0, 2, 3, 4, 1))
    return y


def _reference(x, weight, *, padding=0):
    """Scatter-form reference of torch ConvTranspose2d per timestep, identity
    neuron, then the 1-step time delay (f32 math)."""
    N, Cin, H, W, T = x.shape
    _, Cout, kH, kW = weight.shape
    Hout = H + kH - 1 - 2 * padding
    Wout = W + kW - 1 - 2 * padding
    full = jnp.zeros((N, Cout, H + kH - 1, W + kW - 1, T), jnp.float32)
    for kh in range(kH):
        for kw in range(kW):
            contrib = jnp.einsum('nchwt,co->nohwt', x, weight[:, :, kh, kw])
            full = full.at[:, :, kh:kh + H, kw:kw + W, :].add(contrib)
    z = full[:, :, padding:padding + Hout, padding:padding + Wout, :]
    y = jnp.concatenate([jnp.zeros_like(z[..., :1]), z[..., :-1]], axis=-1)
    return y


if __name__ == "__main__":
    key = jax.random.PRNGKey(0)
    kx, kw = jax.random.split(key)

    # small shapes consistent with the module: in_features=4, out_features=8,
    # kernel_size=3, stride=1, padding=0, batch=2, spatial=8x8, T=8 timesteps
    N, Cin, Cout, H, W, T, ksz = 2, 4, 8, 8, 8, 8, 3
    weight_scale = 1.0

    x = jax.random.normal(kx, (N, Cin, H, W, T), dtype=jnp.float32)
    weight = weight_scale * jax.random.normal(kw, (Cin, Cout, ksz, ksz),
                                              dtype=jnp.float32)

    y = abstract_convT_forward(x, weight, padding=0)
    y = jax.block_until_ready(y)

    # Reference with the same bf16 rounding the kernel applies to its operands
    # (MXU accumulates bf16 products exactly in f32).
    xq = x.astype(jnp.bfloat16).astype(jnp.float32)
    wq = weight.astype(jnp.bfloat16).astype(jnp.float32)
    y_ref = _reference(xq, wq, padding=0)

    assert y.shape == (N, Cout, H + ksz - 1, W + ksz - 1, T), y.shape
    assert jnp.allclose(y, y_ref, atol=1e-3, rtol=1e-3), \
        float(jnp.max(jnp.abs(y - y_ref)))

    print("KERNEL_OK")
</pallas_src>

<mosaic_0001>
module attributes {stable_mosaic.version = 11 : i64} {
  func.func @_convt_kernel(%arg0: i32, %arg1: memref<9x8x4xbf16, #tpu.memory_space<vmem>>, %arg2: memref<8x4x154xbf16, #tpu.memory_space<vmem>>, %arg3: memref<8x8x128xf32, #tpu.memory_space<vmem>>) attributes {dimension_semantics = [#tpu.dimension_semantics<parallel>], iteration_bounds = array<i64: 2>, scalar_prefetch = 0 : i64, scratch_operands = 0 : i64, tpu.core_type = #tpu.core_type<tc>, window_params = [{pipeline_mode = #tpu.pipeline_mode<synchronous>, transform_indices = @transform_0, window_bounds = array<i64: 9, 8, 4>}, {transform_indices = @transform_1, window_bounds = array<i64: 8, 4, 154>}, {transform_indices = @transform_2, window_bounds = array<i64: 8, 8, 128>}]} {
    %c0 = arith.constant 0 : index
    %c0_0 = arith.constant 0 : index
    %c0_1 = arith.constant 0 : index
    %0 = vector.load %arg1[%c0, %c0_0, %c0_1] : memref<9x8x4xbf16, #tpu.memory_space<vmem>>, vector<1x8x4xbf16>
    %1 = vector.shape_cast %0 : vector<1x8x4xbf16> to vector<8x4xbf16>
    %c1 = arith.constant 1 : index
    %c0_2 = arith.constant 0 : index
    %c0_3 = arith.constant 0 : index
    %2 = vector.load %arg1[%c1, %c0_2, %c0_3] : memref<9x8x4xbf16, #tpu.memory_space<vmem>>, vector<1x8x4xbf16>
    %3 = vector.shape_cast %2 : vector<1x8x4xbf16> to vector<8x4xbf16>
    %c2 = arith.constant 2 : index
    %c0_4 = arith.constant 0 : index
    %c0_5 = arith.constant 0 : index
    %4 = vector.load %arg1[%c2, %c0_4, %c0_5] : memref<9x8x4xbf16, #tpu.memory_space<vmem>>, vector<1x8x4xbf16>
    %5 = vector.shape_cast %4 : vector<1x8x4xbf16> to vector<8x4xbf16>
    %c3 = arith.constant 3 : index
    %c0_6 = arith.constant 0 : index
    %c0_7 = arith.constant 0 : index
    %6 = vector.load %arg1[%c3, %c0_6, %c0_7] : memref<9x8x4xbf16, #tpu.memory_space<vmem>>, vector<1x8x4xbf16>
    %7 = vector.shape_cast %6 : vector<1x8x4xbf16> to vector<8x4xbf16>
    %c4 = arith.constant 4 : index
    %c0_8 = arith.constant 0 : index
    %c0_9 = arith.constant 0 : index
    %8 = vector.load %arg1[%c4, %c0_8, %c0_9] : memref<9x8x4xbf16, #tpu.memory_space<vmem>>, vector<1x8x4xbf16>
    %9 = vector.shape_cast %8 : vector<1x8x4xbf16> to vector<8x4xbf16>
    %c5 = arith.constant 5 : index
    %c0_10 = arith.constant 0 : index
    %c0_11 = arith.constant 0 : index
    %10 = vector.load %arg1[%c5, %c0_10, %c0_11] : memref<9x8x4xbf16, #tpu.memory_space<vmem>>, vector<1x8x4xbf16>
    %11 = vector.shape_cast %10 : vector<1x8x4xbf16> to vector<8x4xbf16>
    %c6 = arith.constant 6 : index
    %c0_12 = arith.constant 0 : index
    %c0_13 = arith.constant 0 : index
    %12 = vector.load %arg1[%c6, %c0_12, %c0_13] : memref<9x8x4xbf16, #tpu.memory_space<vmem>>, vector<1x8x4xbf16>
    %13 = vector.shape_cast %12 : vector<1x8x4xbf16> to vector<8x4xbf16>
    %c7 = arith.constant 7 : index
    %c0_14 = arith.constant 0 : index
    %c0_15 = arith.constant 0 : index
    %14 = vector.load %arg1[%c7, %c0_14, %c0_15] : memref<9x8x4xbf16, #tpu.memory_space<vmem>>, vector<1x8x4xbf16>
    %15 = vector.shape_cast %14 : vector<1x8x4xbf16> to vector<8x4xbf16>
    %c8 = arith.constant 8 : index
    %c0_16 = arith.constant 0 : index
    %c0_17 = arith.constant 0 : index
    %16 = vector.load %arg1[%c8, %c0_16, %c0_17] : memref<9x8x4xbf16, #tpu.memory_space<vmem>>, vector<1x8x4xbf16>
    %17 = vector.shape_cast %16 : vector<1x8x4xbf16> to vector<8x4xbf16>
    %cst = arith.constant 0.000000e+00 : f32
    %18 = vector.broadcast %cst : f32 to vector<8x128xf32>
    %cst_18 = arith.constant 0.000000e+00 : f32
    %19 = vector.broadcast %cst_18 : f32 to vector<8x128xf32>
    %cst_19 = arith.constant 0.000000e+00 : f32
    %20 = vector.broadcast %cst_19 : f32 to vector<8x128xf32>
    %cst_20 = arith.constant 0.000000e+00 : f32
    %21 = vector.broadcast %cst_20 : f32 to vector<8x128xf32>
    %cst_21 = arith.constant 0.000000e+00 : f32
    %22 = vector.broadcast %cst_21 : f32 to vector<8x128xf32>
    %cst_22 = arith.constant 0.000000e+00 : f32
    %23 = vector.broadcast %cst_22 : f32 to vector<8x128xf32>
    %cst_23 = arith.constant 0.000000e+00 : f32
    %24 = vector.broadcast %cst_23 : f32 to vector<8x128xf32>
    %cst_24 = arith.constant 0.000000e+00 : f32
    %25 = vector.broadcast %cst_24 : f32 to vector<8x128xf32>
    %c0_25 = arith.constant 0 : index
    %c0_26 = arith.constant 0 : index
    %c0_27 = arith.constant 0 : index
    %26 = vector.load %arg2[%c0_25, %c0_26, %c0_27] : memref<8x4x154xbf16, #tpu.memory_space<vmem>>, vector<1x4x128xbf16>
    %27 = vector.shape_cast %26 : vector<1x4x128xbf16> to vector<4x128xbf16>
    %cst_28 = arith.constant dense<0.000000e+00> : vector<8x128xf32>
    %28 = tpu.matmul %1, %27, %cst_28 {dimension_numbers = #tpu.dot_dimension_numbers<[1], [0], [0], [1], [0, 0, 1, 1], [], []>} : vector<8x4xbf16>, vector<4x128xbf16>, vector<8x128xf32> -> vector<8x128xf32>
    %29 = arith.addf %18, %28 : vector<8x128xf32>
    %c1_29 = arith.constant 1 : index
    %c0_30 = arith.constant 0 : index
    %c0_31 = arith.constant 0 : index
    %30 = vector.load %arg2[%c1_29, %c0_30, %c0_31] : memref<8x4x154xbf16, #tpu.memory_space<vmem>>, vector<1x4x128xbf16>
    %31 = vector.shape_cast %30 : vector<1x4x128xbf16> to vector<4x128xbf16>
    %cst_32 = arith.constant dense<0.000000e+00> : vector<8x128xf32>
    %32 = tpu.matmul %1, %31, %cst_32 {dimension_numbers = #tpu.dot_dimension_numbers<[1], [0], [0], [1], [0, 0, 1, 1], [], []>} : vector<8x4xbf16>, vector<4x128xbf16>, vector<8x128xf32> -> vector<8x128xf32>
    %33 = arith.addf %19, %32 : vector<8x128xf32>
    %c2_33 = arith.constant 2 : index
    %c0_34 = arith.constant 0 : index
    %c0_35 = arith.constant 0 : index
    %34 = vector.load %arg2[%c2_33, %c0_34, %c0_35] : memref<8x4x154xbf16, #tpu.memory_space<vmem>>, vector<1x4x128xbf16>
    %35 = vector.shape_cast %34 : vector<1x4x128xbf16> to vector<4x128xbf16>
    %cst_36 = arith.constant dense<0.000000e+00> : vector<8x128xf32>
    %36 = tpu.matmul %1, %35, %cst_36 {dimension_numbers = #tpu.dot_dimension_numbers<[1], [0], [0], [1], [0, 0, 1, 1], [], []>} : vector<8x4xbf16>, vector<4x128xbf16>, vector<8x128xf32> -> vector<8x128xf32>
    %37 = arith.addf %20, %36 : vector<8x128xf32>
    %c3_37 = arith.constant 3 : index
    %c0_38 = arith.constant 0 : index
    %c0_39 = arith.constant 0 : index
    %38 = vector.load %arg2[%c3_37, %c0_38, %c0_39] : memref<8x4x154xbf16, #tpu.memory_space<vmem>>, vector<1x4x128xbf16>
    %39 = vector.shape_cast %38 : vector<1x4x128xbf16> to vector<4x128xbf16>
    %cst_40 = arith.constant dense<0.000000e+00> : vector<8x128xf32>
    %40 = tpu.matmul %1, %39, %cst_40 {dimension_numbers = #tpu.dot_dimension_numbers<[1], [0], [0], [1], [0, 0, 1, 1], [], []>} : vector<8x4xbf16>, vector<4x128xbf16>, vector<8x128xf32> -> vector<8x128xf32>
    %41 = arith.addf %21, %40 : vector<8x128xf32>
    %c4_41 = arith.constant 4 : index
    %c0_42 = arith.constant 0 : index
    %c0_43 = arith.constant 0 : index
    %42 = vector.load %arg2[%c4_41, %c0_42, %c0_43] : memref<8x4x154xbf16, #tpu.memory_space<vmem>>, vector<1x4x128xbf16>
    %43 = vector.shape_cast %42 : vector<1x4x128xbf16> to vector<4x128xbf16>
    %cst_44 = arith.constant dense<0.000000e+00> : vector<8x128xf32>
    %44 = tpu.matmul %1, %43, %cst_44 {dimension_numbers = #tpu.dot_dimension_numbers<[1], [0], [0], [1], [0, 0, 1, 1], [], []>} : vector<8x4xbf16>, vector<4x128xbf16>, vector<8x128xf32> -> vector<8x128xf32>
    %45 = arith.addf %22, %44 : vector<8x128xf32>
    %c5_45 = arith.constant 5 : index
    %c0_46 = arith.constant 0 : index
    %c0_47 = arith.constant 0 : index
    %46 = vector.load %arg2[%c5_45, %c0_46, %c0_47] : memref<8x4x154xbf16, #tpu.memory_space<vmem>>, vector<1x4x128xbf16>
    %47 = vector.shape_cast %46 : vector<1x4x128xbf16> to vector<4x128xbf16>
    %cst_48 = arith.constant dense<0.000000e+00> : vector<8x128xf32>
    %48 = tpu.matmul %1, %47, %cst_48 {dimension_numbers = #tpu.dot_dimension_numbers<[1], [0], [0], [1], [0, 0, 1, 1], [], []>} : vector<8x4xbf16>, vector<4x128xbf16>, vector<8x128xf32> -> vector<8x128xf32>
    %49 = arith.addf %23, %48 : vector<8x128xf32>
    %c6_49 = arith.constant 6 : index
    %c0_50 = arith.constant 0 : index
    %c0_51 = arith.constant 0 : index
    %50 = vector.load %arg2[%c6_49, %c0_50, %c0_51] : memref<8x4x154xbf16, #tpu.memory_space<vmem>>, vector<1x4x128xbf16>
    %51 = vector.shape_cast %50 : vector<1x4x128xbf16> to vector<4x128xbf16>
    %cst_52 = arith.constant dense<0.000000e+00> : vector<8x128xf32>
    %52 = tpu.matmul %1, %51, %cst_52 {dimension_numbers = #tpu.dot_dimension_numbers<[1], [0], [0], [1], [0, 0, 1, 1], [], []>} : vector<8x4xbf16>, vector<4x128xbf16>, vector<8x128xf32> -> vector<8x128xf32>
    %53 = arith.addf %24, %52 : vector<8x128xf32>
    %c7_53 = arith.constant 7 : index
    %c0_54 = arith.constant 0 : index
    %c0_55 = arith.constant 0 : index
    %54 = vector.load %arg2[%c7_53, %c0_54, %c0_55] : memref<8x4x154xbf16, #tpu.memory_space<vmem>>, vector<1x4x128xbf16>
    %55 = vector.shape_cast %54 : vector<1x4x128xbf16> to vector<4x128xbf16>
    %cst_56 = arith.constant dense<0.000000e+00> : vector<8x128xf32>
    %56 = tpu.matmul %1, %55, %cst_56 {dimension_numbers = #tpu.dot_dimension_numbers<[1], [0], [0], [1], [0, 0, 1, 1], [], []>} : vector<8x4xbf16>, vector<4x128xbf16>, vector<8x128xf32> -> vector<8x128xf32>
    %57 = arith.addf %25, %56 : vector<8x128xf32>
    %c0_57 = arith.constant 0 : index
    %c0_58 = arith.constant 0 : index
    %c1_59 = arith.constant 1 : index
    %58 = vector.load %arg2[%c0_57, %c0_58, %c1_59] : memref<8x4x154xbf16, #tpu.memory_space<vmem>>, vector<1x4x128xbf16>
    %59 = vector.shape_cast %58 : vector<1x4x128xbf16> to vector<4x128xbf16>
    %cst_60 = arith.constant dense<0.000000e+00> : vector<8x128xf32>
    %60 = tpu.matmul %3, %59, %cst_60 {dimension_numbers = #tpu.dot_dimension_numbers<[1], [0], [0], [1], [0, 0, 1, 1], [], []>} : vector<8x4xbf16>, vector<4x128xbf16>, vector<8x128xf32> -> vector<8x128xf32>
    %61 = arith.addf %29, %60 : vector<8x128xf32>
    %c1_61 = arith.constant 1 : index
    %c0_62 = arith.constant 0 : index
    %c1_63 = arith.constant 1 : index
    %62 = vector.load %arg2[%c1_61, %c0_62, %c1_63] : memref<8x4x154xbf16, #tpu.memory_space<vmem>>, vector<1x4x128xbf16>
    %63 = vector.shape_cast %62 : vector<1x4x128xbf16> to vector<4x128xbf16>
    %cst_64 = arith.constant dense<0.000000e+00> : vector<8x128xf32>
    %64 = tpu.matmul %3, %63, %cst_64 {dimension_numbers = #tpu.dot_dimension_numbers<[1], [0], [0], [1], [0, 0, 1, 1], [], []>} : vector<8x4xbf16>, vector<4x128xbf16>, vector<8x128xf32> -> vector<8x128xf32>
    %65 = arith.addf %33, %64 : vector<8x128xf32>
    %c2_65 = arith.constant 2 : index
    %c0_66 = arith.constant 0 : index
    %c1_67 = arith.constant 1 : index
    %66 = vector.load %arg2[%c2_65, %c0_66, %c1_67] : memref<8x4x154xbf16, #tpu.memory_space<vmem>>, vector<1x4x128xbf16>
    %67 = vector.shape_cast %66 : vector<1x4x128xbf16> to vector<4x128xbf16>
    %cst_68 = arith.constant dense<0.000000e+00> : vector<8x128xf32>
    %68 = tpu.matmul %3, %67, %cst_68 {dimension_numbers = #tpu.dot_dimension_numbers<[1], [0], [0], [1], [0, 0, 1, 1], [], []>} : vector<8x4xbf16>, vector<4x128xbf16>, vector<8x128xf32> -> vector<8x128xf32>
    %69 = arith.addf %37, %68 : vector<8x128xf32>
    %c3_69 = arith.constant 3 : index
    %c0_70 = arith.constant 0 : index
    %c1_71 = arith.constant 1 : index
    %70 = vector.load %arg2[%c3_69, %c0_70, %c1_71] : memref<8x4x154xbf16, #tpu.memory_space<vmem>>, vector<1x4x128xbf16>
    %71 = vector.shape_cast %70 : vector<1x4x128xbf16> to vector<4x128xbf16>
    %cst_72 = arith.constant dense<0.000000e+00> : vector<8x128xf32>
    %72 = tpu.matmul %3, %71, %cst_72 {dimension_numbers = #tpu.dot_dimension_numbers<[1], [0], [0], [1], [0, 0, 1, 1], [], []>} : vector<8x4xbf16>, vector<4x128xbf16>, vector<8x128xf32> -> vector<8x128xf32>
    %73 = arith.addf %41, %72 : vector<8x128xf32>
    %c4_73 = arith.constant 4 : index
    %c0_74 = arith.constant 0 : index
    %c1_75 = arith.constant 1 : index
    %74 = vector.load %arg2[%c4_73, %c0_74, %c1_75] : memref<8x4x154xbf16, #tpu.memory_space<vmem>>, vector<1x4x128xbf16>
    %75 = vector.shape_cast %74 : vector<1x4x128xbf16> to vector<4x128xbf16>
    %cst_76 = arith.constant dense<0.000000e+00> : vector<8x128xf32>
    %76 = tpu.matmul %3, %75, %cst_76 {dimension_numbers = #tpu.dot_dimension_numbers<[1], [0], [0], [1], [0, 0, 1, 1], [], []>} : vector<8x4xbf16>, vector<4x128xbf16>, vector<8x128xf32> -> vector<8x128xf32>
    %77 = arith.addf %45, %76 : vector<8x128xf32>
    %c5_77 = arith.constant 5 : index
    %c0_78 = arith.constant 0 : index
    %c1_79 = arith.constant 1 : index
    %78 = vector.load %arg2[%c5_77, %c0_78, %c1_79] : memref<8x4x154xbf16, #tpu.memory_space<vmem>>, vector<1x4x128xbf16>
    %79 = vector.shape_cast %78 : vector<1x4x128xbf16> to vector<4x128xbf16>
    %cst_80 = arith.constant dense<0.000000e+00> : vector<8x128xf32>
    %80 = tpu.matmul %3, %79, %cst_80 {dimension_numbers = #tpu.dot_dimension_numbers<[1], [0], [0], [1], [0, 0, 1, 1], [], []>} : vector<8x4xbf16>, vector<4x128xbf16>, vector<8x128xf32> -> vector<8x128xf32>
    %81 = arith.addf %49, %80 : vector<8x128xf32>
    %c6_81 = arith.constant 6 : index
    %c0_82 = arith.constant 0 : index
    %c1_83 = arith.constant 1 : index
    %82 = vector.load %arg2[%c6_81, %c0_82, %c1_83] : memref<8x4x154xbf16, #tpu.memory_space<vmem>>, vector<1x4x128xbf16>
    %83 = vector.shape_cast %82 : vector<1x4x128xbf16> to vector<4x128xbf16>
    %cst_84 = arith.constant dense<0.000000e+00> : vector<8x128xf32>
    %84 = tpu.matmul %3, %83, %cst_84 {dimension_numbers = #tpu.dot_dimension_numbers<[1], [0], [0], [1], [0, 0, 1, 1], [], []>} : vector<8x4xbf16>, vector<4x128xbf16>, vector<8x128xf32> -> vector<8x128xf32>
    %85 = arith.addf %53, %84 : vector<8x128xf32>
    %c7_85 = arith.constant 7 : index
    %c0_86 = arith.constant 0 : index
    %c1_87 = arith.constant 1 : index
    %86 = vector.load %arg2[%c7_85, %c0_86, %c1_87] : memref<8x4x154xbf16, #tpu.memory_space<vmem>>, vector<1x4x128xbf16>
    %87 = vector.shape_cast %86 : vector<1x4x128xbf16> to vector<4x128xbf16>
    %cst_88 = arith.constant dense<0.000000e+00> : vector<8x128xf32>
    %88 = tpu.matmul %3, %87, %cst_88 {dimension_numbers = #tpu.dot_dimension_numbers<[1], [0], [0], [1], [0, 0, 1, 1], [], []>} : vector<8x4xbf16>, vector<4x128xbf16>, vector<8x128xf32> -> vector<8x128xf32>
    %89 = arith.addf %57, %88 : vector<8x128xf32>
    %c0_89 = arith.constant 0 : index
    %c0_90 = arith.constant 0 : index
    %c2_91 = arith.constant 2 : index
    %90 = vector.load %arg2[%c0_89, %c0_90, %c2_91] : memref<8x4x154xbf16, #tpu.memory_space<vmem>>, vector<1x4x128xbf16>
    %91 = vector.shape_cast %90 : vector<1x4x128xbf16> to vector<4x128xbf16>
    %cst_92 = arith.constant dense<0.000000e+00> : vector<8x128xf32>
    %92 = tpu.matmul %5, %91, %cst_92 {dimension_numbers = #tpu.dot_dimension_numbers<[1], [0], [0], [1], [0, 0, 1, 1], [], []>} : vector<8x4xbf16>, vector<4x128xbf16>, vector<8x128xf32> -> vector<8x128xf32>
    %93 = arith.addf %61, %92 : vector<8x128xf32>
    %c1_93 = arith.constant 1 : index
    %c0_94 = arith.constant 0 : index
    %c2_95 = arith.constant 2 : index
    %94 = vector.load %arg2[%c1_93, %c0_94, %c2_95] : memref<8x4x154xbf16, #tpu.memory_space<vmem>>, vector<1x4x128xbf16>
    %95 = vector.shape_cast %94 : vector<1x4x128xbf16> to vector<4x128xbf16>
    %cst_96 = arith.constant dense<0.000000e+00> : vector<8x128xf32>
    %96 = tpu.matmul %5, %95, %cst_96 {dimension_numbers = #tpu.dot_dimension_numbers<[1], [0], [0], [1], [0, 0, 1, 1], [], []>} : vector<8x4xbf16>, vector<4x128xbf16>, vector<8x128xf32> -> vector<8x128xf32>
    %97 = arith.addf %65, %96 : vector<8x128xf32>
    %c2_97 = arith.constant 2 : index
    %c0_98 = arith.constant 0 : index
    %c2_99 = arith.constant 2 : index
    %98 = vector.load %arg2[%c2_97, %c0_98, %c2_99] : memref<8x4x154xbf16, #tpu.memory_space<vmem>>, vector<1x4x128xbf16>
    %99 = vector.shape_cast %98 : vector<1x4x128xbf16> to vector<4x128xbf16>
    %cst_100 = arith.constant dense<0.000000e+00> : vector<8x128xf32>
    %100 = tpu.matmul %5, %99, %cst_100 {dimension_numbers = #tpu.dot_dimension_numbers<[1], [0], [0], [1], [0, 0, 1, 1], [], []>} : vector<8x4xbf16>, vector<4x128xbf16>, vector<8x128xf32> -> vector<8x128xf32>
    %101 = arith.addf %69, %100 : vector<8x128xf32>
    %c3_101 = arith.constant 3 : index
    %c0_102 = arith.constant 0 : index
    %c2_103 = arith.constant 2 : index
    %102 = vector.load %arg2[%c3_101, %c0_102, %c2_103] : memref<8x4x154xbf16, #tpu.memory_space<vmem>>, vector<1x4x128xbf16>
    %103 = vector.shape_cast %102 : vector<1x4x128xbf16> to vector<4x128xbf16>
    %cst_104 = arith.constant dense<0.000000e+00> : vector<8x128xf32>
    %104 = tpu.matmul %5, %103, %cst_104 {dimension_numbers = #tpu.dot_dimension_numbers<[1], [0], [0], [1], [0, 0, 1, 1], [], []>} : vector<8x4xbf16>, vector<4x128xbf16>, vector<8x128xf32> -> vector<8x128xf32>
    %105 = arith.addf %73, %104 : vector<8x128xf32>
    %c4_105 = arith.constant 4 : index
    %c0_106 = arith.constant 0 : index
    %c2_107 = arith.constant 2 : index
    %106 = vector.load %arg2[%c4_105, %c0_106, %c2_107] : memref<8x4x154xbf16, #tpu.memory_space<vmem>>, vector<1x4x128xbf16>
    %107 = vector.shape_cast %106 : vector<1x4x128xbf16> to vector<4x128xbf16>
    %cst_108 = arith.constant dense<0.000000e+00> : vector<8x128xf32>
    %108 = tpu.matmul %5, %107, %cst_108 {dimension_numbers = #tpu.dot_dimension_numbers<[1], [0], [0], [1], [0, 0, 1, 1], [], []>} : vector<8x4xbf16>, vector<4x128xbf16>, vector<8x128xf32> -> vector<8x128xf32>
    %109 = arith.addf %77, %108 : vector<8x128xf32>
    %c5_109 = arith.constant 5 : index
    %c0_110 = arith.constant 0 : index
    %c2_111 = arith.constant 2 : index
    %110 = vector.load %arg2[%c5_109, %c0_110, %c2_111] : memref<8x4x154xbf16, #tpu.memory_space<vmem>>, vector<1x4x128xbf16>
    %111 = vector.shape_cast %110 : vector<1x4x128xbf16> to vector<4x128xbf16>
    %cst_112 = arith.constant dense<0.000000e+00> : vector<8x128xf32>
    %112 = tpu.matmul %5, %111, %cst_112 {dimension_numbers = #tpu.dot_dimension_numbers<[1], [0], [0], [1], [0, 0, 1, 1], [], []>} : vector<8x4xbf16>, vector<4x128xbf16>, vector<8x128xf32> -> vector<8x128xf32>
    %113 = arith.addf %81, %112 : vector<8x128xf32>
    %c6_113 = arith.constant 6 : index
    %c0_114 = arith.constant 0 : index
    %c2_115 = arith.constant 2 : index
    %114 = vector.load %arg2[%c6_113, %c0_114, %c2_115] : memref<8x4x154xbf16, #tpu.memory_space<vmem>>, vector<1x4x128xbf16>
    %115 = vector.shape_cast %114 : vector<1x4x128xbf16> to vector<4x128xbf16>
    %cst_116 = arith.constant dense<0.000000e+00> : vector<8x128xf32>
    %116 = tpu.matmul %5, %115, %cst_116 {dimension_numbers = #tpu.dot_dimension_numbers<[1], [0], [0], [1], [0, 0, 1, 1], [], []>} : vector<8x4xbf16>, vector<4x128xbf16>, vector<8x128xf32> -> vector<8x128xf32>
    %117 = arith.addf %85, %116 : vector<8x128xf32>
    %c7_117 = arith.constant 7 : index
    %c0_118 = arith.constant 0 : index
    %c2_119 = arith.constant 2 : index
    %118 = vector.load %arg2[%c7_117, %c0_118, %c2_119] : memref<8x4x154xbf16, #tpu.memory_space<vmem>>, vector<1x4x128xbf16>
    %119 = vector.shape_cast %118 : vector<1x4x128xbf16> to vector<4x128xbf16>
    %cst_120 = arith.constant dense<0.000000e+00> : vector<8x128xf32>
    %120 = tpu.matmul %5, %119, %cst_120 {dimension_numbers = #tpu.dot_dimension_numbers<[1], [0], [0], [1], [0, 0, 1, 1], [], []>} : vector<8x4xbf16>, vector<4x128xbf16>, vector<8x128xf32> -> vector<8x128xf32>
    %121 = arith.addf %89, %120 : vector<8x128xf32>
    %c0_121 = arith.constant 0 : index
    %c0_122 = arith.constant 0 : index
    %c12 = arith.constant 12 : index
    %122 = vector.load %arg2[%c0_121, %c0_122, %c12] : memref<8x4x154xbf16, #tpu.memory_space<vmem>>, vector<1x4x128xbf16>
    %123 = vector.shape_cast %122 : vector<1x4x128xbf16> to vector<4x128xbf16>
    %cst_123 = arith.constant dense<0.000000e+00> : vector<8x128xf32>
    %124 = tpu.matmul %7, %123, %cst_123 {dimension_numbers = #tpu.dot_dimension_numbers<[1], [0], [0], [1], [0, 0, 1, 1], [], []>} : vector<8x4xbf16>, vector<4x128xbf16>, vector<8x128xf32> -> vector<8x128xf32>
    %125 = arith.addf %93, %124 : vector<8x128xf32>
    %c1_124 = arith.constant 1 : index
    %c0_125 = arith.constant 0 : index
    %c12_126 = arith.constant 12 : index
    %126 = vector.load %arg2[%c1_124, %c0_125, %c12_126] : memref<8x4x154xbf16, #tpu.memory_space<vmem>>, vector<1x4x128xbf16>
    %127 = vector.shape_cast %126 : vector<1x4x128xbf16> to vector<4x128xbf16>
    %cst_127 = arith.constant dense<0.000000e+00> : vector<8x128xf32>
    %128 = tpu.matmul %7, %127, %cst_127 {dimension_numbers = #tpu.dot_dimension_numbers<[1], [0], [0], [1], [0, 0, 1, 1], [], []>} : vector<8x4xbf16>, vector<4x128xbf16>, vector<8x128xf32> -> vector<8x128xf32>
    %129 = arith.addf %97, %128 : vector<8x128xf32>
    %c2_128 = arith.constant 2 : index
    %c0_129 = arith.constant 0 : index
    %c12_130 = arith.constant 12 : index
    %130 = vector.load %arg2[%c2_128, %c0_129, %c12_130] : memref<8x4x154xbf16, #tpu.memory_space<vmem>>, vector<1x4x128xbf16>
    %131 = vector.shape_cast %130 : vector<1x4x128xbf16> to vector<4x128xbf16>
    %cst_131 = arith.constant dense<0.000000e+00> : vector<8x128xf32>
    %132 = tpu.matmul %7, %131, %cst_131 {dimension_numbers = #tpu.dot_dimension_numbers<[1], [0], [0], [1], [0, 0, 1, 1], [], []>} : vector<8x4xbf16>, vector<4x128xbf16>, vector<8x128xf32> -> vector<8x128xf32>
    %133 = arith.addf %101, %132 : vector<8x128xf32>
    %c3_132 = arith.constant 3 : index
    %c0_133 = arith.constant 0 : index
    %c12_134 = arith.constant 12 : index
    %134 = vector.load %arg2[%c3_132, %c0_133, %c12_134] : memref<8x4x154xbf16, #tpu.memory_space<vmem>>, vector<1x4x128xbf16>
    %135 = vector.shape_cast %134 : vector<1x4x128xbf16> to vector<4x128xbf16>
    %cst_135 = arith.constant dense<0.000000e+00> : vector<8x128xf32>
    %136 = tpu.matmul %7, %135, %cst_135 {dimension_numbers = #tpu.dot_dimension_numbers<[1], [0], [0], [1], [0, 0, 1, 1], [], []>} : vector<8x4xbf16>, vector<4x128xbf16>, vector<8x128xf32> -> vector<8x128xf32>
    %137 = arith.addf %105, %136 : vector<8x128xf32>
    %c4_136 = arith.constant 4 : index
    %c0_137 = arith.constant 0 : index
    %c12_138 = arith.constant 12 : index
    %138 = vector.load %arg2[%c4_136, %c0_137, %c12_138] : memref<8x4x154xbf16, #tpu.memory_space<vmem>>, vector<1x4x128xbf16>
    %139 = vector.shape_cast %138 : vector<1x4x128xbf16> to vector<4x128xbf16>
    %cst_139 = arith.constant dense<0.000000e+00> : vector<8x128xf32>
    %140 = tpu.matmul %7, %139, %cst_139 {dimension_numbers = #tpu.dot_dimension_numbers<[1], [0], [0], [1], [0, 0, 1, 1], [], []>} : vector<8x4xbf16>, vector<4x128xbf16>, vector<8x128xf32> -> vector<8x128xf32>
    %141 = arith.addf %109, %140 : vector<8x128xf32>
    %c5_140 = arith.constant 5 : index
    %c0_141 = arith.constant 0 : index
    %c12_142 = arith.constant 12 : index
    %142 = vector.load %arg2[%c5_140, %c0_141, %c12_142] : memref<8x4x154xbf16, #tpu.memory_space<vmem>>, vector<1x4x128xbf16>
    %143 = vector.shape_cast %142 : vector<1x4x128xbf16> to vector<4x128xbf16>
    %cst_143 = arith.constant dense<0.000000e+00> : vector<8x128xf32>
    %144 = tpu.matmul %7, %143, %cst_143 {dimension_numbers = #tpu.dot_dimension_numbers<[1], [0], [0], [1], [0, 0, 1, 1], [], []>} : vector<8x4xbf16>, vector<4x128xbf16>, vector<8x128xf32> -> vector<8x128xf32>
    %145 = arith.addf %113, %144 : vector<8x128xf32>
    %c6_144 = arith.constant 6 : index
    %c0_145 = arith.constant 0 : index
    %c12_146 = arith.constant 12 : index
    %146 = vector.load %arg2[%c6_144, %c0_145, %c12_146] : memref<8x4x154xbf16, #tpu.memory_space<vmem>>, vector<1x4x128xbf16>
    %147 = vector.shape_cast %146 : vector<1x4x128xbf16> to vector<4x128xbf16>
    %cst_147 = arith.constant dense<0.000000e+00> : vector<8x128xf32>
    %148 = tpu.matmul %7, %147, %cst_147 {dimension_numbers = #tpu.dot_dimension_numbers<[1], [0], [0], [1], [0, 0, 1, 1], [], []>} : vector<8x4xbf16>, vector<4x128xbf16>, vector<8x128xf32> -> vector<8x128xf32>
    %149 = arith.addf %117, %148 : vector<8x128xf32>
    %c7_148 = arith.constant 7 : index
    %c0_149 = arith.constant 0 : index
    %c12_150 = arith.constant 12 : index
    %150 = vector.load %arg2[%c7_148, %c0_149, %c12_150] : memref<8x4x154xbf16, #tpu.memory_space<vmem>>, vector<1x4x128xbf16>
    %151 = vector.shape_cast %150 : vector<1x4x128xbf16> to vector<4x128xbf16>
    %cst_151 = arith.constant dense<0.000000e+00> : vector<8x128xf32>
    %152 = tpu.matmul %7, %151, %cst_151 {dimension_numbers = #tpu.dot_dimension_numbers<[1], [0], [0], [1], [0, 0, 1, 1], [], []>} : vector<8x4xbf16>, vector<4x128xbf16>, vector<8x128xf32> -> vector<8x128xf32>
    %153 = arith.addf %121, %152 : vector<8x128xf32>
    %c0_152 = arith.constant 0 : index
    %c0_153 = arith.constant 0 : index
    %c13 = arith.constant 13 : index
    %154 = vector.load %arg2[%c0_152, %c0_153, %c13] : memref<8x4x154xbf16, #tpu.memory_space<vmem>>, vector<1x4x128xbf16>
    %155 = vector.shape_cast %154 : vector<1x4x128xbf16> to vector<4x128xbf16>
    %cst_154 = arith.constant dense<0.000000e+00> : vector<8x128xf32>
    %156 = tpu.matmul %9, %155, %cst_154 {dimension_numbers = #tpu.dot_dimension_numbers<[1], [0], [0], [1], [0, 0, 1, 1], [], []>} : vector<8x4xbf16>, vector<4x128xbf16>, vector<8x128xf32> -> vector<8x128xf32>
    %157 = arith.addf %125, %156 : vector<8x128xf32>
    %c1_155 = arith.constant 1 : index
    %c0_156 = arith.constant 0 : index
    %c13_157 = arith.constant 13 : index
    %158 = vector.load %arg2[%c1_155, %c0_156, %c13_157] : memref<8x4x154xbf16, #tpu.memory_space<vmem>>, vector<1x4x128xbf16>
    %159 = vector.shape_cast %158 : vector<1x4x128xbf16> to vector<4x128xbf16>
    %cst_158 = arith.constant dense<0.000000e+00> : vector<8x128xf32>
    %160 = tpu.matmul %9, %159, %cst_158 {dimension_numbers = #tpu.dot_dimension_numbers<[1], [0], [0], [1], [0, 0, 1, 1], [], []>} : vector<8x4xbf16>, vector<4x128xbf16>, vector<8x128xf32> -> vector<8x128xf32>
    %161 = arith.addf %129, %160 : vector<8x128xf32>
    %c2_159 = arith.constant 2 : index
    %c0_160 = arith.constant 0 : index
    %c13_161 = arith.constant 13 : index
    %162 = vector.load %arg2[%c2_159, %c0_160, %c13_161] : memref<8x4x154xbf16, #tpu.memory_space<vmem>>, vector<1x4x128xbf16>
    %163 = vector.shape_cast %162 : vector<1x4x128xbf16> to vector<4x128xbf16>
    %cst_162 = arith.constant dense<0.000000e+00> : vector<8x128xf32>
    %164 = tpu.matmul %9, %163, %cst_162 {dimension_numbers = #tpu.dot_dimension_numbers<[1], [0], [0], [1], [0, 0, 1, 1], [], []>} : vector<8x4xbf16>, vector<4x128xbf16>, vector<8x128xf32> -> vector<8x128xf32>
    %165 = arith.addf %133, %164 : vector<8x128xf32>
    %c3_163 = arith.constant 3 : index
    %c0_164 = arith.constant 0 : index
    %c13_165 = arith.constant 13 : index
    %166 = vector.load %arg2[%c3_163, %c0_164, %c13_165] : memref<8x4x154xbf16, #tpu.memory_space<vmem>>, vector<1x4x128xbf16>
    %167 = vector.shape_cast %166 : vector<1x4x128xbf16> to vector<4x128xbf16>
    %cst_166 = arith.constant dense<0.000000e+00> : vector<8x128xf32>
    %168 = tpu.matmul %9, %167, %cst_166 {dimension_numbers = #tpu.dot_dimension_numbers<[1], [0], [0], [1], [0, 0, 1, 1], [], []>} : vector<8x4xbf16>, vector<4x128xbf16>, vector<8x128xf32> -> vector<8x128xf32>
    %169 = arith.addf %137, %168 : vector<8x128xf32>
    %c4_167 = arith.constant 4 : index
    %c0_168 = arith.constant 0 : index
    %c13_169 = arith.constant 13 : index
    %170 = vector.load %arg2[%c4_167, %c0_168, %c13_169] : memref<8x4x154xbf16, #tpu.memory_space<vmem>>, vector<1x4x128xbf16>
    %171 = vector.shape_cast %170 : vector<1x4x128xbf16> to vector<4x128xbf16>
    %cst_170 = arith.constant dense<0.000000e+00> : vector<8x128xf32>
    %172 = tpu.matmul %9, %171, %cst_170 {dimension_numbers = #tpu.dot_dimension_numbers<[1], [0], [0], [1], [0, 0, 1, 1], [], []>} : vector<8x4xbf16>, vector<4x128xbf16>, vector<8x128xf32> -> vector<8x128xf32>
    %173 = arith.addf %141, %172 : vector<8x128xf32>
    %c5_171 = arith.constant 5 : index
    %c0_172 = arith.constant 0 : index
    %c13_173 = arith.constant 13 : index
    %174 = vector.load %arg2[%c5_171, %c0_172, %c13_173] : memref<8x4x154xbf16, #tpu.memory_space<vmem>>, vector<1x4x128xbf16>
    %175 = vector.shape_cast %174 : vector<1x4x128xbf16> to vector<4x128xbf16>
    %cst_174 = arith.constant dense<0.000000e+00> : vector<8x128xf32>
    %176 = tpu.matmul %9, %175, %cst_174 {dimension_numbers = #tpu.dot_dimension_numbers<[1], [0], [0], [1], [0, 0, 1, 1], [], []>} : vector<8x4xbf16>, vector<4x128xbf16>, vector<8x128xf32> -> vector<8x128xf32>
    %177 = arith.addf %145, %176 : vector<8x128xf32>
    %c6_175 = arith.constant 6 : index
    %c0_176 = arith.constant 0 : index
    %c13_177 = arith.constant 13 : index
    %178 = vector.load %arg2[%c6_175, %c0_176, %c13_177] : memref<8x4x154xbf16, #tpu.memory_space<vmem>>, vector<1x4x128xbf16>
    %179 = vector.shape_cast %178 : vector<1x4x128xbf16> to vector<4x128xbf16>
    %cst_178 = arith.constant dense<0.000000e+00> : vector<8x128xf32>
    %180 = tpu.matmul %9, %179, %cst_178 {dimension_numbers = #tpu.dot_dimension_numbers<[1], [0], [0], [1], [0, 0, 1, 1], [], []>} : vector<8x4xbf16>, vector<4x128xbf16>, vector<8x128xf32> -> vector<8x128xf32>
    %181 = arith.addf %149, %180 : vector<8x128xf32>
    %c7_179 = arith.constant 7 : index
    %c0_180 = arith.constant 0 : index
    %c13_181 = arith.constant 13 : index
    %182 = vector.load %arg2[%c7_179, %c0_180, %c13_181] : memref<8x4x154xbf16, #tpu.memory_space<vmem>>, vector<1x4x128xbf16>
    %183 = vector.shape_cast %182 : vector<1x4x128xbf16> to vector<4x128xbf16>
    %cst_182 = arith.constant dense<0.000000e+00> : vector<8x128xf32>
    %184 = tpu.matmul %9, %183, %cst_182 {dimension_numbers = #tpu.dot_dimension_numbers<[1], [0], [0], [1], [0, 0, 1, 1], [], []>} : vector<8x4xbf16>, vector<4x128xbf16>, vector<8x128xf32> -> vector<8x128xf32>
    %185 = arith.addf %153, %184 : vector<8x128xf32>
    %c0_183 = arith.constant 0 : index
    %c0_184 = arith.constant 0 : index
    %c14 = arith.constant 14 : index
    %186 = vector.load %arg2[%c0_183, %c0_184, %c14] : memref<8x4x154xbf16, #tpu.memory_space<vmem>>, vector<1x4x128xbf16>
    %187 = vector.shape_cast %186 : vector<1x4x128xbf16> to vector<4x128xbf16>
    %cst_185 = arith.constant dense<0.000000e+00> : vector<8x128xf32>
    %188 = tpu.matmul %11, %187, %cst_185 {dimension_numbers = #tpu.dot_dimension_numbers<[1], [0], [0], [1], [0, 0, 1, 1], [], []>} : vector<8x4xbf16>, vector<4x128xbf16>, vector<8x128xf32> -> vector<8x128xf32>
    %189 = arith.addf %157, %188 : vector<8x128xf32>
    %c1_186 = arith.constant 1 : index
    %c0_187 = arith.constant 0 : index
    %c14_188 = arith.constant 14 : index
    %190 = vector.load %arg2[%c1_186, %c0_187, %c14_188] : memref<8x4x154xbf16, #tpu.memory_space<vmem>>, vector<1x4x128xbf16>
    %191 = vector.shape_cast %190 : vector<1x4x128xbf16> to vector<4x128xbf16>
    %cst_189 = arith.constant dense<0.000000e+00> : vector<8x128xf32>
    %192 = tpu.matmul %11, %191, %cst_189 {dimension_numbers = #tpu.dot_dimension_numbers<[1], [0], [0], [1], [0, 0, 1, 1], [], []>} : vector<8x4xbf16>, vector<4x128xbf16>, vector<8x128xf32> -> vector<8x128xf32>
    %193 = arith.addf %161, %192 : vector<8x128xf32>
    %c2_190 = arith.constant 2 : index
    %c0_191 = arith.constant 0 : index
    %c14_192 = arith.constant 14 : index
    %194 = vector.load %arg2[%c2_190, %c0_191, %c14_192] : memref<8x4x154xbf16, #tpu.memory_space<vmem>>, vector<1x4x128xbf16>
    %195 = vector.shape_cast %194 : vector<1x4x128xbf16> to vector<4x128xbf16>
    %cst_193 = arith.constant dense<0.000000e+00> : vector<8x128xf32>
    %196 = tpu.matmul %11, %195, %cst_193 {dimension_numbers = #tpu.dot_dimension_numbers<[1], [0], [0], [1], [0, 0, 1, 1], [], []>} : vector<8x4xbf16>, vector<4x128xbf16>, vector<8x128xf32> -> vector<8x128xf32>
    %197 = arith.addf %165, %196 : vector<8x128xf32>
    %c3_194 = arith.constant 3 : index
    %c0_195 = arith.constant 0 : index
    %c14_196 = arith.constant 14 : index
    %198 = vector.load %arg2[%c3_194, %c0_195, %c14_196] : memref<8x4x154xbf16, #tpu.memory_space<vmem>>, vector<1x4x128xbf16>
    %199 = vector.shape_cast %198 : vector<1x4x128xbf16> to vector<4x128xbf16>
    %cst_197 = arith.constant dense<0.000000e+00> : vector<8x128xf32>
    %200 = tpu.matmul %11, %199, %cst_197 {dimension_numbers = #tpu.dot_dimension_numbers<[1], [0], [0], [1], [0, 0, 1, 1], [], []>} : vector<8x4xbf16>, vector<4x128xbf16>, vector<8x128xf32> -> vector<8x128xf32>
    %201 = arith.addf %169, %200 : vector<8x128xf32>
    %c4_198 = arith.constant 4 : index
    %c0_199 = arith.constant 0 : index
    %c14_200 = arith.constant 14 : index
    %202 = vector.load %arg2[%c4_198, %c0_199, %c14_200] : memref<8x4x154xbf16, #tpu.memory_space<vmem>>, vector<1x4x128xbf16>
    %203 = vector.shape_cast %202 : vector<1x4x128xbf16> to vector<4x128xbf16>
    %cst_201 = arith.constant dense<0.000000e+00> : vector<8x128xf32>
    %204 = tpu.matmul %11, %203, %cst_201 {dimension_numbers = #tpu.dot_dimension_numbers<[1], [0], [0], [1], [0, 0, 1, 1], [], []>} : vector<8x4xbf16>, vector<4x128xbf16>, vector<8x128xf32> -> vector<8x128xf32>
    %205 = arith.addf %173, %204 : vector<8x128xf32>
    %c5_202 = arith.constant 5 : index
    %c0_203 = arith.constant 0 : index
    %c14_204 = arith.constant 14 : index
    %206 = vector.load %arg2[%c5_202, %c0_203, %c14_204] : memref<8x4x154xbf16, #tpu.memory_space<vmem>>, vector<1x4x128xbf16>
    %207 = vector.shape_cast %206 : vector<1x4x128xbf16> to vector<4x128xbf16>
    %cst_205 = arith.constant dense<0.000000e+00> : vector<8x128xf32>
    %208 = tpu.matmul %11, %207, %cst_205 {dimension_numbers = #tpu.dot_dimension_numbers<[1], [0], [0], [1], [0, 0, 1, 1], [], []>} : vector<8x4xbf16>, vector<4x128xbf16>, vector<8x128xf32> -> vector<8x128xf32>
    %209 = arith.addf %177, %208 : vector<8x128xf32>
    %c6_206 = arith.constant 6 : index
    %c0_207 = arith.constant 0 : index
    %c14_208 = arith.constant 14 : index
    %210 = vector.load %arg2[%c6_206, %c0_207, %c14_208] : memref<8x4x154xbf16, #tpu.memory_space<vmem>>, vector<1x4x128xbf16>
    %211 = vector.shape_cast %210 : vector<1x4x128xbf16> to vector<4x128xbf16>
    %cst_209 = arith.constant dense<0.000000e+00> : vector<8x128xf32>
    %212 = tpu.matmul %11, %211, %cst_209 {dimension_numbers = #tpu.dot_dimension_numbers<[1], [0], [0], [1], [0, 0, 1, 1], [], []>} : vector<8x4xbf16>, vector<4x128xbf16>, vector<8x128xf32> -> vector<8x128xf32>
    %213 = arith.addf %181, %212 : vector<8x128xf32>
    %c7_210 = arith.constant 7 : index
    %c0_211 = arith.constant 0 : index
    %c14_212 = arith.constant 14 : index
    %214 = vector.load %arg2[%c7_210, %c0_211, %c14_212] : memref<8x4x154xbf16, #tpu.memory_space<vmem>>, vector<1x4x128xbf16>
    %215 = vector.shape_cast %214 : vector<1x4x128xbf16> to vector<4x128xbf16>
    %cst_213 = arith.constant dense<0.000000e+00> : vector<8x128xf32>
    %216 = tpu.matmul %11, %215, %cst_213 {dimension_numbers = #tpu.dot_dimension_numbers<[1], [0], [0], [1], [0, 0, 1, 1], [], []>} : vector<8x4xbf16>, vector<4x128xbf16>, vector<8x128xf32> -> vector<8x128xf32>
    %217 = arith.addf %185, %216 : vector<8x128xf32>
    %c0_214 = arith.constant 0 : index
    %c0_215 = arith.constant 0 : index
    %c24 = arith.constant 24 : index
    %218 = vector.load %arg2[%c0_214, %c0_215, %c24] : memref<8x4x154xbf16, #tpu.memory_space<vmem>>, vector<1x4x128xbf16>
    %219 = vector.shape_cast %218 : vector<1x4x128xbf16> to vector<4x128xbf16>
    %cst_216 = arith.constant dense<0.000000e+00> : vector<8x128xf32>
    %220 = tpu.matmul %13, %219, %cst_216 {dimension_numbers = #tpu.dot_dimension_numbers<[1], [0], [0], [1], [0, 0, 1, 1], [], []>} : vector<8x4xbf16>, vector<4x128xbf16>, vector<8x128xf32> -> vector<8x128xf32>
    %221 = arith.addf %189, %220 : vector<8x128xf32>
    %c1_217 = arith.constant 1 : index
    %c0_218 = arith.constant 0 : index
    %c24_219 = arith.constant 24 : index
    %222 = vector.load %arg2[%c1_217, %c0_218, %c24_219] : memref<8x4x154xbf16, #tpu.memory_space<vmem>>, vector<1x4x128xbf16>
    %223 = vector.shape_cast %222 : vector<1x4x128xbf16> to vector<4x128xbf16>
    %cst_220 = arith.constant dense<0.000000e+00> : vector<8x128xf32>
    %224 = tpu.matmul %13, %223, %cst_220 {dimension_numbers = #tpu.dot_dimension_numbers<[1], [0], [0], [1], [0, 0, 1, 1], [], []>} : vector<8x4xbf16>, vector<4x128xbf16>, vector<8x128xf32> -> vector<8x128xf32>
    %225 = arith.addf %193, %224 : vector<8x128xf32>
    %c2_221 = arith.constant 2 : index
    %c0_222 = arith.constant 0 : index
    %c24_223 = arith.constant 24 : index
    %226 = vector.load %arg2[%c2_221, %c0_222, %c24_223] : memref<8x4x154xbf16, #tpu.memory_space<vmem>>, vector<1x4x128xbf16>
    %227 = vector.shape_cast %226 : vector<1x4x128xbf16> to vector<4x128xbf16>
    %cst_224 = arith.constant dense<0.000000e+00> : vector<8x128xf32>
    %228 = tpu.matmul %13, %227, %cst_224 {dimension_numbers = #tpu.dot_dimension_numbers<[1], [0], [0], [1], [0, 0, 1, 1], [], []>} : vector<8x4xbf16>, vector<4x128xbf16>, vector<8x128xf32> -> vector<8x128xf32>
    %229 = arith.addf %197, %228 : vector<8x128xf32>
    %c3_225 = arith.constant 3 : index
    %c0_226 = arith.constant 0 : index
    %c24_227 = arith.constant 24 : index
    %230 = vector.load %arg2[%c3_225, %c0_226, %c24_227] : memref<8x4x154xbf16, #tpu.memory_space<vmem>>, vector<1x4x128xbf16>
    %231 = vector.shape_cast %230 : vector<1x4x128xbf16> to vector<4x128xbf16>
    %cst_228 = arith.constant dense<0.000000e+00> : vector<8x128xf32>
    %232 = tpu.matmul %13, %231, %cst_228 {dimension_numbers = #tpu.dot_dimension_numbers<[1], [0], [0], [1], [0, 0, 1, 1], [], []>} : vector<8x4xbf16>, vector<4x128xbf16>, vector<8x128xf32> -> vector<8x128xf32>
    %233 = arith.addf %201, %232 : vector<8x128xf32>
    %c4_229 = arith.constant 4 : index
    %c0_230 = arith.constant 0 : index
    %c24_231 = arith.constant 24 : index
    %234 = vector.load %arg2[%c4_229, %c0_230, %c24_231] : memref<8x4x154xbf16, #tpu.memory_space<vmem>>, vector<1x4x128xbf16>
    %235 = vector.shape_cast %234 : vector<1x4x128xbf16> to vector<4x128xbf16>
    %cst_232 = arith.constant dense<0.000000e+00> : vector<8x128xf32>
    %236 = tpu.matmul %13, %235, %cst_232 {dimension_numbers = #tpu.dot_dimension_numbers<[1], [0], [0], [1], [0, 0, 1, 1], [], []>} : vector<8x4xbf16>, vector<4x128xbf16>, vector<8x128xf32> -> vector<8x128xf32>
    %237 = arith.addf %205, %236 : vector<8x128xf32>
    %c5_233 = arith.constant 5 : index
    %c0_234 = arith.constant 0 : index
    %c24_235 = arith.constant 24 : index
    %238 = vector.load %arg2[%c5_233, %c0_234, %c24_235] : memref<8x4x154xbf16, #tpu.memory_space<vmem>>, vector<1x4x128xbf16>
    %239 = vector.shape_cast %238 : vector<1x4x128xbf16> to vector<4x128xbf16>
    %cst_236 = arith.constant dense<0.000000e+00> : vector<8x128xf32>
    %240 = tpu.matmul %13, %239, %cst_236 {dimension_numbers = #tpu.dot_dimension_numbers<[1], [0], [0], [1], [0, 0, 1, 1], [], []>} : vector<8x4xbf16>, vector<4x128xbf16>, vector<8x128xf32> -> vector<8x128xf32>
    %241 = arith.addf %209, %240 : vector<8x128xf32>
    %c6_237 = arith.constant 6 : index
    %c0_238 = arith.constant 0 : index
    %c24_239 = arith.constant 24 : index
    %242 = vector.load %arg2[%c6_237, %c0_238, %c24_239] : memref<8x4x154xbf16, #tpu.memory_space<vmem>>, vector<1x4x128xbf16>
    %243 = vector.shape_cast %242 : vector<1x4x128xbf16> to vector<4x128xbf16>
    %cst_240 = arith.constant dense<0.000000e+00> : vector<8x128xf32>
    %244 = tpu.matmul %13, %243, %cst_240 {dimension_numbers = #tpu.dot_dimension_numbers<[1], [0], [0], [1], [0, 0, 1, 1], [], []>} : vector<8x4xbf16>, vector<4x128xbf16>, vector<8x128xf32> -> vector<8x128xf32>
    %245 = arith.addf %213, %244 : vector<8x128xf32>
    %c7_241 = arith.constant 7 : index
    %c0_242 = arith.constant 0 : index
    %c24_243 = arith.constant 24 : index
    %246 = vector.load %arg2[%c7_241, %c0_242, %c24_243] : memref<8x4x154xbf16, #tpu.memory_space<vmem>>, vector<1x4x128xbf16>
    %247 = vector.shape_cast %246 : vector<1x4x128xbf16> to vector<4x128xbf16>
    %cst_244 = arith.constant dense<0.000000e+00> : vector<8x128xf32>
    %248 = tpu.matmul %13, %247, %cst_244 {dimension_numbers = #tpu.dot_dimension_numbers<[1], [0], [0], [1], [0, 0, 1, 1], [], []>} : vector<8x4xbf16>, vector<4x128xbf16>, vector<8x128xf32> -> vector<8x128xf32>
    %249 = arith.addf %217, %248 : vector<8x128xf32>
    %c0_245 = arith.constant 0 : index
    %c0_246 = arith.constant 0 : index
    %c25 = arith.constant 25 : index
    %250 = vector.load %arg2[%c0_245, %c0_246, %c25] : memref<8x4x154xbf16, #tpu.memory_space<vmem>>, vector<1x4x128xbf16>
    %251 = vector.shape_cast %250 : vector<1x4x128xbf16> to vector<4x128xbf16>
    %cst_247 = arith.constant dense<0.000000e+00> : vector<8x128xf32>
    %252 = tpu.matmul %15, %251, %cst_247 {dimension_numbers = #tpu.dot_dimension_numbers<[1], [0], [0], [1], [0, 0, 1, 1], [], []>} : vector<8x4xbf16>, vector<4x128xbf16>, vector<8x128xf32> -> vector<8x128xf32>
    %253 = arith.addf %221, %252 : vector<8x128xf32>
    %c1_248 = arith.constant 1 : index
    %c0_249 = arith.constant 0 : index
    %c25_250 = arith.constant 25 : index
    %254 = vector.load %arg2[%c1_248, %c0_249, %c25_250] : memref<8x4x154xbf16, #tpu.memory_space<vmem>>, vector<1x4x128xbf16>
    %255 = vector.shape_cast %254 : vector<1x4x128xbf16> to vector<4x128xbf16>
    %cst_251 = arith.constant dense<0.000000e+00> : vector<8x128xf32>
    %256 = tpu.matmul %15, %255, %cst_251 {dimension_numbers = #tpu.dot_dimension_numbers<[1], [0], [0], [1], [0, 0, 1, 1], [], []>} : vector<8x4xbf16>, vector<4x128xbf16>, vector<8x128xf32> -> vector<8x128xf32>
    %257 = arith.addf %225, %256 : vector<8x128xf32>
    %c2_252 = arith.constant 2 : index
    %c0_253 = arith.constant 0 : index
    %c25_254 = arith.constant 25 : index
    %258 = vector.load %arg2[%c2_252, %c0_253, %c25_254] : memref<8x4x154xbf16, #tpu.memory_space<vmem>>, vector<1x4x128xbf16>
    %259 = vector.shape_cast %258 : vector<1x4x128xbf16> to vector<4x128xbf16>
    %cst_255 = arith.constant dense<0.000000e+00> : vector<8x128xf32>
    %260 = tpu.matmul %15, %259, %cst_255 {dimension_numbers = #tpu.dot_dimension_numbers<[1], [0], [0], [1], [0, 0, 1, 1], [], []>} : vector<8x4xbf16>, vector<4x128xbf16>, vector<8x128xf32> -> vector<8x128xf32>
    %261 = arith.addf %229, %260 : vector<8x128xf32>
    %c3_256 = arith.constant 3 : index
    %c0_257 = arith.constant 0 : index
    %c25_258 = arith.constant 25 : index
    %262 = vector.load %arg2[%c3_256, %c0_257, %c25_258] : memref<8x4x154xbf16, #tpu.memory_space<vmem>>, vector<1x4x128xbf16>
    %263 = vector.shape_cast %262 : vector<1x4x128xbf16> to vector<4x128xbf16>
    %cst_259 = arith.constant dense<0.000000e+00> : vector<8x128xf32>
    %264 = tpu.matmul %15, %263, %cst_259 {dimension_numbers = #tpu.dot_dimension_numbers<[1], [0], [0], [1], [0, 0, 1, 1], [], []>} : vector<8x4xbf16>, vector<4x128xbf16>, vector<8x128xf32> -> vector<8x128xf32>
    %265 = arith.addf %233, %264 : vector<8x128xf32>
    %c4_260 = arith.constant 4 : index
    %c0_261 = arith.constant 0 : index
    %c25_262 = arith.constant 25 : index
    %266 = vector.load %arg2[%c4_260, %c0_261, %c25_262] : memref<8x4x154xbf16, #tpu.memory_space<vmem>>, vector<1x4x128xbf16>
    %267 = vector.shape_cast %266 : vector<1x4x128xbf16> to vector<4x128xbf16>
    %cst_263 = arith.constant dense<0.000000e+00> : vector<8x128xf32>
    %268 = tpu.matmul %15, %267, %cst_263 {dimension_numbers = #tpu.dot_dimension_numbers<[1], [0], [0], [1], [0, 0, 1, 1], [], []>} : vector<8x4xbf16>, vector<4x128xbf16>, vector<8x128xf32> -> vector<8x128xf32>
    %269 = arith.addf %237, %268 : vector<8x128xf32>
    %c5_264 = arith.constant 5 : index
    %c0_265 = arith.constant 0 : index
    %c25_266 = arith.constant 25 : index
    %270 = vector.load %arg2[%c5_264, %c0_265, %c25_266] : memref<8x4x154xbf16, #tpu.memory_space<vmem>>, vector<1x4x128xbf16>
    %271 = vector.shape_cast %270 : vector<1x4x128xbf16> to vector<4x128xbf16>
    %cst_267 = arith.constant dense<0.000000e+00> : vector<8x128xf32>
    %272 = tpu.matmul %15, %271, %cst_267 {dimension_numbers = #tpu.dot_dimension_numbers<[1], [0], [0], [1], [0, 0, 1, 1], [], []>} : vector<8x4xbf16>, vector<4x128xbf16>, vector<8x128xf32> -> vector<8x128xf32>
    %273 = arith.addf %241, %272 : vector<8x128xf32>
    %c6_268 = arith.constant 6 : index
    %c0_269 = arith.constant 0 : index
    %c25_270 = arith.constant 25 : index
    %274 = vector.load %arg2[%c6_268, %c0_269, %c25_270] : memref<8x4x154xbf16, #tpu.memory_space<vmem>>, vector<1x4x128xbf16>
    %275 = vector.shape_cast %274 : vector<1x4x128xbf16> to vector<4x128xbf16>
    %cst_271 = arith.constant dense<0.000000e+00> : vector<8x128xf32>
    %276 = tpu.matmul %15, %275, %cst_271 {dimension_numbers = #tpu.dot_dimension_numbers<[1], [0], [0], [1], [0, 0, 1, 1], [], []>} : vector<8x4xbf16>, vector<4x128xbf16>, vector<8x128xf32> -> vector<8x128xf32>
    %277 = arith.addf %245, %276 : vector<8x128xf32>
    %c7_272 = arith.constant 7 : index
    %c0_273 = arith.constant 0 : index
    %c25_274 = arith.constant 25 : index
    %278 = vector.load %arg2[%c7_272, %c0_273, %c25_274] : memref<8x4x154xbf16, #tpu.memory_space<vmem>>, vector<1x4x128xbf16>
    %279 = vector.shape_cast %278 : vector<1x4x128xbf16> to vector<4x128xbf16>
    %cst_275 = arith.constant dense<0.000000e+00> : vector<8x128xf32>
    %280 = tpu.matmul %15, %279, %cst_275 {dimension_numbers = #tpu.dot_dimension_numbers<[1], [0], [0], [1], [0, 0, 1, 1], [], []>} : vector<8x4xbf16>, vector<4x128xbf16>, vector<8x128xf32> -> vector<8x128xf32>
    %281 = arith.addf %249, %280 : vector<8x128xf32>
    %c0_276 = arith.constant 0 : index
    %c0_277 = arith.constant 0 : index
    %c26 = arith.constant 26 : index
    %282 = vector.load %arg2[%c0_276, %c0_277, %c26] : memref<8x4x154xbf16, #tpu.memory_space<vmem>>, vector<1x4x128xbf16>
    %283 = vector.shape_cast %282 : vector<1x4x128xbf16> to vector<4x128xbf16>
    %cst_278 = arith.constant dense<0.000000e+00> : vector<8x128xf32>
    %284 = tpu.matmul %17, %283, %cst_278 {dimension_numbers = #tpu.dot_dimension_numbers<[1], [0], [0], [1], [0, 0, 1, 1], [], []>} : vector<8x4xbf16>, vector<4x128xbf16>, vector<8x128xf32> -> vector<8x128xf32>
    %285 = arith.addf %253, %284 : vector<8x128xf32>
    %c1_279 = arith.constant 1 : index
    %c0_280 = arith.constant 0 : index
    %c26_281 = arith.constant 26 : index
    %286 = vector.load %arg2[%c1_279, %c0_280, %c26_281] : memref<8x4x154xbf16, #tpu.memory_space<vmem>>, vector<1x4x128xbf16>
    %287 = vector.shape_cast %286 : vector<1x4x128xbf16> to vector<4x128xbf16>
    %cst_282 = arith.constant dense<0.000000e+00> : vector<8x128xf32>
    %288 = tpu.matmul %17, %287, %cst_282 {dimension_numbers = #tpu.dot_dimension_numbers<[1], [0], [0], [1], [0, 0, 1, 1], [], []>} : vector<8x4xbf16>, vector<4x128xbf16>, vector<8x128xf32> -> vector<8x128xf32>
    %289 = arith.addf %257, %288 : vector<8x128xf32>
    %c2_283 = arith.constant 2 : index
    %c0_284 = arith.constant 0 : index
    %c26_285 = arith.constant 26 : index
    %290 = vector.load %arg2[%c2_283, %c0_284, %c26_285] : memref<8x4x154xbf16, #tpu.memory_space<vmem>>, vector<1x4x128xbf16>
    %291 = vector.shape_cast %290 : vector<1x4x128xbf16> to vector<4x128xbf16>
    %cst_286 = arith.constant dense<0.000000e+00> : vector<8x128xf32>
    %292 = tpu.matmul %17, %291, %cst_286 {dimension_numbers = #tpu.dot_dimension_numbers<[1], [0], [0], [1], [0, 0, 1, 1], [], []>} : vector<8x4xbf16>, vector<4x128xbf16>, vector<8x128xf32> -> vector<8x128xf32>
    %293 = arith.addf %261, %292 : vector<8x128xf32>
    %c3_287 = arith.constant 3 : index
    %c0_288 = arith.constant 0 : index
    %c26_289 = arith.constant 26 : index
    %294 = vector.load %arg2[%c3_287, %c0_288, %c26_289] : memref<8x4x154xbf16, #tpu.memory_space<vmem>>, vector<1x4x128xbf16>
    %295 = vector.shape_cast %294 : vector<1x4x128xbf16> to vector<4x128xbf16>
    %cst_290 = arith.constant dense<0.000000e+00> : vector<8x128xf32>
    %296 = tpu.matmul %17, %295, %cst_290 {dimension_numbers = #tpu.dot_dimension_numbers<[1], [0], [0], [1], [0, 0, 1, 1], [], []>} : vector<8x4xbf16>, vector<4x128xbf16>, vector<8x128xf32> -> vector<8x128xf32>
    %297 = arith.addf %265, %296 : vector<8x128xf32>
    %c4_291 = arith.constant 4 : index
    %c0_292 = arith.constant 0 : index
    %c26_293 = arith.constant 26 : index
    %298 = vector.load %arg2[%c4_291, %c0_292, %c26_293] : memref<8x4x154xbf16, #tpu.memory_space<vmem>>, vector<1x4x128xbf16>
    %299 = vector.shape_cast %298 : vector<1x4x128xbf16> to vector<4x128xbf16>
    %cst_294 = arith.constant dense<0.000000e+00> : vector<8x128xf32>
    %300 = tpu.matmul %17, %299, %cst_294 {dimension_numbers = #tpu.dot_dimension_numbers<[1], [0], [0], [1], [0, 0, 1, 1], [], []>} : vector<8x4xbf16>, vector<4x128xbf16>, vector<8x128xf32> -> vector<8x128xf32>
    %301 = arith.addf %269, %300 : vector<8x128xf32>
    %c5_295 = arith.constant 5 : index
    %c0_296 = arith.constant 0 : index
    %c26_297 = arith.constant 26 : index
    %302 = vector.load %arg2[%c5_295, %c0_296, %c26_297] : memref<8x4x154xbf16, #tpu.memory_space<vmem>>, vector<1x4x128xbf16>
    %303 = vector.shape_cast %302 : vector<1x4x128xbf16> to vector<4x128xbf16>
    %cst_298 = arith.constant dense<0.000000e+00> : vector<8x128xf32>
    %304 = tpu.matmul %17, %303, %cst_298 {dimension_numbers = #tpu.dot_dimension_numbers<[1], [0], [0], [1], [0, 0, 1, 1], [], []>} : vector<8x4xbf16>, vector<4x128xbf16>, vector<8x128xf32> -> vector<8x128xf32>
    %305 = arith.addf %273, %304 : vector<8x128xf32>
    %c6_299 = arith.constant 6 : index
    %c0_300 = arith.constant 0 : index
    %c26_301 = arith.constant 26 : index
    %306 = vector.load %arg2[%c6_299, %c0_300, %c26_301] : memref<8x4x154xbf16, #tpu.memory_space<vmem>>, vector<1x4x128xbf16>
    %307 = vector.shape_cast %306 : vector<1x4x128xbf16> to vector<4x128xbf16>
    %cst_302 = arith.constant dense<0.000000e+00> : vector<8x128xf32>
    %308 = tpu.matmul %17, %307, %cst_302 {dimension_numbers = #tpu.dot_dimension_numbers<[1], [0], [0], [1], [0, 0, 1, 1], [], []>} : vector<8x4xbf16>, vector<4x128xbf16>, vector<8x128xf32> -> vector<8x128xf32>
    %309 = arith.addf %277, %308 : vector<8x128xf32>
    %c7_303 = arith.constant 7 : index
    %c0_304 = arith.constant 0 : index
    %c26_305 = arith.constant 26 : index
    %310 = vector.load %arg2[%c7_303, %c0_304, %c26_305] : memref<8x4x154xbf16, #tpu.memory_space<vmem>>, vector<1x4x128xbf16>
    %311 = vector.shape_cast %310 : vector<1x4x128xbf16> to vector<4x128xbf16>
    %cst_306 = arith.constant dense<0.000000e+00> : vector<8x128xf32>
    %312 = tpu.matmul %17, %311, %cst_306 {dimension_numbers = #tpu.dot_dimension_numbers<[1], [0], [0], [1], [0, 0, 1, 1], [], []>} : vector<8x4xbf16>, vector<4x128xbf16>, vector<8x128xf32> -> vector<8x128xf32>
    %313 = arith.addf %281, %312 : vector<8x128xf32>
    %c0_307 = arith.constant 0 : index
    %c0_308 = arith.constant 0 : index
    %c0_309 = arith.constant 0 : index
    %314 = vector.load %arg3[%c0_307, %c0_308, %c0_309] : memref<8x8x128xf32, #tpu.memory_space<vmem>>, vector<1x8x128xf32>
    %315 = vector.shape_cast %314 : vector<1x8x128xf32> to vector<8x128xf32>
    %316 = vector.shape_cast %285 : vector<8x128xf32> to vector<1x8x128xf32>
    tpu.vector_store %arg3[%c0_307, %c0_308, %c0_309], %316 {strides = array<i32>} : memref<8x8x128xf32, #tpu.memory_space<vmem>>, vector<1x8x128xf32>,
    %c1_310 = arith.constant 1 : index
    %c0_311 = arith.constant 0 : index
    %c0_312 = arith.constant 0 : index
    %317 = vector.load %arg3[%c1_310, %c0_311, %c0_312] : memref<8x8x128xf32, #tpu.memory_space<vmem>>, vector<1x8x128xf32>
    %318 = vector.shape_cast %317 : vector<1x8x128xf32> to vector<8x128xf32>
    %319 = vector.shape_cast %289 : vector<8x128xf32> to vector<1x8x128xf32>
    tpu.vector_store %arg3[%c1_310, %c0_311, %c0_312], %319 {strides = array<i32>} : memref<8x8x128xf32, #tpu.memory_space<vmem>>, vector<1x8x128xf32>,
    %c2_313 = arith.constant 2 : index
    %c0_314 = arith.constant 0 : index
    %c0_315 = arith.constant 0 : index
    %320 = vector.load %arg3[%c2_313, %c0_314, %c0_315] : memref<8x8x128xf32, #tpu.memory_space<vmem>>, vector<1x8x128xf32>
    %321 = vector.shape_cast %320 : vector<1x8x128xf32> to vector<8x128xf32>
    %322 = vector.shape_cast %293 : vector<8x128xf32> to vector<1x8x128xf32>
    tpu.vector_store %arg3[%c2_313, %c0_314, %c0_315], %322 {strides = array<i32>} : memref<8x8x128xf32, #tpu.memory_space<vmem>>, vector<1x8x128xf32>,
    %c3_316 = arith.constant 3 : index
    %c0_317 = arith.constant 0 : index
    %c0_318 = arith.constant 0 : index
    %323 = vector.load %arg3[%c3_316, %c0_317, %c0_318] : memref<8x8x128xf32, #tpu.memory_space<vmem>>, vector<1x8x128xf32>
    %324 = vector.shape_cast %323 : vector<1x8x128xf32> to vector<8x128xf32>
    %325 = vector.shape_cast %297 : vector<8x128xf32> to vector<1x8x128xf32>
    tpu.vector_store %arg3[%c3_316, %c0_317, %c0_318], %325 {strides = array<i32>} : memref<8x8x128xf32, #tpu.memory_space<vmem>>, vector<1x8x128xf32>,
    %c4_319 = arith.constant 4 : index
    %c0_320 = arith.constant 0 : index
    %c0_321 = arith.constant 0 : index
    %326 = vector.load %arg3[%c4_319, %c0_320, %c0_321] : memref<8x8x128xf32, #tpu.memory_space<vmem>>, vector<1x8x128xf32>
    %327 = vector.shape_cast %326 : vector<1x8x128xf32> to vector<8x128xf32>
    %328 = vector.shape_cast %301 : vector<8x128xf32> to vector<1x8x128xf32>
    tpu.vector_store %arg3[%c4_319, %c0_320, %c0_321], %328 {strides = array<i32>} : memref<8x8x128xf32, #tpu.memory_space<vmem>>, vector<1x8x128xf32>,
    %c5_322 = arith.constant 5 : index
    %c0_323 = arith.constant 0 : index
    %c0_324 = arith.constant 0 : index
    %329 = vector.load %arg3[%c5_322, %c0_323, %c0_324] : memref<8x8x128xf32, #tpu.memory_space<vmem>>, vector<1x8x128xf32>
    %330 = vector.shape_cast %329 : vector<1x8x128xf32> to vector<8x128xf32>
    %331 = vector.shape_cast %305 : vector<8x128xf32> to vector<1x8x128xf32>
    tpu.vector_store %arg3[%c5_322, %c0_323, %c0_324], %331 {strides = array<i32>} : memref<8x8x128xf32, #tpu.memory_space<vmem>>, vector<1x8x128xf32>,
    %c6_325 = arith.constant 6 : index
    %c0_326 = arith.constant 0 : index
    %c0_327 = arith.constant 0 : index
    %332 = vector.load %arg3[%c6_325, %c0_326, %c0_327] : memref<8x8x128xf32, #tpu.memory_space<vmem>>, vector<1x8x128xf32>
    %333 = vector.shape_cast %332 : vector<1x8x128xf32> to vector<8x128xf32>
    %334 = vector.shape_cast %309 : vector<8x128xf32> to vector<1x8x128xf32>
    tpu.vector_store %arg3[%c6_325, %c0_326, %c0_327], %334 {strides = array<i32>} : memref<8x8x128xf32, #tpu.memory_space<vmem>>, vector<1x8x128xf32>,
    %c7_328 = arith.constant 7 : index
    %c0_329 = arith.constant 0 : index
    %c0_330 = arith.constant 0 : index
    %335 = vector.load %arg3[%c7_328, %c0_329, %c0_330] : memref<8x8x128xf32, #tpu.memory_space<vmem>>, vector<1x8x128xf32>
    %336 = vector.shape_cast %335 : vector<1x8x128xf32> to vector<8x128xf32>
    %337 = vector.shape_cast %313 : vector<8x128xf32> to vector<1x8x128xf32>
    tpu.vector_store %arg3[%c7_328, %c0_329, %c0_330], %337 {strides = array<i32>} : memref<8x8x128xf32, #tpu.memory_space<vmem>>, vector<1x8x128xf32>,
    return
  }
  func.func @transform_0(%arg0: i32) -> (i32, i32, i32) {
    %c0_i32 = arith.constant 0 : i32
    %c0_i32_0 = arith.constant 0 : i32
    %c0_i32_1 = arith.constant 0 : i32
    %c0_i32_2 = arith.constant 0 : i32
    return %c0_i32, %c0_i32_0, %c0_i32_1 : i32, i32, i32
  }
  func.func @transform_1(%arg0: i32) -> (i32, i32, i32) {
    %c0_i32 = arith.constant 0 : i32
    %c0_i32_0 = arith.constant 0 : i32
    %c0_i32_1 = arith.constant 0 : i32
    return %arg0, %c0_i32, %c0_i32_0 : i32, i32, i32
  }
  func.func @transform_2(%arg0: i32) -> (i32, i32, i32) {
    %c0_i32 = arith.constant 0 : i32
    %c0_i32_0 = arith.constant 0 : i32
    %c0_i32_1 = arith.constant 0 : i32
    return %arg0, %c0_i32, %c0_i32_0 : i32, i32, i32
  }
}

</mosaic_0001>

<llo_original>
// kernel: tpu_custom_call.1
$region0: #{tpu_custom_call.1}
  #allocation0 [shape = 'u32[]', space=smem, size = 0x4, offset = 0x4, fixed_abs, tag = 'smem constant byte address 0x4 - core index']
  #allocation1 [shape = 'u32[144,128]{1,0:T(1,128)}', space=vmem, size = 0x12000, scoped, tag = 'internal scratch']
  %s0 = inlined_call_operand.vmem [shape: bf16[9,8,4], index: 0, kind: input, shape index: {}]
  %s1 = inlined_call_operand.hbm [shape: bf16[16,4,154], index: 1, kind: input, shape index: {}]
  %s2 = inlined_call_operand.hbm [shape: f32[16,8,128], index: 2, kind: output, shape index: {}]
  %s3 = sld [smem:[#allocation0]]
  $region45: #{tpu_custom_call.1} parent=0
    _
  %s5 = ssub.s32 1, %s3
  %s6 = scalar_select 0, %s5, %s3
  $region1: #{tpu_custom_call.1} parent=0
    #allocation2 [shape = 'u8[32768]{0}', space=vmem, size = 0x8000, scoped, tag = 'input window, operand 1']
    #allocation3 [shape = 's32[2]{0}', space=sflag, size = 0x8, scoped, tag = 'scoped memory for tpu_custom_call.1']
    #allocation4 [shape = 's32[2]{0}', space=sflag, size = 0x8, scoped, tag = 'scoped memory for tpu_custom_call.1']
    #allocation5 [shape = 'u8[65536]{0}', space=vmem, size = 0x10000, scoped, tag = 'output window, operand 0']
    %7 = vsyncpa [#allocation3], 0
    %s8 = scalar_lea.sflag [#allocation3], 1
    %9 = vsyncpa %s8, 0
    %10 = vsyncpa [#allocation4], 0
    %s11 = scalar_lea.sflag [#allocation4], 1
    %12 = vsyncpa %s11, 0
    loop: start=0, step=1, limit=4
    $region2: #{tpu_custom_call.1} parent=1 // loop_pre_header
      _
    $region3: #{tpu_custom_call.1} parent=1 // loop_header
      %s14 = sphi 0, %s18
      %p15 = scmp.ge.s32.totalorder %s14, 4
      %s22 = sphi 0, %s22
      %s24 = sphi 0, %s22
      %s25 = sphi 0, %s24
      %s39 = sphi 0, %s25
      %s45 = sphi 0, %s47
      %s48 = sphi 0, %s45
      %s49 = sphi 0, %s48
      %s65 = sphi 0, %s49
      %s71 = sphi 0, %s73
      %s74 = sphi 0, %s71
      %s75 = sphi 0, %s74
      %s91 = sphi 0, %s75
    $region4: #{tpu_custom_call.1} parent=1 // loop_header_branch
      %17 = sbr.rel (%p15) target = $region8
    $region5: #{tpu_custom_call.1} parent=1 // loop_body
      %s19 = ssub.s32 %s14, 1
      %s20 = ssub.s32 %s14, 2
      %s21 = sadd.s32 %s14, 1
      %s23 = sadd.s32 %s22, 1
      %p26 = scmp.eq.s32.totalorder %s14, 1
      %p27 = scmp.ne.s32.totalorder %s22, %s24
      %p28 = scmp.eq.s32.totalorder %s14, 0
      %p29 = por %p27, %p28
      %p30 = scmp.ne.s32.totalorder %s22, %s24
      %p31 = scmp.eq.s32.totalorder %s19, 1
      %p32 = por %p30, %p31
      %p33 = scmp.ne.s32.totalorder %s24, %s25
      %p34 = scmp.eq.s32.totalorder %s19, 0
      %p35 = por %p33, %p34
      %p36 = scmp.ne.s32.totalorder %s24, %s25
      %p37 = scmp.eq.s32.totalorder %s20, 1
      %p38 = por %p36, %p37
      %p40 = scmp.ne.s32.totalorder %s25, %s39
      %p41 = scmp.eq.s32.totalorder %s20, 0
      %p42 = por %p40, %p41
      %s43 = ssub.s32 %s14, %s21
      %p44 = scmp.eq.s32.totalorder %s43, 0
      %s46 = sadd.s32 %s45, 1
      %s47 = scalar_select %p44, %s45, %s46
      %p50 = pneg %p44
      %p51 = scmp.eq.s32.totalorder %s14, 1
      %p52 = por %p50, %p51
      %p53 = scmp.ne.s32.totalorder %s45, %s48
      %p54 = scmp.eq.s32.totalorder %s14, 0
      %p55 = por %p53, %p54
      %p56 = scmp.ne.s32.totalorder %s45, %s48
      %p57 = scmp.eq.s32.totalorder %s19, 1
      %p58 = por %p56, %p57
      %p59 = scmp.ne.s32.totalorder %s48, %s49
      %p60 = scmp.eq.s32.totalorder %s19, 0
      %p61 = por %p59, %p60
      %p62 = scmp.ne.s32.totalorder %s48, %s49
      %p63 = scmp.eq.s32.totalorder %s20, 1
      %p64 = por %p62, %p63
      %p66 = scmp.ne.s32.totalorder %s49, %s65
      %p67 = scmp.eq.s32.totalorder %s20, 0
      %p68 = por %p66, %p67
      %s69 = ssub.s32 %s14, %s21
      %p70 = scmp.eq.s32.totalorder %s69, 0
      %s72 = sadd.s32 %s71, 1
      %s73 = scalar_select %p70, %s71, %s72
      %p76 = pneg %p70
      %p77 = scmp.eq.s32.totalorder %s14, 1
      %p78 = por %p76, %p77
      %p79 = scmp.ne.s32.totalorder %s71, %s74
      %p80 = scmp.eq.s32.totalorder %s14, 0
      %p81 = por %p79, %p80
      %p82 = scmp.ne.s32.totalorder %s71, %s74
      %p83 = scmp.eq.s32.totalorder %s19, 1
      %p84 = por %p82, %p83
      %p85 = scmp.ne.s32.totalorder %s74, %s75
      %p86 = scmp.eq.s32.totalorder %s19, 0
      %p87 = por %p85, %p86
      %p88 = scmp.ne.s32.totalorder %s74, %s75
      %p89 = scmp.eq.s32.totalorder %s20, 1
      %p90 = por %p88, %p89
      %p92 = scmp.ne.s32.totalorder %s75, %s91
      %p93 = scmp.eq.s32.totalorder %s20, 0
      %p94 = por %p92, %p93
      %p95 = scmp.le.s32.totalorder 1, %s14
      %p96 = scmp.lt.s32.totalorder %s14, 3
      %p97 = pnand %p95, %p96
      %p98 = pneg %p97
      // Predicated region
      $region9: #{tpu_custom_call.1} parent=5 // pred_check
        _
      $region10: #{tpu_custom_call.1} parent=5 // pred_check_branch
        %100 = sbr.rel (%p97) target = $region12
      $region11: #{tpu_custom_call.1} parent=5 // pred_region
        %s101 = ssub.s32 %s14, 1
        // Predicated region
        $region13: #{tpu_custom_call.1} parent=11 // pred_check
          %p102 = pneg %p35
        $region14: #{tpu_custom_call.1} parent=11 // pred_check_branch
          %104 = sbr.rel (%p102) target = $region16
        $region15: #{tpu_custom_call.1} parent=11 // pred_region
          _
        $region16: #{tpu_custom_call.1} parent=11 // pred_fallthru
          _
      $region12: #{tpu_custom_call.1} parent=5 // pred_fallthru
        _
      %p105 = scmp.lt.s32.totalorder %s14, 2
      // Predicated region
      $region17: #{tpu_custom_call.1} parent=5 // pred_check
        %p106 = pneg %p105
      $region18: #{tpu_custom_call.1} parent=5 // pred_check_branch
        %108 = sbr.rel (%p106) target = $region20
      $region19: #{tpu_custom_call.1} parent=5 // pred_region
        // Predicated region
        $region21: #{tpu_custom_call.1} parent=19 // pred_check
          %p109 = pneg %p55
        $region22: #{tpu_custom_call.1} parent=19 // pred_check_branch
          %111 = sbr.rel (%p109) target = $region24
        $region23: #{tpu_custom_call.1} parent=19 // pred_region
          %s112 = sand.u32 %s45, 1
          %s113 = scalar_lea.sflag [#allocation3], %s112
          %s114 = sand.u32 %s45, 1
          %s115 = smul.addr %s114, 32
          %s116 = scalar_lea.vmem [#allocation2], %s115
          %s117 = smul.u32 8, %s14
          %s119 = ssub.s32 512, 512
          %120 = vsyncadd %s113, %s119
          %s121 = smul.addr %s117, 2
          %s122 = smul.addr %s121, 32
          %s123 = scalar_lea.hbm %s1, %s122
          %s124 = sshll.u32 %s116, 4
          %s125 = int_to_ptr.vmem [resolvable:$true] %s124
          %130 = dma.hbm_to_vmem [thread:$0]  %s123, 512, %s125, %s113, 64, 64, 4
        $region24: #{tpu_custom_call.1} parent=19 // pred_fallthru
          _
      $region20: #{tpu_custom_call.1} parent=5 // pred_fallthru
        _
      %p131 = scmp.le.s32.totalorder 1, %s14
      %p132 = scmp.lt.s32.totalorder %s14, 3
      %p133 = pnand %p131, %p132
      %p134 = pneg %p133
      // Predicated region
      $region25: #{tpu_custom_call.1} parent=5 // pred_check
        _
      $region26: #{tpu_custom_call.1} parent=5 // pred_check_branch
        %136 = sbr.rel (%p133) target = $region28
      $region27: #{tpu_custom_call.1} parent=5 // pred_region
        %s137 = ssub.s32 %s14, 1
        %s138 = sand.u32 %s48, 1
        %s139 = scalar_lea.sflag [#allocation3], %s138
        %s140 = sand.u32 %s48, 1
        %s141 = smul.addr %s140, 32
        %s142 = scalar_lea.vmem [#allocation2], %s141
        // Predicated region
        $region29: #{tpu_custom_call.1} parent=27 // pred_check
          %p143 = pneg %p61
        $region30: #{tpu_custom_call.1} parent=27 // pred_check_branch
          %145 = sbr.rel (%p143) target = $region32
        $region31: #{tpu_custom_call.1} parent=27 // pred_region
          %146 = dma.done %s139, 512
        $region32: #{tpu_custom_call.1} parent=27 // pred_fallthru
          _
        %p147 = pneg %p35
        %p148 = pneg %p32
        %s149 = sand.u32 %s48, 1
        %s150 = scalar_lea.sflag [#allocation3], %s149
        %s151 = sand.u32 %s48, 1
        %s152 = smul.addr %s151, 32
        %s153 = scalar_lea.vmem [#allocation2], %s152
        %p154 = pneg %p61
        %p155 = pneg %p58
        %p156 = pneg %p87
        %p157 = pneg %p84
        %s158 = sand.u32 %s74, 1
        %s159 = scalar_lea.sflag [#allocation4], %s158
        %s160 = sand.u32 %s74, 1
        %s161 = smul.addr %s160, 64
        %s162 = scalar_lea.vmem [#allocation5], %s161
        %s163 = smul.u32 8, %s19
        %s164 = smul.u32 8, %s19
        %v166 = vld [vmem:[%s0] sm:$0xf]
        %s167 = scalar_lea.vmem %s0, 4
        %v168 = vld [vmem:[%s167] sm:$0xf]
        %s169 = scalar_lea.vmem %s0, 8
        %v170 = vld [vmem:[%s169] sm:$0xf]
        %s171 = scalar_lea.vmem %s0, 12
        %v172 = vld [vmem:[%s171] sm:$0xf]
        %s173 = scalar_lea.vmem %s0, 16
        %v174 = vld [vmem:[%s173] sm:$0xf]
        %s175 = scalar_lea.vmem %s0, 20
        %v176 = vld [vmem:[%s175] sm:$0xf]
        %s177 = scalar_lea.vmem %s0, 24
        %v178 = vld [vmem:[%s177] sm:$0xf]
        %s179 = scalar_lea.vmem %s0, 28
        %v180 = vld [vmem:[%s179] sm:$0xf]
        %s181 = scalar_lea.vmem %s0, 32
        %v182 = vld [vmem:[%s181] sm:$0xf]
        %v183 = vld [vmem:[%s142] sm:$0x3]
        %s184 = scalar_lea.vmem %s142, 4 [#allocation2]
        %v185 = vld [vmem:[%s184] sm:$0x3]
        %s186 = scalar_lea.vmem %s142, 8 [#allocation2]
        %v187 = vld [vmem:[%s186] sm:$0x3]
        %s188 = scalar_lea.vmem %s142, 12 [#allocation2]
        %v189 = vld [vmem:[%s188] sm:$0x3]
        %s190 = scalar_lea.vmem %s142, 16 [#allocation2]
        %v191 = vld [vmem:[%s190] sm:$0x3]
        %s192 = scalar_lea.vmem %s142, 20 [#allocation2]
        %v193 = vld [vmem:[%s192] sm:$0x3]
        %s194 = scalar_lea.vmem %s142, 24 [#allocation2]
        %v195 = vld [vmem:[%s194] sm:$0x3]
        %s196 = scalar_lea.vmem %s142, 28 [#allocation2]
        %v197 = vld [vmem:[%s196] sm:$0x3]
        %v198 = vld [vmem:[%s142] sm:$0xf]
        %v201 = vunpack.c.l.s4 1983009808
        %v202 = vunpack.c.0.s8 %v201
        %v203 = vlaneseq
        %v204 = vshrl.u32 %v203, 7
        %v205 = vsub.s32 %v202, %v204
        %v206 = vrot.slane %v198, %v205
        %v207 = vcombine.high %v206, %v206
        %208 = vrot.lane.b32.xlu0 %v206, 127
        %v209 = vpop.permute.xlu0 %208
        %210 = vrot.lane.b32.xlu0 %v207, 127
        %v211 = vpop.permute.xlu0 %210
        %vm212 = vcmask 1039360
        %v213 = vsel %vm212, %v209, %v211
        %vm214 = vcmask 31744
        %v216 = vsel %vm214, %v168, 0
        %vm218 = vcmask 1041408
        %v220 = vsel %vm218, %v213, 0
        %222 = vmatprep.subr.bf16.mxu0 0
        %223 = vmatpush1.bf16.msra.mxu0 %v220
        %224 = vmatprep.subr.bf16.mxu0 0
        %225 = vmatpush1.bf16.msra.mxu0 0
        %226 = vmatprep.subr.bf16.mxu0 0
        %227 = vmatpush1.bf16.msra.mxu0 0
        %228 = vmatprep.subr.bf16.mxu0 0
        %229 = vmatpush1.bf16.msra.mxu0 0
        %230 = vmatprep.subr.bf16.mxu0 0
        %231 = vmatpush1.bf16.msra.mxu0 0
        %232 = vmatprep.subr.bf16.mxu0 0
        %233 = vmatpush1.bf16.msra.mxu0 0
        %234 = vmatprep.subr.bf16.mxu0 0
        %235 = vmatpush1.bf16.msra.mxu0 0
        %236 = vmatprep.subr.bf16.mxu0 0
        %237 = vmatpush1.bf16.msra.mxu0 0
        %238 = vmatprep.subr.bf16.mxu0 0
        %239 = vmatpush1.bf16.msra.mxu0 0
        %240 = vmatprep.subr.bf16.mxu0 0
        %241 = vmatpush1.bf16.msra.mxu0 0
        %242 = vmatprep.subr.bf16.mxu0 0
        %243 = vmatpush1.bf16.msra.mxu0 0
        %244 = vmatprep.subr.bf16.mxu0 0
        %245 = vmatpush1.bf16.msra.mxu0 0
        %246 = vmatprep.subr.bf16.mxu0 0
        %247 = vmatpush1.bf16.msra.mxu0 0
        %248 = vmatprep.subr.bf16.mxu0 0
        %249 = vmatpush1.bf16.msra.mxu0 0
        %250 = vmatprep.subr.bf16.mxu0 0
        %251 = vmatpush1.bf16.msra.mxu0 0
        %252 = vmatprep.subr.bf16.mxu0 0
        %253 = vmatpush1.bf16.msra.mxu0 0
        %254 = vmatprep.mubr.bf16.mxu0 0
        %255 = vmatmul.mubr.bf16.gmra.mrb[0].mxu0 %v216
        %v256 = vpop.f32.mrb[0].mxu0
        %v257 = vadd.f32 0.0, %v256
        %v258 = vpop.f32.mrb[0].mxu0
        %v259 = vpop.f32.mrb[0].mxu0
        %v260 = vpop.f32.mrb[0].mxu0
        %261 = vdwg.mxu0
        %v263 = vsel %vm214, %v166, 0
        %v266 = vsel %vm218, %v183, 0
        %268 = vmatprep.subr.bf16.mxu0 0
        %269 = vmatpush1.bf16.msra.mxu0 %v266
        %270 = vmatprep.subr.bf16.mxu0 0
        %271 = vmatpush1.bf16.msra.mxu0 0
        %272 = vmatprep.subr.bf16.mxu0 0
        %273 = vmatpush1.bf16.msra.mxu0 0
        %274 = vmatprep.subr.bf16.mxu0 0
        %275 = vmatpush1.bf16.msra.mxu0 0
        %276 = vmatprep.subr.bf16.mxu0 0
        %277 = vmatpush1.bf16.msra.mxu0 0
        %278 = vmatprep.subr.bf16.mxu0 0
        %279 = vmatpush1.bf16.msra.mxu0 0
        %280 = vmatprep.subr.bf16.mxu0 0
        %281 = vmatpush1.bf16.msra.mxu0 0
        %282 = vmatprep.subr.bf16.mxu0 0
        %283 = vmatpush1.bf16.msra.mxu0 0
        %284 = vmatprep.subr.bf16.mxu0 0
        %285 = vmatpush1.bf16.msra.mxu0 0
        %286 = vmatprep.subr.bf16.mxu0 0
        %287 = vmatpush1.bf16.msra.mxu0 0
        %288 = vmatprep.subr.bf16.mxu0 0
        %289 = vmatpush1.bf16.msra.mxu0 0
        %290 = vmatprep.subr.bf16.mxu0 0
        %291 = vmatpush1.bf16.msra.mxu0 0
        %292 = vmatprep.subr.bf16.mxu0 0
        %293 = vmatpush1.bf16.msra.mxu0 0
        %294 = vmatprep.subr.bf16.mxu0 0
        %295 = vmatpush1.bf16.msra.mxu0 0
        %296 = vmatprep.subr.bf16.mxu0 0
        %297 = vmatpush1.bf16.msra.mxu0 0
        %298 = vmatprep.subr.bf16.mxu0 0
        %299 = vmatpush1.bf16.msra.mxu0 0
        %300 = vmatprep.mubr.bf16.mxu0 0
        %301 = vmatmul.mubr.bf16.gmra.mrb[0].mxu0 %v263
        %v302 = vpop.f32.mrb[0].mxu0
        %v303 = vadd.f32 %v257, %v302
        %v304 = vpop.f32.mrb[0].mxu0
        %v305 = vpop.f32.mrb[0].mxu0
        %v306 = vpop.f32.mrb[0].mxu0
        %307 = vdwg.mxu0
        %v308 = vld [vmem:[%s184] sm:$0xf]
        %v311 = vunpack.c.l.s4 1983009808
        %v312 = vunpack.c.0.s8 %v311
        %v313 = vlaneseq
        %v314 = vshrl.u32 %v313, 7
        %v315 = vsub.s32 %v312, %v314
        %v316 = vrot.slane %v308, %v315
        %v317 = vcombine.high %v316, %v316
        %318 = vrot.lane.b32.xlu0 %v316, 127
        %v319 = vpop.permute.xlu0 %318
        %320 = vrot.lane.b32.xlu0 %v317, 127
        %v321 = vpop.permute.xlu0 %320
        %v322 = vsel %vm212, %v319, %v321
        %v324 = vsel %vm218, %v322, 0
        %326 = vmatprep.subr.bf16.mxu0 0
        %327 = vmatpush1.bf16.msra.mxu0 %v324
        %328 = vmatprep.subr.bf16.mxu0 0
        %329 = vmatpush1.bf16.msra.mxu0 0
        %330 = vmatprep.subr.bf16.mxu0 0
        %331 = vmatpush1.bf16.msra.mxu0 0
        %332 = vmatprep.subr.bf16.mxu0 0
        %333 = vmatpush1.bf16.msra.mxu0 0
        %334 = vmatprep.subr.bf16.mxu0 0
        %335 = vmatpush1.bf16.msra.mxu0 0
        %336 = vmatprep.subr.bf16.mxu0 0
        %337 = vmatpush1.bf16.msra.mxu0 0
        %338 = vmatprep.subr.bf16.mxu0 0
        %339 = vmatpush1.bf16.msra.mxu0 0
        %340 = vmatprep.subr.bf16.mxu0 0
        %341 = vmatpush1.bf16.msra.mxu0 0
        %342 = vmatprep.subr.bf16.mxu0 0
        %343 = vmatpush1.bf16.msra.mxu0 0
        %344 = vmatprep.subr.bf16.mxu0 0
        %345 = vmatpush1.bf16.msra.mxu0 0
        %346 = vmatprep.subr.bf16.mxu0 0
        %347 = vmatpush1.bf16.msra.mxu0 0
        %348 = vmatprep.subr.bf16.mxu0 0
        %349 = vmatpush1.bf16.msra.mxu0 0
        %350 = vmatprep.subr.bf16.mxu0 0
        %351 = vmatpush1.bf16.msra.mxu0 0
        %352 = vmatprep.subr.bf16.mxu0 0
        %353 = vmatpush1.bf16.msra.mxu0 0
        %354 = vmatprep.subr.bf16.mxu0 0
        %355 = vmatpush1.bf16.msra.mxu0 0
        %356 = vmatprep.subr.bf16.mxu0 0
        %357 = vmatpush1.bf16.msra.mxu0 0
        %358 = vmatprep.mubr.bf16.mxu0 0
        %359 = vmatmul.mubr.bf16.gmra.mrb[0].mxu0 %v216
        %v360 = vpop.f32.mrb[0].mxu0
        %v361 = vadd.f32 0.0, %v360
        %v362 = vpop.f32.mrb[0].mxu0
        %v363 = vpop.f32.mrb[0].mxu0
        %v364 = vpop.f32.mrb[0].mxu0
        %365 = vdwg.mxu0
        %v367 = vsel %vm218, %v185, 0
        %369 = vmatprep.subr.bf16.mxu0 0
        %370 = vmatpush1.bf16.msra.mxu0 %v367
        %371 = vmatprep.subr.bf16.mxu0 0
        %372 = vmatpush1.bf16.msra.mxu0 0
        %373 = vmatprep.subr.bf16.mxu0 0
        %374 = vmatpush1.bf16.msra.mxu0 0
        %375 = vmatprep.subr.bf16.mxu0 0
        %376 = vmatpush1.bf16.msra.mxu0 0
        %377 = vmatprep.subr.bf16.mxu0 0
        %378 = vmatpush1.bf16.msra.mxu0 0
        %379 = vmatprep.subr.bf16.mxu0 0
        %380 = vmatpush1.bf16.msra.mxu0 0
        %381 = vmatprep.subr.bf16.mxu0 0
        %382 = vmatpush1.bf16.msra.mxu0 0
        %383 = vmatprep.subr.bf16.mxu0 0
        %384 = vmatpush1.bf16.msra.mxu0 0
        %385 = vmatprep.subr.bf16.mxu0 0
        %386 = vmatpush1.bf16.msra.mxu0 0
        %387 = vmatprep.subr.bf16.mxu0 0
        %388 = vmatpush1.bf16.msra.mxu0 0
        %389 = vmatprep.subr.bf16.mxu0 0
        %390 = vmatpush1.bf16.msra.mxu0 0
        %391 = vmatprep.subr.bf16.mxu0 0
        %392 = vmatpush1.bf16.msra.mxu0 0
        %393 = vmatprep.subr.bf16.mxu0 0
        %394 = vmatpush1.bf16.msra.mxu0 0
        %395 = vmatprep.subr.bf16.mxu0 0
        %396 = vmatpush1.bf16.msra.mxu0 0
        %397 = vmatprep.subr.bf16.mxu0 0
        %398 = vmatpush1.bf16.msra.mxu0 0
        %399 = vmatprep.subr.bf16.mxu0 0
        %400 = vmatpush1.bf16.msra.mxu0 0
        %401 = vmatprep.mubr.bf16.mxu0 0
        %402 = vmatmul.mubr.bf16.gmra.mrb[0].mxu0 %v263
        %v403 = vpop.f32.mrb[0].mxu0
        %v404 = vadd.f32 %v361, %v403
        %v405 = vpop.f32.mrb[0].mxu0
        %v406 = vpop.f32.mrb[0].mxu0
        %v407 = vpop.f32.mrb[0].mxu0
        %408 = vdwg.mxu0
        %v409 = vld [vmem:[%s186] sm:$0xf]
        %v412 = vunpack.c.l.s4 1983009808
        %v413 = vunpack.c.0.s8 %v412
        %v414 = vlaneseq
        %v415 = vshrl.u32 %v414, 7
        %v416 = vsub.s32 %v413, %v415
        %v417 = vrot.slane %v409, %v416
        %v418 = vcombine.high %v417, %v417
        %419 = vrot.lane.b32.xlu0 %v417, 127
        %v420 = vpop.permute.xlu0 %419
        %421 = vrot.lane.b32.xlu0 %v418, 127
        %v422 = vpop.permute.xlu0 %421
        %v423 = vsel %vm212, %v420, %v422
        %v425 = vsel %vm218, %v423, 0
        %427 = vmatprep.subr.bf16.mxu0 0
        %428 = vmatpush1.bf16.msra.mxu0 %v425
        %429 = vmatprep.subr.bf16.mxu0 0
        %430 = vmatpush1.bf16.msra.mxu0 0
        %431 = vmatprep.subr.bf16.mxu0 0
        %432 = vmatpush1.bf16.msra.mxu0 0
        %433 = vmatprep.subr.bf16.mxu0 0
        %434 = vmatpush1.bf16.msra.mxu0 0
        %435 = vmatprep.subr.bf16.mxu0 0
        %436 = vmatpush1.bf16.msra.mxu0 0
        %437 = vmatprep.subr.bf16.mxu0 0
        %438 = vmatpush1.bf16.msra.mxu0 0
        %439 = vmatprep.subr.bf16.mxu0 0
        %440 = vmatpush1.bf16.msra.mxu0 0
        %441 = vmatprep.subr.bf16.mxu0 0
        %442 = vmatpush1.bf16.msra.mxu0 0
        %443 = vmatprep.subr.bf16.mxu0 0
        %444 = vmatpush1.bf16.msra.mxu0 0
        %445 = vmatprep.subr.bf16.mxu0 0
        %446 = vmatpush1.bf16.msra.mxu0 0
        %447 = vmatprep.subr.bf16.mxu0 0
        %448 = vmatpush1.bf16.msra.mxu0 0
        %449 = vmatprep.subr.bf16.mxu0 0
        %450 = vmatpush1.bf16.msra.mxu0 0
        %451 = vmatprep.subr.bf16.mxu0 0
        %452 = vmatpush1.bf16.msra.mxu0 0
        %453 = vmatprep.subr.bf16.mxu0 0
        %454 = vmatpush1.bf16.msra.mxu0 0
        %455 = vmatprep.subr.bf16.mxu0 0
        %456 = vmatpush1.bf16.msra.mxu0 0
        %457 = vmatprep.subr.bf16.mxu0 0
        %458 = vmatpush1.bf16.msra.mxu0 0
        %459 = vmatprep.mubr.bf16.mxu0 0
        %460 = vmatmul.mubr.bf16.gmra.mrb[0].mxu0 %v216
        %v461 = vpop.f32.mrb[0].mxu0
        %v462 = vadd.f32 0.0, %v461
        %v463 = vpop.f32.mrb[0].mxu0
        %v464 = vpop.f32.mrb[0].mxu0
        %v465 = vpop.f32.mrb[0].mxu0
        %466 = vdwg.mxu0
        %v468 = vsel %vm218, %v187, 0
        %470 = vmatprep.subr.bf16.mxu0 0
        %471 = vmatpush1.bf16.msra.mxu0 %v468
        %472 = vmatprep.subr.bf16.mxu0 0
        %473 = vmatpush1.bf16.msra.mxu0 0
        %474 = vmatprep.subr.bf16.mxu0 0
        %475 = vmatpush1.bf16.msra.mxu0 0
        %476 = vmatprep.subr.bf16.mxu0 0
        %477 = vmatpush1.bf16.msra.mxu0 0
        %478 = vmatprep.subr.bf16.mxu0 0
        %479 = vmatpush1.bf16.msra.mxu0 0
        %480 = vmatprep.subr.bf16.mxu0 0
        %481 = vmatpush1.bf16.msra.mxu0 0
        %482 = vmatprep.subr.bf16.mxu0 0
        %483 = vmatpush1.bf16.msra.mxu0 0
        %484 = vmatprep.subr.bf16.mxu0 0
        %485 = vmatpush1.bf16.msra.mxu0 0
        %486 = vmatprep.subr.bf16.mxu0 0
        %487 = vmatpush1.bf16.msra.mxu0 0
        %488 = vmatprep.subr.bf16.mxu0 0
        %489 = vmatpush1.bf16.msra.mxu0 0
        %490 = vmatprep.subr.bf16.mxu0 0
        %491 = vmatpush1.bf16.msra.mxu0 0
        %492 = vmatprep.subr.bf16.mxu0 0
        %493 = vmatpush1.bf16.msra.mxu0 0
        %494 = vmatprep.subr.bf16.mxu0 0
        %495 = vmatpush1.bf16.msra.mxu0 0
        %496 = vmatprep.subr.bf16.mxu0 0
        %497 = vmatpush1.bf16.msra.mxu0 0
        %498 = vmatprep.subr.bf16.mxu0 0
        %499 = vmatpush1.bf16.msra.mxu0 0
        %500 = vmatprep.subr.bf16.mxu0 0
        %501 = vmatpush1.bf16.msra.mxu0 0
        %502 = vmatprep.mubr.bf16.mxu0 0
        %503 = vmatmul.mubr.bf16.gmra.mrb[0].mxu0 %v263
        %v504 = vpop.f32.mrb[0].mxu0
        %v505 = vadd.f32 %v462, %v504
        %v506 = vpop.f32.mrb[0].mxu0
        %v507 = vpop.f32.mrb[0].mxu0
        %v508 = vpop.f32.mrb[0].mxu0
        %509 = vdwg.mxu0
        %v510 = vld [vmem:[%s188] sm:$0xf]
        %v513 = vunpack.c.l.s4 1983009808
        %v514 = vunpack.c.0.s8 %v513
        %v515 = vlaneseq
        %v516 = vshrl.u32 %v515, 7
        %v517 = vsub.s32 %v514, %v516
        %v518 = vrot.slane %v510, %v517
        %v519 = vcombine.high %v518, %v518
        %520 = vrot.lane.b32.xlu0 %v518, 127
        %v521 = vpop.permute.xlu0 %520
        %522 = vrot.lane.b32.xlu0 %v519, 127
        %v523 = vpop.permute.xlu0 %522
        %v524 = vsel %vm212, %v521, %v523
        %v526 = vsel %vm218, %v524, 0
        %528 = vmatprep.subr.bf16.mxu0 0
        %529 = vmatpush1.bf16.msra.mxu0 %v526
        %530 = vmatprep.subr.bf16.mxu0 0
        %531 = vmatpush1.bf16.msra.mxu0 0
        %532 = vmatprep.subr.bf16.mxu0 0
        %533 = vmatpush1.bf16.msra.mxu0 0
        %534 = vmatprep.subr.bf16.mxu0 0
        %535 = vmatpush1.bf16.msra.mxu0 0
        %536 = vmatprep.subr.bf16.mxu0 0
        %537 = vmatpush1.bf16.msra.mxu0 0
        %538 = vmatprep.subr.bf16.mxu0 0
        %539 = vmatpush1.bf16.msra.mxu0 0
        %540 = vmatprep.subr.bf16.mxu0 0
        %541 = vmatpush1.bf16.msra.mxu0 0
        %542 = vmatprep.subr.bf16.mxu0 0
        %543 = vmatpush1.bf16.msra.mxu0 0
        %544 = vmatprep.subr.bf16.mxu0 0
        %545 = vmatpush1.bf16.msra.mxu0 0
        %546 = vmatprep.subr.bf16.mxu0 0
        %547 = vmatpush1.bf16.msra.mxu0 0
        %548 = vmatprep.subr.bf16.mxu0 0
        %549 = vmatpush1.bf16.msra.mxu0 0
        %550 = vmatprep.subr.bf16.mxu0 0
        %551 = vmatpush1.bf16.msra.mxu0 0
        %552 = vmatprep.subr.bf16.mxu0 0
        %553 = vmatpush1.bf16.msra.mxu0 0
        %554 = vmatprep.subr.bf16.mxu0 0
        %555 = vmatpush1.bf16.msra.mxu0 0
        %556 = vmatprep.subr.bf16.mxu0 0
        %557 = vmatpush1.bf16.msra.mxu0 0
        %558 = vmatprep.subr.bf16.mxu0 0
        %559 = vmatpush1.bf16.msra.mxu0 0
        %560 = vmatprep.mubr.bf16.mxu0 0
        %561 = vmatmul.mubr.bf16.gmra.mrb[0].mxu0 %v216
        %v562 = vpop.f32.mrb[0].mxu0
        %v563 = vadd.f32 0.0, %v562
        %v564 = vpop.f32.mrb[0].mxu0
        %v565 = vpop.f32.mrb[0].mxu0
        %v566 = vpop.f32.mrb[0].mxu0
        %567 = vdwg.mxu0
        %v569 = vsel %vm218, %v189, 0
        %571 = vmatprep.subr.bf16.mxu0 0
        %572 = vmatpush1.bf16.msra.mxu0 %v569
        %573 = vmatprep.subr.bf16.mxu0 0
        %574 = vmatpush1.bf16.msra.mxu0 0
        %575 = vmatprep.subr.bf16.mxu0 0
        %576 = vmatpush1.bf16.msra.mxu0 0
        %577 = vmatprep.subr.bf16.mxu0 0
        %578 = vmatpush1.bf16.msra.mxu0 0
        %579 = vmatprep.subr.bf16.mxu0 0
        %580 = vmatpush1.bf16.msra.mxu0 0
        %581 = vmatprep.subr.bf16.mxu0 0
        %582 = vmatpush1.bf16.msra.mxu0 0
        %583 = vmatprep.subr.bf16.mxu0 0
        %584 = vmatpush1.bf16.msra.mxu0 0
        %585 = vmatprep.subr.bf16.mxu0 0
        %586 = vmatpush1.bf16.msra.mxu0 0
        %587 = vmatprep.subr.bf16.mxu0 0
        %588 = vmatpush1.bf16.msra.mxu0 0
        %589 = vmatprep.subr.bf16.mxu0 0
        %590 = vmatpush1.bf16.msra.mxu0 0
        %591 = vmatprep.subr.bf16.mxu0 0
        %592 = vmatpush1.bf16.msra.mxu0 0
        %593 = vmatprep.subr.bf16.mxu0 0
        %594 = vmatpush1.bf16.msra.mxu0 0
        %595 = vmatprep.subr.bf16.mxu0 0
        %596 = vmatpush1.bf16.msra.mxu0 0
        %597 = vmatprep.subr.bf16.mxu0 0
        %598 = vmatpush1.bf16.msra.mxu0 0
        %599 = vmatprep.subr.bf16.mxu0 0
        %600 = vmatpush1.bf16.msra.mxu0 0
        %601 = vmatprep.subr.bf16.mxu0 0
        %602 = vmatpush1.bf16.msra.mxu0 0
        %603 = vmatprep.mubr.bf16.mxu0 0
        %604 = vmatmul.mubr.bf16.gmra.mrb[0].mxu0 %v263
        %v605 = vpop.f32.mrb[0].mxu0
        %v606 = vadd.f32 %v563, %v605
        %v607 = vpop.f32.mrb[0].mxu0
        %v608 = vpop.f32.mrb[0].mxu0
        %v609 = vpop.f32.mrb[0].mxu0
        %610 = vdwg.mxu0
        %v611 = vld [vmem:[%s190] sm:$0xf]
        %v614 = vunpack.c.l.s4 1983009808
        %v615 = vunpack.c.0.s8 %v614
        %v616 = vlaneseq
        %v617 = vshrl.u32 %v616, 7
        %v618 = vsub.s32 %v615, %v617
        %v619 = vrot.slane %v611, %v618
        %v620 = vcombine.high %v619, %v619
        %621 = vrot.lane.b32.xlu0 %v619, 127
        %v622 = vpop.permute.xlu0 %621
        %623 = vrot.lane.b32.xlu0 %v620, 127
        %v624 = vpop.permute.xlu0 %623
        %v625 = vsel %vm212, %v622, %v624
        %v627 = vsel %vm218, %v625, 0
        %629 = vmatprep.subr.bf16.mxu0 0
        %630 = vmatpush1.bf16.msra.mxu0 %v627
        %631 = vmatprep.subr.bf16.mxu0 0
        %632 = vmatpush1.bf16.msra.mxu0 0
        %633 = vmatprep.subr.bf16.mxu0 0
        %634 = vmatpush1.bf16.msra.mxu0 0
        %635 = vmatprep.subr.bf16.mxu0 0
        %636 = vmatpush1.bf16.msra.mxu0 0
        %637 = vmatprep.subr.bf16.mxu0 0
        %638 = vmatpush1.bf16.msra.mxu0 0
        %639 = vmatprep.subr.bf16.mxu0 0
        %640 = vmatpush1.bf16.msra.mxu0 0
        %641 = vmatprep.subr.bf16.mxu0 0
        %642 = vmatpush1.bf16.msra.mxu0 0
        %643 = vmatprep.subr.bf16.mxu0 0
        %644 = vmatpush1.bf16.msra.mxu0 0
        %645 = vmatprep.subr.bf16.mxu0 0
        %646 = vmatpush1.bf16.msra.mxu0 0
        %647 = vmatprep.subr.bf16.mxu0 0
        %648 = vmatpush1.bf16.msra.mxu0 0
        %649 = vmatprep.subr.bf16.mxu0 0
        %650 = vmatpush1.bf16.msra.mxu0 0
        %651 = vmatprep.subr.bf16.mxu0 0
        %652 = vmatpush1.bf16.msra.mxu0 0
        %653 = vmatprep.subr.bf16.mxu0 0
        %654 = vmatpush1.bf16.msra.mxu0 0
        %655 = vmatprep.subr.bf16.mxu0 0
        %656 = vmatpush1.bf16.msra.mxu0 0
        %657 = vmatprep.subr.bf16.mxu0 0
        %658 = vmatpush1.bf16.msra.mxu0 0
        %659 = vmatprep.subr.bf16.mxu0 0
        %660 = vmatpush1.bf16.msra.mxu0 0
        %661 = vmatprep.mubr.bf16.mxu0 0
        %662 = vmatmul.mubr.bf16.gmra.mrb[0].mxu0 %v216
        %v663 = vpop.f32.mrb[0].mxu0
        %v664 = vadd.f32 0.0, %v663
        %v665 = vpop.f32.mrb[0].mxu0
        %v666 = vpop.f32.mrb[0].mxu0
        %v667 = vpop.f32.mrb[0].mxu0
        %668 = vdwg.mxu0
        %v670 = vsel %vm218, %v191, 0
        %672 = vmatprep.subr.bf16.mxu0 0
        %673 = vmatpush1.bf16.msra.mxu0 %v670
        %674 = vmatprep.subr.bf16.mxu0 0
        %675 = vmatpush1.bf16.msra.mxu0 0
        %676 = vmatprep.subr.bf16.mxu0 0
        %677 = vmatpush1.bf16.msra.mxu0 0
        %678 = vmatprep.subr.bf16.mxu0 0
        %679 = vmatpush1.bf16.msra.mxu0 0
        %680 = vmatprep.subr.bf16.mxu0 0
        %681 = vmatpush1.bf16.msra.mxu0 0
        %682 = vmatprep.subr.bf16.mxu0 0
        %683 = vmatpush1.bf16.msra.mxu0 0
        %684 = vmatprep.subr.bf16.mxu0 0
        %685 = vmatpush1.bf16.msra.mxu0 0
        %686 = vmatprep.subr.bf16.mxu0 0
        %687 = vmatpush1.bf16.msra.mxu0 0
        %688 = vmatprep.subr.bf16.mxu0 0
        %689 = vmatpush1.bf16.msra.mxu0 0
        %690 = vmatprep.subr.bf16.mxu0 0
        %691 = vmatpush1.bf16.msra.mxu0 0
        %692 = vmatprep.subr.bf16.mxu0 0
        %693 = vmatpush1.bf16.msra.mxu0 0
        %694 = vmatprep.subr.bf16.mxu0 0
        %695 = vmatpush1.bf16.msra.mxu0 0
        %696 = vmatprep.subr.bf16.mxu0 0
        %697 = vmatpush1.bf16.msra.mxu0 0
        %698 = vmatprep.subr.bf16.mxu0 0
        %699 = vmatpush1.bf16.msra.mxu0 0
        %700 = vmatprep.subr.bf16.mxu0 0
        %701 = vmatpush1.bf16.msra.mxu0 0
        %702 = vmatprep.subr.bf16.mxu0 0
        %703 = vmatpush1.bf16.msra.mxu0 0
        %704 = vmatprep.mubr.bf16.mxu0 0
        %705 = vmatmul.mubr.bf16.gmra.mrb[0].mxu0 %v263
        %v706 = vpop.f32.mrb[0].mxu0
        %v707 = vadd.f32 %v664, %v706
        %v708 = vpop.f32.mrb[0].mxu0
        %v709 = vpop.f32.mrb[0].mxu0
        %v710 = vpop.f32.mrb[0].mxu0
        %711 = vdwg.mxu0
        %v712 = vld [vmem:[%s192] sm:$0xf]
        %v715 = vunpack.c.l.s4 1983009808
        %v716 = vunpack.c.0.s8 %v715
        %v717 = vlaneseq
        %v718 = vshrl.u32 %v717, 7
        %v719 = vsub.s32 %v716, %v718
        %v720 = vrot.slane %v712, %v719
        %v721 = vcombine.high %v720, %v720
        %722 = vrot.lane.b32.xlu0 %v720, 127
        %v723 = vpop.permute.xlu0 %722
        %724 = vrot.lane.b32.xlu0 %v721, 127
        %v725 = vpop.permute.xlu0 %724
        %v726 = vsel %vm212, %v723, %v725
        %v728 = vsel %vm218, %v726, 0
        %730 = vmatprep.subr.bf16.mxu0 0
        %731 = vmatpush1.bf16.msra.mxu0 %v728
        %732 = vmatprep.subr.bf16.mxu0 0
        %733 = vmatpush1.bf16.msra.mxu0 0
        %734 = vmatprep.subr.bf16.mxu0 0
        %735 = vmatpush1.bf16.msra.mxu0 0
        %736 = vmatprep.subr.bf16.mxu0 0
        %737 = vmatpush1.bf16.msra.mxu0 0
        %738 = vmatprep.subr.bf16.mxu0 0
        %739 = vmatpush1.bf16.msra.mxu0 0
        %740 = vmatprep.subr.bf16.mxu0 0
        %741 = vmatpush1.bf16.msra.mxu0 0
        %742 = vmatprep.subr.bf16.mxu0 0
        %743 = vmatpush1.bf16.msra.mxu0 0
        %744 = vmatprep.subr.bf16.mxu0 0
        %745 = vmatpush1.bf16.msra.mxu0 0
        %746 = vmatprep.subr.bf16.mxu0 0
        %747 = vmatpush1.bf16.msra.mxu0 0
        %748 = vmatprep.subr.bf16.mxu0 0
        %749 = vmatpush1.bf16.msra.mxu0 0
        %750 = vmatprep.subr.bf16.mxu0 0
        %751 = vmatpush1.bf16.msra.mxu0 0
        %752 = vmatprep.subr.bf16.mxu0 0
        %753 = vmatpush1.bf16.msra.mxu0 0
        %754 = vmatprep.subr.bf16.mxu0 0
        %755 = vmatpush1.bf16.msra.mxu0 0
        %756 = vmatprep.subr.bf16.mxu0 0
        %757 = vmatpush1.bf16.msra.mxu0 0
        %758 = vmatprep.subr.bf16.mxu0 0
        %759 = vmatpush1.bf16.msra.mxu0 0
        %760 = vmatprep.subr.bf16.mxu0 0
        %761 = vmatpush1.bf16.msra.mxu0 0
        %762 = vmatprep.mubr.bf16.mxu0 0
        %763 = vmatmul.mubr.bf16.gmra.mrb[0].mxu0 %v216
        %v764 = vpop.f32.mrb[0].mxu0
        %v765 = vadd.f32 0.0, %v764
        %v766 = vpop.f32.mrb[0].mxu0
        %v767 = vpop.f32.mrb[0].mxu0
        %v768 = vpop.f32.mrb[0].mxu0
        %769 = vdwg.mxu0
        %v771 = vsel %vm218, %v193, 0
        %773 = vmatprep.subr.bf16.mxu0 0
        %774 = vmatpush1.bf16.msra.mxu0 %v771
        %775 = vmatprep.subr.bf16.mxu0 0
        %776 = vmatpush1.bf16.msra.mxu0 0
        %777 = vmatprep.subr.bf16.mxu0 0
        %778 = vmatpush1.bf16.msra.mxu0 0
        %779 = vmatprep.subr.bf16.mxu0 0
        %780 = vmatpush1.bf16.msra.mxu0 0
        %781 = vmatprep.subr.bf16.mxu0 0
        %782 = vmatpush1.bf16.msra.mxu0 0
        %783 = vmatprep.subr.bf16.mxu0 0
        %784 = vmatpush1.bf16.msra.mxu0 0
        %785 = vmatprep.subr.bf16.mxu0 0
        %786 = vmatpush1.bf16.msra.mxu0 0
        %787 = vmatprep.subr.bf16.mxu0 0
        %788 = vmatpush1.bf16.msra.mxu0 0
        %789 = vmatprep.subr.bf16.mxu0 0
        %790 = vmatpush1.bf16.msra.mxu0 0
        %791 = vmatprep.subr.bf16.mxu0 0
        %792 = vmatpush1.bf16.msra.mxu0 0
        %793 = vmatprep.subr.bf16.mxu0 0
        %794 = vmatpush1.bf16.msra.mxu0 0
        %795 = vmatprep.subr.bf16.mxu0 0
        %796 = vmatpush1.bf16.msra.mxu0 0
        %797 = vmatprep.subr.bf16.mxu0 0
        %798 = vmatpush1.bf16.msra.mxu0 0
        %799 = vmatprep.subr.bf16.mxu0 0
        %800 = vmatpush1.bf16.msra.mxu0 0
        %801 = vmatprep.subr.bf16.mxu0 0
        %802 = vmatpush1.bf16.msra.mxu0 0
        %803 = vmatprep.subr.bf16.mxu0 0
        %804 = vmatpush1.bf16.msra.mxu0 0
        %805 = vmatprep.mubr.bf16.mxu0 0
        %806 = vmatmul.mubr.bf16.gmra.mrb[0].mxu0 %v263
        %v807 = vpop.f32.mrb[0].mxu0
        %v808 = vadd.f32 %v765, %v807
        %v809 = vpop.f32.mrb[0].mxu0
        %v810 = vpop.f32.mrb[0].mxu0
        %v811 = vpop.f32.mrb[0].mxu0
        %812 = vdwg.mxu0
        %v813 = vld [vmem:[%s194] sm:$0xf]
        %v816 = vunpack.c.l.s4 1983009808
        %v817 = vunpack.c.0.s8 %v816
        %v818 = vlaneseq
        %v819 = vshrl.u32 %v818, 7
        %v820 = vsub.s32 %v817, %v819
        %v821 = vrot.slane %v813, %v820
        %v822 = vcombine.high %v821, %v821
        %823 = vrot.lane.b32.xlu0 %v821, 127
        %v824 = vpop.permute.xlu0 %823
        %825 = vrot.lane.b32.xlu0 %v822, 127
        %v826 = vpop.permute.xlu0 %825
        %v827 = vsel %vm212, %v824, %v826
        %v829 = vsel %vm218, %v827, 0
        %831 = vmatprep.subr.bf16.mxu0 0
        %832 = vmatpush1.bf16.msra.mxu0 %v829
        %833 = vmatprep.subr.bf16.mxu0 0
        %834 = vmatpush1.bf16.msra.mxu0 0
        %835 = vmatprep.subr.bf16.mxu0 0
        %836 = vmatpush1.bf16.msra.mxu0 0
        %837 = vmatprep.subr.bf16.mxu0 0
        %838 = vmatpush1.bf16.msra.mxu0 0
        %839 = vmatprep.subr.bf16.mxu0 0
        %840 = vmatpush1.bf16.msra.mxu0 0
        %841 = vmatprep.subr.bf16.mxu0 0
        %842 = vmatpush1.bf16.msra.mxu0 0
        %843 = vmatprep.subr.bf16.mxu0 0
        %844 = vmatpush1.bf16.msra.mxu0 0
        %845 = vmatprep.subr.bf16.mxu0 0
        %846 = vmatpush1.bf16.msra.mxu0 0
        %847 = vmatprep.subr.bf16.mxu0 0
        %848 = vmatpush1.bf16.msra.mxu0 0
        %849 = vmatprep.subr.bf16.mxu0 0
        %850 = vmatpush1.bf16.msra.mxu0 0
        %851 = vmatprep.subr.bf16.mxu0 0
        %852 = vmatpush1.bf16.msra.mxu0 0
        %853 = vmatprep.subr.bf16.mxu0 0
        %854 = vmatpush1.bf16.msra.mxu0 0
        %855 = vmatprep.subr.bf16.mxu0 0
        %856 = vmatpush1.bf16.msra.mxu0 0
        %857 = vmatprep.subr.bf16.mxu0 0
        %858 = vmatpush1.bf16.msra.mxu0 0
        %859 = vmatprep.subr.bf16.mxu0 0
        %860 = vmatpush1.bf16.msra.mxu0 0
        %861 = vmatprep.subr.bf16.mxu0 0
        %862 = vmatpush1.bf16.msra.mxu0 0
        %863 = vmatprep.mubr.bf16.mxu0 0
        %864 = vmatmul.mubr.bf16.gmra.mrb[0].mxu0 %v216
        %v865 = vpop.f32.mrb[0].mxu0
        %v866 = vadd.f32 0.0, %v865
        %v867 = vpop.f32.mrb[0].mxu0
        %v868 = vpop.f32.mrb[0].mxu0
        %v869 = vpop.f32.mrb[0].mxu0
        %870 = vdwg.mxu0
        %v872 = vsel %vm218, %v195, 0
        %874 = vmatprep.subr.bf16.mxu0 0
        %875 = vmatpush1.bf16.msra.mxu0 %v872
        %876 = vmatprep.subr.bf16.mxu0 0
        %877 = vmatpush1.bf16.msra.mxu0 0
        %878 = vmatprep.subr.bf16.mxu0 0
        %879 = vmatpush1.bf16.msra.mxu0 0
        %880 = vmatprep.subr.bf16.mxu0 0
        %881 = vmatpush1.bf16.msra.mxu0 0
        %882 = vmatprep.subr.bf16.mxu0 0
        %883 = vmatpush1.bf16.msra.mxu0 0
        %884 = vmatprep.subr.bf16.mxu0 0
        %885 = vmatpush1.bf16.msra.mxu0 0
        %886 = vmatprep.subr.bf16.mxu0 0
        %887 = vmatpush1.bf16.msra.mxu0 0
        %888 = vmatprep.subr.bf16.mxu0 0
        %889 = vmatpush1.bf16.msra.mxu0 0
        %890 = vmatprep.subr.bf16.mxu0 0
        %891 = vmatpush1.bf16.msra.mxu0 0
        %892 = vmatprep.subr.bf16.mxu0 0
        %893 = vmatpush1.bf16.msra.mxu0 0
        %894 = vmatprep.subr.bf16.mxu0 0
        %895 = vmatpush1.bf16.msra.mxu0 0
        %896 = vmatprep.subr.bf16.mxu0 0
        %897 = vmatpush1.bf16.msra.mxu0 0
        %898 = vmatprep.subr.bf16.mxu0 0
        %899 = vmatpush1.bf16.msra.mxu0 0
        %900 = vmatprep.subr.bf16.mxu0 0
        %901 = vmatpush1.bf16.msra.mxu0 0
        %902 = vmatprep.subr.bf16.mxu0 0
        %903 = vmatpush1.bf16.msra.mxu0 0
        %904 = vmatprep.subr.bf16.mxu0 0
        %905 = vmatpush1.bf16.msra.mxu0 0
        %906 = vmatprep.mubr.bf16.mxu0 0
        %907 = vmatmul.mubr.bf16.gmra.mrb[0].mxu0 %v263
        %v908 = vpop.f32.mrb[0].mxu0
        %v909 = vadd.f32 %v866, %v908
        %v910 = vpop.f32.mrb[0].mxu0
        %v911 = vpop.f32.mrb[0].mxu0
        %v912 = vpop.f32.mrb[0].mxu0
        %913 = vdwg.mxu0
        %v914 = vld [vmem:[%s196] sm:$0xf]
        %v917 = vunpack.c.l.s4 1983009808
        %v918 = vunpack.c.0.s8 %v917
        %v919 = vlaneseq
        %v920 = vshrl.u32 %v919, 7
        %v921 = vsub.s32 %v918, %v920
        %v922 = vrot.slane %v914, %v921
        %v923 = vcombine.high %v922, %v922
        %924 = vrot.lane.b32.xlu0 %v922, 127
        %v925 = vpop.permute.xlu0 %924
        %926 = vrot.lane.b32.xlu0 %v923, 127
        %v927 = vpop.permute.xlu0 %926
        %v928 = vsel %vm212, %v925, %v927
        %v930 = vsel %vm218, %v928, 0
        %932 = vmatprep.subr.bf16.mxu0 0
        %933 = vmatpush1.bf16.msra.mxu0 %v930
        %934 = vmatprep.subr.bf16.mxu0 0
        %935 = vmatpush1.bf16.msra.mxu0 0
        %936 = vmatprep.subr.bf16.mxu0 0
        %937 = vmatpush1.bf16.msra.mxu0 0
        %938 = vmatprep.subr.bf16.mxu0 0
        %939 = vmatpush1.bf16.msra.mxu0 0
        %940 = vmatprep.subr.bf16.mxu0 0
        %941 = vmatpush1.bf16.msra.mxu0 0
        %942 = vmatprep.subr.bf16.mxu0 0
        %943 = vmatpush1.bf16.msra.mxu0 0
        %944 = vmatprep.subr.bf16.mxu0 0
        %945 = vmatpush1.bf16.msra.mxu0 0
        %946 = vmatprep.subr.bf16.mxu0 0
        %947 = vmatpush1.bf16.msra.mxu0 0
        %948 = vmatprep.subr.bf16.mxu0 0
        %949 = vmatpush1.bf16.msra.mxu0 0
        %950 = vmatprep.subr.bf16.mxu0 0
        %951 = vmatpush1.bf16.msra.mxu0 0
        %952 = vmatprep.subr.bf16.mxu0 0
        %953 = vmatpush1.bf16.msra.mxu0 0
        %954 = vmatprep.subr.bf16.mxu0 0
        %955 = vmatpush1.bf16.msra.mxu0 0
        %956 = vmatprep.subr.bf16.mxu0 0
        %957 = vmatpush1.bf16.msra.mxu0 0
        %958 = vmatprep.subr.bf16.mxu0 0
        %959 = vmatpush1.bf16.msra.mxu0 0
        %960 = vmatprep.subr.bf16.mxu0 0
        %961 = vmatpush1.bf16.msra.mxu0 0
        %962 = vmatprep.subr.bf16.mxu0 0
        %963 = vmatpush1.bf16.msra.mxu0 0
        %964 = vmatprep.mubr.bf16.mxu0 0
        %965 = vmatmul.mubr.bf16.gmra.mrb[0].mxu0 %v216
        %v966 = vpop.f32.mrb[0].mxu0
        %v967 = vadd.f32 0.0, %v966
        %v968 = vpop.f32.mrb[0].mxu0
        %v969 = vpop.f32.mrb[0].mxu0
        %v970 = vpop.f32.mrb[0].mxu0
        %971 = vdwg.mxu0
        %v973 = vsel %vm218, %v197, 0
        %975 = vmatprep.subr.bf16.mxu0 0
        %976 = vmatpush1.bf16.msra.mxu0 %v973
        %977 = vmatprep.subr.bf16.mxu0 0
        %978 = vmatpush1.bf16.msra.mxu0 0
        %979 = vmatprep.subr.bf16.mxu0 0
        %980 = vmatpush1.bf16.msra.mxu0 0
        %981 = vmatprep.subr.bf16.mxu0 0
        %982 = vmatpush1.bf16.msra.mxu0 0
        %983 = vmatprep.subr.bf16.mxu0 0
        %984 = vmatpush1.bf16.msra.mxu0 0
        %985 = vmatprep.subr.bf16.mxu0 0
        %986 = vmatpush1.bf16.msra.mxu0 0
        %987 = vmatprep.subr.bf16.mxu0 0
        %988 = vmatpush1.bf16.msra.mxu0 0
        %989 = vmatprep.subr.bf16.mxu0 0
        %990 = vmatpush1.bf16.msra.mxu0 0
        %991 = vmatprep.subr.bf16.mxu0 0
        %992 = vmatpush1.bf16.msra.mxu0 0
        %993 = vmatprep.subr.bf16.mxu0 0
        %994 = vmatpush1.bf16.msra.mxu0 0
        %995 = vmatprep.subr.bf16.mxu0 0
        %996 = vmatpush1.bf16.msra.mxu0 0
        %997 = vmatprep.subr.bf16.mxu0 0
        %998 = vmatpush1.bf16.msra.mxu0 0
        %999 = vmatprep.subr.bf16.mxu0 0
        %1000 = vmatpush1.bf16.msra.mxu0 0
        %1001 = vmatprep.subr.bf16.mxu0 0
        %1002 = vmatpush1.bf16.msra.mxu0 0
        %1003 = vmatprep.subr.bf16.mxu0 0
        %1004 = vmatpush1.bf16.msra.mxu0 0
        %1005 = vmatprep.subr.bf16.mxu0 0
        %1006 = vmatpush1.bf16.msra.mxu0 0
        %1007 = vmatprep.mubr.bf16.mxu0 0
        %1008 = vmatmul.mubr.bf16.gmra.mrb[0].mxu0 %v263
        %v1009 = vpop.f32.mrb[0].mxu0
        %v1010 = vadd.f32 %v967, %v1009
        %v1011 = vpop.f32.mrb[0].mxu0
        %v1012 = vpop.f32.mrb[0].mxu0
        %v1013 = vpop.f32.mrb[0].mxu0
        %1014 = vdwg.mxu0
        %v1015 = vld [vmem:[%s142] sm:$0xf]
        %v1018 = vunpack.c.l.s4 1983009808
        %v1019 = vunpack.c.0.s8 %v1018
        %v1020 = vlaneseq
        %v1021 = vshrl.u32 %v1020, 7
        %v1022 = vsub.s32 %v1019, %v1021
        %v1023 = vrot.slane %v1015, %v1022
        %v1024 = vcombine.high %v1023, %v1023
        %1025 = vrot.lane.b32.xlu0 %v1023, 126
        %v1026 = vpop.permute.xlu0 %1025
        %1027 = vrot.lane.b32.xlu0 %v1024, 126
        %v1028 = vpop.permute.xlu0 %1027
        %vm1029 = vcmask 1031168
        %v1030 = vsel %vm1029, %v1026, %v1028
        %v1032 = vsel %vm214, %v170, 0
        %v1035 = vsel %vm218, %v1030, 0
        %1037 = vmatprep.subr.bf16.mxu0 0
        %1038 = vmatpush1.bf16.msra.mxu0 %v1035
        %1039 = vmatprep.subr.bf16.mxu0 0
        %1040 = vmatpush1.bf16.msra.mxu0 0
        %1041 = vmatprep.subr.bf16.mxu0 0
        %1042 = vmatpush1.bf16.msra.mxu0 0
        %1043 = vmatprep.subr.bf16.mxu0 0
        %1044 = vmatpush1.bf16.msra.mxu0 0
        %1045 = vmatprep.subr.bf16.mxu0 0
        %1046 = vmatpush1.bf16.msra.mxu0 0
        %1047 = vmatprep.subr.bf16.mxu0 0
        %1048 = vmatpush1.bf16.msra.mxu0 0
        %1049 = vmatprep.subr.bf16.mxu0 0
        %1050 = vmatpush1.bf16.msra.mxu0 0
        %1051 = vmatprep.subr.bf16.mxu0 0
        %1052 = vmatpush1.bf16.msra.mxu0 0
        %1053 = vmatprep.subr.bf16.mxu0 0
        %1054 = vmatpush1.bf16.msra.mxu0 0
        %1055 = vmatprep.subr.bf16.mxu0 0
        %1056 = vmatpush1.bf16.msra.mxu0 0
        %1057 = vmatprep.subr.bf16.mxu0 0
        %1058 = vmatpush1.bf16.msra.mxu0 0
        %1059 = vmatprep.subr.bf16.mxu0 0
        %1060 = vmatpush1.bf16.msra.mxu0 0
        %1061 = vmatprep.subr.bf16.mxu0 0
        %1062 = vmatpush1.bf16.msra.mxu0 0
        %1063 = vmatprep.subr.bf16.mxu0 0
        %1064 = vmatpush1.bf16.msra.mxu0 0
        %1065 = vmatprep.subr.bf16.mxu0 0
        %1066 = vmatpush1.bf16.msra.mxu0 0
        %1067 = vmatprep.subr.bf16.mxu0 0
        %1068 = vmatpush1.bf16.msra.mxu0 0
        %1069 = vmatprep.mubr.bf16.mxu0 0
        %1070 = vmatmul.mubr.bf16.gmra.mrb[0].mxu0 %v1032
        %v1071 = vpop.f32.mrb[0].mxu0
        %v1072 = vadd.f32 0.0, %v1071
        %v1073 = vpop.f32.mrb[0].mxu0
        %v1074 = vpop.f32.mrb[0].mxu0
        %v1075 = vpop.f32.mrb[0].mxu0
        %1076 = vdwg.mxu0
        %v1077 = vadd.f32 %v303, %v1072
        %v1078 = vld [vmem:[%s184] sm:$0xf]
        %v1081 = vunpack.c.l.s4 1983009808
        %v1082 = vunpack.c.0.s8 %v1081
        %v1083 = vlaneseq
        %v1084 = vshrl.u32 %v1083, 7
        %v1085 = vsub.s32 %v1082, %v1084
        %v1086 = vrot.slane %v1078, %v1085
        %v1087 = vcombine.high %v1086, %v1086
        %1088 = vrot.lane.b32.xlu0 %v1086, 126
        %v1089 = vpop.permute.xlu0 %1088
        %1090 = vrot.lane.b32.xlu0 %v1087, 126
        %v1091 = vpop.permute.xlu0 %1090
        %v1092 = vsel %vm1029, %v1089, %v1091
        %v1094 = vsel %vm218, %v1092, 0
        %1096 = vmatprep.subr.bf16.mxu0 0
        %1097 = vmatpush1.bf16.msra.mxu0 %v1094
        %1098 = vmatprep.subr.bf16.mxu0 0
        %1099 = vmatpush1.bf16.msra.mxu0 0
        %1100 = vmatprep.subr.bf16.mxu0 0
        %1101 = vmatpush1.bf16.msra.mxu0 0
        %1102 = vmatprep.subr.bf16.mxu0 0
        %1103 = vmatpush1.bf16.msra.mxu0 0
        %1104 = vmatprep.subr.bf16.mxu0 0
        %1105 = vmatpush1.bf16.msra.mxu0 0
        %1106 = vmatprep.subr.bf16.mxu0 0
        %1107 = vmatpush1.bf16.msra.mxu0 0
        %1108 = vmatprep.subr.bf16.mxu0 0
        %1109 = vmatpush1.bf16.msra.mxu0 0
        %1110 = vmatprep.subr.bf16.mxu0 0
        %1111 = vmatpush1.bf16.msra.mxu0 0
        %1112 = vmatprep.subr.bf16.mxu0 0
        %1113 = vmatpush1.bf16.msra.mxu0 0
        %1114 = vmatprep.subr.bf16.mxu0 0
        %1115 = vmatpush1.bf16.msra.mxu0 0
        %1116 = vmatprep.subr.bf16.mxu0 0
        %1117 = vmatpush1.bf16.msra.mxu0 0
        %1118 = vmatprep.subr.bf16.mxu0 0
        %1119 = vmatpush1.bf16.msra.mxu0 0
        %1120 = vmatprep.subr.bf16.mxu0 0
        %1121 = vmatpush1.bf16.msra.mxu0 0
        %1122 = vmatprep.subr.bf16.mxu0 0
        %1123 = vmatpush1.bf16.msra.mxu0 0
        %1124 = vmatprep.subr.bf16.mxu0 0
        %1125 = vmatpush1.bf16.msra.mxu0 0
        %1126 = vmatprep.subr.bf16.mxu0 0
        %1127 = vmatpush1.bf16.msra.mxu0 0
        %1128 = vmatprep.mubr.bf16.mxu0 0
        %1129 = vmatmul.mubr.bf16.gmra.mrb[0].mxu0 %v1032
        %v1130 = vpop.f32.mrb[0].mxu0
        %v1131 = vadd.f32 0.0, %v1130
        %v1132 = vpop.f32.mrb[0].mxu0
        %v1133 = vpop.f32.mrb[0].mxu0
        %v1134 = vpop.f32.mrb[0].mxu0
        %1135 = vdwg.mxu0
        %v1136 = vadd.f32 %v404, %v1131
        %v1137 = vld [vmem:[%s186] sm:$0xf]
        %v1140 = vunpack.c.l.s4 1983009808
        %v1141 = vunpack.c.0.s8 %v1140
        %v1142 = vlaneseq
        %v1143 = vshrl.u32 %v1142, 7
        %v1144 = vsub.s32 %v1141, %v1143
        %v1145 = vrot.slane %v1137, %v1144
        %v1146 = vcombine.high %v1145, %v1145
        %1147 = vrot.lane.b32.xlu0 %v1145, 126
        %v1148 = vpop.permute.xlu0 %1147
        %1149 = vrot.lane.b32.xlu0 %v1146, 126
        %v1150 = vpop.permute.xlu0 %1149
        %v1151 = vsel %vm1029, %v1148, %v1150
        %v1153 = vsel %vm218, %v1151, 0
        %1155 = vmatprep.subr.bf16.mxu0 0
        %1156 = vmatpush1.bf16.msra.mxu0 %v1153
        %1157 = vmatprep.subr.bf16.mxu0 0
        %1158 = vmatpush1.bf16.msra.mxu0 0
        %1159 = vmatprep.subr.bf16.mxu0 0
        %1160 = vmatpush1.bf16.msra.mxu0 0
        %1161 = vmatprep.subr.bf16.mxu0 0
        %1162 = vmatpush1.bf16.msra.mxu0 0
        %1163 = vmatprep.subr.bf16.mxu0 0
        %1164 = vmatpush1.bf16.msra.mxu0 0
        %1165 = vmatprep.subr.bf16.mxu0 0
        %1166 = vmatpush1.bf16.msra.mxu0 0
        %1167 = vmatprep.subr.bf16.mxu0 0
        %1168 = vmatpush1.bf16.msra.mxu0 0
        %1169 = vmatprep.subr.bf16.mxu0 0
        %1170 = vmatpush1.bf16.msra.mxu0 0
        %1171 = vmatprep.subr.bf16.mxu0 0
        %1172 = vmatpush1.bf16.msra.mxu0 0
        %1173 = vmatprep.subr.bf16.mxu0 0
        %1174 = vmatpush1.bf16.msra.mxu0 0
        %1175 = vmatprep.subr.bf16.mxu0 0
        %1176 = vmatpush1.bf16.msra.mxu0 0
        %1177 = vmatprep.subr.bf16.mxu0 0
        %1178 = vmatpush1.bf16.msra.mxu0 0
        %1179 = vmatprep.subr.bf16.mxu0 0
        %1180 = vmatpush1.bf16.msra.mxu0 0
        %1181 = vmatprep.subr.bf16.mxu0 0
        %1182 = vmatpush1.bf16.msra.mxu0 0
        %1183 = vmatprep.subr.bf16.mxu0 0
        %1184 = vmatpush1.bf16.msra.mxu0 0
        %1185 = vmatprep.subr.bf16.mxu0 0
        %1186 = vmatpush1.bf16.msra.mxu0 0
        %1187 = vmatprep.mubr.bf16.mxu0 0
        %1188 = vmatmul.mubr.bf16.gmra.mrb[0].mxu0 %v1032
        %v1189 = vpop.f32.mrb[0].mxu0
        %v1190 = vadd.f32 0.0, %v1189
        %v1191 = vpop.f32.mrb[0].mxu0
        %v1192 = vpop.f32.mrb[0].mxu0
        %v1193 = vpop.f32.mrb[0].mxu0
        %1194 = vdwg.mxu0
        %v1195 = vadd.f32 %v505, %v1190
        %v1196 = vld [vmem:[%s188] sm:$0xf]
        %v1199 = vunpack.c.l.s4 1983009808
        %v1200 = vunpack.c.0.s8 %v1199
        %v1201 = vlaneseq
        %v1202 = vshrl.u32 %v1201, 7
        %v1203 = vsub.s32 %v1200, %v1202
        %v1204 = vrot.slane %v1196, %v1203
        %v1205 = vcombine.high %v1204, %v1204
        %1206 = vrot.lane.b32.xlu0 %v1204, 126
        %v1207 = vpop.permute.xlu0 %1206
        %1208 = vrot.lane.b32.xlu0 %v1205, 126
        %v1209 = vpop.permute.xlu0 %1208
        %v1210 = vsel %vm1029, %v1207, %v1209
        %v1212 = vsel %vm218, %v1210, 0
        %1214 = vmatprep.subr.bf16.mxu0 0
        %1215 = vmatpush1.bf16.msra.mxu0 %v1212
        %1216 = vmatprep.subr.bf16.mxu0 0
        %1217 = vmatpush1.bf16.msra.mxu0 0
        %1218 = vmatprep.subr.bf16.mxu0 0
        %1219 = vmatpush1.bf16.msra.mxu0 0
        %1220 = vmatprep.subr.bf16.mxu0 0
        %1221 = vmatpush1.bf16.msra.mxu0 0
        %1222 = vmatprep.subr.bf16.mxu0 0
        %1223 = vmatpush1.bf16.msra.mxu0 0
        %1224 = vmatprep.subr.bf16.mxu0 0
        %1225 = vmatpush1.bf16.msra.mxu0 0
        %1226 = vmatprep.subr.bf16.mxu0 0
        %1227 = vmatpush1.bf16.msra.mxu0 0
        %1228 = vmatprep.subr.bf16.mxu0 0
        %1229 = vmatpush1.bf16.msra.mxu0 0
        %1230 = vmatprep.subr.bf16.mxu0 0
        %1231 = vmatpush1.bf16.msra.mxu0 0
        %1232 = vmatprep.subr.bf16.mxu0 0
        %1233 = vmatpush1.bf16.msra.mxu0 0
        %1234 = vmatprep.subr.bf16.mxu0 0
        %1235 = vmatpush1.bf16.msra.mxu0 0
        %1236 = vmatprep.subr.bf16.mxu0 0
        %1237 = vmatpush1.bf16.msra.mxu0 0
        %1238 = vmatprep.subr.bf16.mxu0 0
        %1239 = vmatpush1.bf16.msra.mxu0 0
        %1240 = vmatprep.subr.bf16.mxu0 0
        %1241 = vmatpush1.bf16.msra.mxu0 0
        %1242 = vmatprep.subr.bf16.mxu0 0
        %1243 = vmatpush1.bf16.msra.mxu0 0
        %1244 = vmatprep.subr.bf16.mxu0 0
        %1245 = vmatpush1.bf16.msra.mxu0 0
        %1246 = vmatprep.mubr.bf16.mxu0 0
        %1247 = vmatmul.mubr.bf16.gmra.mrb[0].mxu0 %v1032
        %v1248 = vpop.f32.mrb[0].mxu0
        %v1249 = vadd.f32 0.0, %v1248
        %v1250 = vpop.f32.mrb[0].mxu0
        %v1251 = vpop.f32.mrb[0].mxu0
        %v1252 = vpop.f32.mrb[0].mxu0
        %1253 = vdwg.mxu0
        %v1254 = vadd.f32 %v606, %v1249
        %v1255 = vld [vmem:[%s190] sm:$0xf]
        %v1258 = vunpack.c.l.s4 1983009808
        %v1259 = vunpack.c.0.s8 %v1258
        %v1260 = vlaneseq
        %v1261 = vshrl.u32 %v1260, 7
        %v1262 = vsub.s32 %v1259, %v1261
        %v1263 = vrot.slane %v1255, %v1262
        %v1264 = vcombine.high %v1263, %v1263
        %1265 = vrot.lane.b32.xlu0 %v1263, 126
        %v1266 = vpop.permute.xlu0 %1265
        %1267 = vrot.lane.b32.xlu0 %v1264, 126
        %v1268 = vpop.permute.xlu0 %1267
        %v1269 = vsel %vm1029, %v1266, %v1268
        %v1271 = vsel %vm218, %v1269, 0
        %1273 = vmatprep.subr.bf16.mxu0 0
        %1274 = vmatpush1.bf16.msra.mxu0 %v1271
        %1275 = vmatprep.subr.bf16.mxu0 0
        %1276 = vmatpush1.bf16.msra.mxu0 0
        %1277 = vmatprep.subr.bf16.mxu0 0
        %1278 = vmatpush1.bf16.msra.mxu0 0
        %1279 = vmatprep.subr.bf16.mxu0 0
        %1280 = vmatpush1.bf16.msra.mxu0 0
        %1281 = vmatprep.subr.bf16.mxu0 0
        %1282 = vmatpush1.bf16.msra.mxu0 0
        %1283 = vmatprep.subr.bf16.mxu0 0
        %1284 = vmatpush1.bf16.msra.mxu0 0
        %1285 = vmatprep.subr.bf16.mxu0 0
        %1286 = vmatpush1.bf16.msra.mxu0 0
        %1287 = vmatprep.subr.bf16.mxu0 0
        %1288 = vmatpush1.bf16.msra.mxu0 0
        %1289 = vmatprep.subr.bf16.mxu0 0
        %1290 = vmatpush1.bf16.msra.mxu0 0
        %1291 = vmatprep.subr.bf16.mxu0 0
        %1292 = vmatpush1.bf16.msra.mxu0 0
        %1293 = vmatprep.subr.bf16.mxu0 0
        %1294 = vmatpush1.bf16.msra.mxu0 0
        %1295 = vmatprep.subr.bf16.mxu0 0
        %1296 = vmatpush1.bf16.msra.mxu0 0
        %1297 = vmatprep.subr.bf16.mxu0 0
        %1298 = vmatpush1.bf16.msra.mxu0 0
        %1299 = vmatprep.subr.bf16.mxu0 0
        %1300 = vmatpush1.bf16.msra.mxu0 0
        %1301 = vmatprep.subr.bf16.mxu0 0
        %1302 = vmatpush1.bf16.msra.mxu0 0
        %1303 = vmatprep.subr.bf16.mxu0 0
        %1304 = vmatpush1.bf16.msra.mxu0 0
        %1305 = vmatprep.mubr.bf16.mxu0 0
        %1306 = vmatmul.mubr.bf16.gmra.mrb[0].mxu0 %v1032
        %v1307 = vpop.f32.mrb[0].mxu0
        %v1308 = vadd.f32 0.0, %v1307
        %v1309 = vpop.f32.mrb[0].mxu0
        %v1310 = vpop.f32.mrb[0].mxu0
        %v1311 = vpop.f32.mrb[0].mxu0
        %1312 = vdwg.mxu0
        %v1313 = vadd.f32 %v707, %v1308
        %v1314 = vld [vmem:[%s192] sm:$0xf]
        %v1317 = vunpack.c.l.s4 1983009808
        %v1318 = vunpack.c.0.s8 %v1317
        %v1319 = vlaneseq
        %v1320 = vshrl.u32 %v1319, 7
        %v1321 = vsub.s32 %v1318, %v1320
        %v1322 = vrot.slane %v1314, %v1321
        %v1323 = vcombine.high %v1322, %v1322
        %1324 = vrot.lane.b32.xlu0 %v1322, 126
        %v1325 = vpop.permute.xlu0 %1324
        %1326 = vrot.lane.b32.xlu0 %v1323, 126
        %v1327 = vpop.permute.xlu0 %1326
        %v1328 = vsel %vm1029, %v1325, %v1327
        %v1330 = vsel %vm218, %v1328, 0
        %1332 = vmatprep.subr.bf16.mxu0 0
        %1333 = vmatpush1.bf16.msra.mxu0 %v1330
        %1334 = vmatprep.subr.bf16.mxu0 0
        %1335 = vmatpush1.bf16.msra.mxu0 0
        %1336 = vmatprep.subr.bf16.mxu0 0
        %1337 = vmatpush1.bf16.msra.mxu0 0
        %1338 = vmatprep.subr.bf16.mxu0 0
        %1339 = vmatpush1.bf16.msra.mxu0 0
        %1340 = vmatprep.subr.bf16.mxu0 0
        %1341 = vmatpush1.bf16.msra.mxu0 0
        %1342 = vmatprep.subr.bf16.mxu0 0
        %1343 = vmatpush1.bf16.msra.mxu0 0
        %1344 = vmatprep.subr.bf16.mxu0 0
        %1345 = vmatpush1.bf16.msra.mxu0 0
        %1346 = vmatprep.subr.bf16.mxu0 0
        %1347 = vmatpush1.bf16.msra.mxu0 0
        %1348 = vmatprep.subr.bf16.mxu0 0
        %1349 = vmatpush1.bf16.msra.mxu0 0
        %1350 = vmatprep.subr.bf16.mxu0 0
        %1351 = vmatpush1.bf16.msra.mxu0 0
        %1352 = vmatprep.subr.bf16.mxu0 0
        %1353 = vmatpush1.bf16.msra.mxu0 0
        %1354 = vmatprep.subr.bf16.mxu0 0
        %1355 = vmatpush1.bf16.msra.mxu0 0
        %1356 = vmatprep.subr.bf16.mxu0 0
        %1357 = vmatpush1.bf16.msra.mxu0 0
        %1358 = vmatprep.subr.bf16.mxu0 0
        %1359 = vmatpush1.bf16.msra.mxu0 0
        %1360 = vmatprep.subr.bf16.mxu0 0
        %1361 = vmatpush1.bf16.msra.mxu0 0
        %1362 = vmatprep.subr.bf16.mxu0 0
        %1363 = vmatpush1.bf16.msra.mxu0 0
        %1364 = vmatprep.mubr.bf16.mxu0 0
        %1365 = vmatmul.mubr.bf16.gmra.mrb[0].mxu0 %v1032
        %v1366 = vpop.f32.mrb[0].mxu0
        %v1367 = vadd.f32 0.0, %v1366
        %v1368 = vpop.f32.mrb[0].mxu0
        %v1369 = vpop.f32.mrb[0].mxu0
        %v1370 = vpop.f32.mrb[0].mxu0
        %1371 = vdwg.mxu0
        %v1372 = vadd.f32 %v808, %v1367
        %v1373 = vld [vmem:[%s194] sm:$0xf]
        %v1376 = vunpack.c.l.s4 1983009808
        %v1377 = vunpack.c.0.s8 %v1376
        %v1378 = vlaneseq
        %v1379 = vshrl.u32 %v1378, 7
        %v1380 = vsub.s32 %v1377, %v1379
        %v1381 = vrot.slane %v1373, %v1380
        %v1382 = vcombine.high %v1381, %v1381
        %1383 = vrot.lane.b32.xlu0 %v1381, 126
        %v1384 = vpop.permute.xlu0 %1383
        %1385 = vrot.lane.b32.xlu0 %v1382, 126
        %v1386 = vpop.permute.xlu0 %1385
        %v1387 = vsel %vm1029, %v1384, %v1386
        %v1389 = vsel %vm218, %v1387, 0
        %1391 = vmatprep.subr.bf16.mxu0 0
        %1392 = vmatpush1.bf16.msra.mxu0 %v1389
        %1393 = vmatprep.subr.bf16.mxu0 0
        %1394 = vmatpush1.bf16.msra.mxu0 0
        %1395 = vmatprep.subr.bf16.mxu0 0
        %1396 = vmatpush1.bf16.msra.mxu0 0
        %1397 = vmatprep.subr.bf16.mxu0 0
        %1398 = vmatpush1.bf16.msra.mxu0 0
        %1399 = vmatprep.subr.bf16.mxu0 0
        %1400 = vmatpush1.bf16.msra.mxu0 0
        %1401 = vmatprep.subr.bf16.mxu0 0
        %1402 = vmatpush1.bf16.msra.mxu0 0
        %1403 = vmatprep.subr.bf16.mxu0 0
        %1404 = vmatpush1.bf16.msra.mxu0 0
        %1405 = vmatprep.subr.bf16.mxu0 0
        %1406 = vmatpush1.bf16.msra.mxu0 0
        %1407 = vmatprep.subr.bf16.mxu0 0
        %1408 = vmatpush1.bf16.msra.mxu0 0
        %1409 = vmatprep.subr.bf16.mxu0 0
        %1410 = vmatpush1.bf16.msra.mxu0 0
        %1411 = vmatprep.subr.bf16.mxu0 0
        %1412 = vmatpush1.bf16.msra.mxu0 0
        %1413 = vmatprep.subr.bf16.mxu0 0
        %1414 = vmatpush1.bf16.msra.mxu0 0
        %1415 = vmatprep.subr.bf16.mxu0 0
        %1416 = vmatpush1.bf16.msra.mxu0 0
        %1417 = vmatprep.subr.bf16.mxu0 0
        %1418 = vmatpush1.bf16.msra.mxu0 0
        %1419 = vmatprep.subr.bf16.mxu0 0
        %1420 = vmatpush1.bf16.msra.mxu0 0
        %1421 = vmatprep.subr.bf16.mxu0 0
        %1422 = vmatpush1.bf16.msra.mxu0 0
        %1423 = vmatprep.mubr.bf16.mxu0 0
        %1424 = vmatmul.mubr.bf16.gmra.mrb[0].mxu0 %v1032
        %v1425 = vpop.f32.mrb[0].mxu0
        %v1426 = vadd.f32 0.0, %v1425
        %v1427 = vpop.f32.mrb[0].mxu0
        %v1428 = vpop.f32.mrb[0].mxu0
        %v1429 = vpop.f32.mrb[0].mxu0
        %1430 = vdwg.mxu0
        %v1431 = vadd.f32 %v909, %v1426
        %v1432 = vld [vmem:[%s196] sm:$0xf]
        %v1435 = vunpack.c.l.s4 1983009808
        %v1436 = vunpack.c.0.s8 %v1435
        %v1437 = vlaneseq
        %v1438 = vshrl.u32 %v1437, 7
        %v1439 = vsub.s32 %v1436, %v1438
        %v1440 = vrot.slane %v1432, %v1439
        %v1441 = vcombine.high %v1440, %v1440
        %1442 = vrot.lane.b32.xlu0 %v1440, 126
        %v1443 = vpop.permute.xlu0 %1442
        %1444 = vrot.lane.b32.xlu0 %v1441, 126
        %v1445 = vpop.permute.xlu0 %1444
        %v1446 = vsel %vm1029, %v1443, %v1445
        %v1448 = vsel %vm218, %v1446, 0
        %1450 = vmatprep.subr.bf16.mxu0 0
        %1451 = vmatpush1.bf16.msra.mxu0 %v1448
        %1452 = vmatprep.subr.bf16.mxu0 0
        %1453 = vmatpush1.bf16.msra.mxu0 0
        %1454 = vmatprep.subr.bf16.mxu0 0
        %1455 = vmatpush1.bf16.msra.mxu0 0
        %1456 = vmatprep.subr.bf16.mxu0 0
        %1457 = vmatpush1.bf16.msra.mxu0 0
        %1458 = vmatprep.subr.bf16.mxu0 0
        %1459 = vmatpush1.bf16.msra.mxu0 0
        %1460 = vmatprep.subr.bf16.mxu0 0
        %1461 = vmatpush1.bf16.msra.mxu0 0
        %1462 = vmatprep.subr.bf16.mxu0 0
        %1463 = vmatpush1.bf16.msra.mxu0 0
        %1464 = vmatprep.subr.bf16.mxu0 0
        %1465 = vmatpush1.bf16.msra.mxu0 0
        %1466 = vmatprep.subr.bf16.mxu0 0
        %1467 = vmatpush1.bf16.msra.mxu0 0
        %1468 = vmatprep.subr.bf16.mxu0 0
        %1469 = vmatpush1.bf16.msra.mxu0 0
        %1470 = vmatprep.subr.bf16.mxu0 0
        %1471 = vmatpush1.bf16.msra.mxu0 0
        %1472 = vmatprep.subr.bf16.mxu0 0
        %1473 = vmatpush1.bf16.msra.mxu0 0
        %1474 = vmatprep.subr.bf16.mxu0 0
        %1475 = vmatpush1.bf16.msra.mxu0 0
        %1476 = vmatprep.subr.bf16.mxu0 0
        %1477 = vmatpush1.bf16.msra.mxu0 0
        %1478 = vmatprep.subr.bf16.mxu0 0
        %1479 = vmatpush1.bf16.msra.mxu0 0
        %1480 = vmatprep.subr.bf16.mxu0 0
        %1481 = vmatpush1.bf16.msra.mxu0 0
        %1482 = vmatprep.mubr.bf16.mxu0 0
        %1483 = vmatmul.mubr.bf16.gmra.mrb[0].mxu0 %v1032
        %v1484 = vpop.f32.mrb[0].mxu0
        %v1485 = vadd.f32 0.0, %v1484
        %v1486 = vpop.f32.mrb[0].mxu0
        %v1487 = vpop.f32.mrb[0].mxu0
        %v1488 = vpop.f32.mrb[0].mxu0
        %1489 = vdwg.mxu0
        %v1490 = vadd.f32 %v1010, %v1485
        %v1491 = vld [vmem:[%s142] sm:$0xf]
        %v1494 = vunpack.c.l.s4 1983009808
        %v1495 = vunpack.c.0.s8 %v1494
        %v1496 = vlaneseq
        %v1497 = vshrl.u32 %v1496, 7
        %v1498 = vsub.s32 %v1495, %v1497
        %v1499 = vrot.slane %v1491, %v1498
        %v1500 = vcombine.high %v1499, %v1499
        %1501 = vrot.lane.b32.xlu0 %v1499, 116
        %v1502 = vpop.permute.xlu0 %1501
        %1503 = vrot.lane.b32.xlu0 %v1500, 116
        %v1504 = vpop.permute.xlu0 %1503
        %vm1505 = vcmask 949248
        %v1506 = vsel %vm1505, %v1502, %v1504
        %v1508 = vsel %vm214, %v172, 0
        %v1511 = vsel %vm218, %v1506, 0
        %1513 = vmatprep.subr.bf16.mxu0 0
        %1514 = vmatpush1.bf16.msra.mxu0 %v1511
        %1515 = vmatprep.subr.bf16.mxu0 0
        %1516 = vmatpush1.bf16.msra.mxu0 0
        %1517 = vmatprep.subr.bf16.mxu0 0
        %1518 = vmatpush1.bf16.msra.mxu0 0
        %1519 = vmatprep.subr.bf16.mxu0 0
        %1520 = vmatpush1.bf16.msra.mxu0 0
        %1521 = vmatprep.subr.bf16.mxu0 0
        %1522 = vmatpush1.bf16.msra.mxu0 0
        %1523 = vmatprep.subr.bf16.mxu0 0
        %1524 = vmatpush1.bf16.msra.mxu0 0
        %1525 = vmatprep.subr.bf16.mxu0 0
        %1526 = vmatpush1.bf16.msra.mxu0 0
        %1527 = vmatprep.subr.bf16.mxu0 0
        %1528 = vmatpush1.bf16.msra.mxu0 0
        %1529 = vmatprep.subr.bf16.mxu0 0
        %1530 = vmatpush1.bf16.msra.mxu0 0
        %1531 = vmatprep.subr.bf16.mxu0 0
        %1532 = vmatpush1.bf16.msra.mxu0 0
        %1533 = vmatprep.subr.bf16.mxu0 0
        %1534 = vmatpush1.bf16.msra.mxu0 0
        %1535 = vmatprep.subr.bf16.mxu0 0
        %1536 = vmatpush1.bf16.msra.mxu0 0
        %1537 = vmatprep.subr.bf16.mxu0 0
        %1538 = vmatpush1.bf16.msra.mxu0 0
        %1539 = vmatprep.subr.bf16.mxu0 0
        %1540 = vmatpush1.bf16.msra.mxu0 0
        %1541 = vmatprep.subr.bf16.mxu0 0
        %1542 = vmatpush1.bf16.msra.mxu0 0
        %1543 = vmatprep.subr.bf16.mxu0 0
        %1544 = vmatpush1.bf16.msra.mxu0 0
        %1545 = vmatprep.mubr.bf16.mxu0 0
        %1546 = vmatmul.mubr.bf16.gmra.mrb[0].mxu0 %v1508
        %v1547 = vpop.f32.mrb[0].mxu0
        %v1548 = vadd.f32 0.0, %v1547
        %v1549 = vpop.f32.mrb[0].mxu0
        %v1550 = vpop.f32.mrb[0].mxu0
        %v1551 = vpop.f32.mrb[0].mxu0
        %1552 = vdwg.mxu0
        %v1553 = vadd.f32 %v1077, %v1548
        %v1554 = vld [vmem:[%s184] sm:$0xf]
        %v1557 = vunpack.c.l.s4 1983009808
        %v1558 = vunpack.c.0.s8 %v1557
        %v1559 = vlaneseq
        %v1560 = vshrl.u32 %v1559, 7
        %v1561 = vsub.s32 %v1558, %v1560
        %v1562 = vrot.slane %v1554, %v1561
        %v1563 = vcombine.high %v1562, %v1562
        %1564 = vrot.lane.b32.xlu0 %v1562, 116
        %v1565 = vpop.permute.xlu0 %1564
        %1566 = vrot.lane.b32.xlu0 %v1563, 116
        %v1567 = vpop.permute.xlu0 %1566
        %v1568 = vsel %vm1505, %v1565, %v1567
        %v1570 = vsel %vm218, %v1568, 0
        %1572 = vmatprep.subr.bf16.mxu0 0
        %1573 = vmatpush1.bf16.msra.mxu0 %v1570
        %1574 = vmatprep.subr.bf16.mxu0 0
        %1575 = vmatpush1.bf16.msra.mxu0 0
        %1576 = vmatprep.subr.bf16.mxu0 0
        %1577 = vmatpush1.bf16.msra.mxu0 0
        %1578 = vmatprep.subr.bf16.mxu0 0
        %1579 = vmatpush1.bf16.msra.mxu0 0
        %1580 = vmatprep.subr.bf16.mxu0 0
        %1581 = vmatpush1.bf16.msra.mxu0 0
        %1582 = vmatprep.subr.bf16.mxu0 0
        %1583 = vmatpush1.bf16.msra.mxu0 0
        %1584 = vmatprep.subr.bf16.mxu0 0
        %1585 = vmatpush1.bf16.msra.mxu0 0
        %1586 = vmatprep.subr.bf16.mxu0 0
        %1587 = vmatpush1.bf16.msra.mxu0 0
        %1588 = vmatprep.subr.bf16.mxu0 0
        %1589 = vmatpush1.bf16.msra.mxu0 0
        %1590 = vmatprep.subr.bf16.mxu0 0
        %1591 = vmatpush1.bf16.msra.mxu0 0
        %1592 = vmatprep.subr.bf16.mxu0 0
        %1593 = vmatpush1.bf16.msra.mxu0 0
        %1594 = vmatprep.subr.bf16.mxu0 0
        %1595 = vmatpush1.bf16.msra.mxu0 0
        %1596 = vmatprep.subr.bf16.mxu0 0
        %1597 = vmatpush1.bf16.msra.mxu0 0
        %1598 = vmatprep.subr.bf16.mxu0 0
        %1599 = vmatpush1.bf16.msra.mxu0 0
        %1600 = vmatprep.subr.bf16.mxu0 0
        %1601 = vmatpush1.bf16.msra.mxu0 0
        %1602 = vmatprep.subr.bf16.mxu0 0
        %1603 = vmatpush1.bf16.msra.mxu0 0
        %1604 = vmatprep.mubr.bf16.mxu0 0
        %1605 = vmatmul.mubr.bf16.gmra.mrb[0].mxu0 %v1508
        %v1606 = vpop.f32.mrb[0].mxu0
        %v1607 = vadd.f32 0.0, %v1606
        %v1608 = vpop.f32.mrb[0].mxu0
        %v1609 = vpop.f32.mrb[0].mxu0
        %v1610 = vpop.f32.mrb[0].mxu0
        %1611 = vdwg.mxu0
        %v1612 = vadd.f32 %v1136, %v1607
        %v1613 = vld [vmem:[%s186] sm:$0xf]
        %v1616 = vunpack.c.l.s4 1983009808
        %v1617 = vunpack.c.0.s8 %v1616
        %v1618 = vlaneseq
        %v1619 = vshrl.u32 %v1618, 7
        %v1620 = vsub.s32 %v1617, %v1619
        %v1621 = vrot.slane %v1613, %v1620
        %v1622 = vcombine.high %v1621, %v1621
        %1623 = vrot.lane.b32.xlu0 %v1621, 116
        %v1624 = vpop.permute.xlu0 %1623
        %1625 = vrot.lane.b32.xlu0 %v1622, 116
        %v1626 = vpop.permute.xlu0 %1625
        %v1627 = vsel %vm1505, %v1624, %v1626
        %v1629 = vsel %vm218, %v1627, 0
        %1631 = vmatprep.subr.bf16.mxu0 0
        %1632 = vmatpush1.bf16.msra.mxu0 %v1629
        %1633 = vmatprep.subr.bf16.mxu0 0
        %1634 = vmatpush1.bf16.msra.mxu0 0
        %1635 = vmatprep.subr.bf16.mxu0 0
        %1636 = vmatpush1.bf16.msra.mxu0 0
        %1637 = vmatprep.subr.bf16.mxu0 0
        %1638 = vmatpush1.bf16.msra.mxu0 0
        %1639 = vmatprep.subr.bf16.mxu0 0
        %1640 = vmatpush1.bf16.msra.mxu0 0
        %1641 = vmatprep.subr.bf16.mxu0 0
        %1642 = vmatpush1.bf16.msra.mxu0 0
        %1643 = vmatprep.subr.bf16.mxu0 0
        %1644 = vmatpush1.bf16.msra.mxu0 0
        %1645 = vmatprep.subr.bf16.mxu0 0
        %1646 = vmatpush1.bf16.msra.mxu0 0
        %1647 = vmatprep.subr.bf16.mxu0 0
        %1648 = vmatpush1.bf16.msra.mxu0 0
        %1649 = vmatprep.subr.bf16.mxu0 0
        %1650 = vmatpush1.bf16.msra.mxu0 0
        %1651 = vmatprep.subr.bf16.mxu0 0
        %1652 = vmatpush1.bf16.msra.mxu0 0
        %1653 = vmatprep.subr.bf16.mxu0 0
        %1654 = vmatpush1.bf16.msra.mxu0 0
        %1655 = vmatprep.subr.bf16.mxu0 0
        %1656 = vmatpush1.bf16.msra.mxu0 0
        %1657 = vmatprep.subr.bf16.mxu0 0
        %1658 = vmatpush1.bf16.msra.mxu0 0
        %1659 = vmatprep.subr.bf16.mxu0 0
        %1660 = vmatpush1.bf16.msra.mxu0 0
        %1661 = vmatprep.subr.bf16.mxu0 0
        %1662 = vmatpush1.bf16.msra.mxu0 0
        %1663 = vmatprep.mubr.bf16.mxu0 0
        %1664 = vmatmul.mubr.bf16.gmra.mrb[0].mxu0 %v1508
        %v1665 = vpop.f32.mrb[0].mxu0
        %v1666 = vadd.f32 0.0, %v1665
        %v1667 = vpop.f32.mrb[0].mxu0
        %v1668 = vpop.f32.mrb[0].mxu0
        %v1669 = vpop.f32.mrb[0].mxu0
        %1670 = vdwg.mxu0
        %v1671 = vadd.f32 %v1195, %v1666
        %v1672 = vld [vmem:[%s188] sm:$0xf]
        %v1675 = vunpack.c.l.s4 1983009808
        %v1676 = vunpack.c.0.s8 %v1675
        %v1677 = vlaneseq
        %v1678 = vshrl.u32 %v1677, 7
        %v1679 = vsub.s32 %v1676, %v1678
        %v1680 = vrot.slane %v1672, %v1679
        %v1681 = vcombine.high %v1680, %v1680
        %1682 = vrot.lane.b32.xlu0 %v1680, 116
        %v1683 = vpop.permute.xlu0 %1682
        %1684 = vrot.lane.b32.xlu0 %v1681, 116
        %v1685 = vpop.permute.xlu0 %1684
        %v1686 = vsel %vm1505, %v1683, %v1685
        %v1688 = vsel %vm218, %v1686, 0
        %1690 = vmatprep.subr.bf16.mxu0 0
        %1691 = vmatpush1.bf16.msra.mxu0 %v1688
        %1692 = vmatprep.subr.bf16.mxu0 0
        %1693 = vmatpush1.bf16.msra.mxu0 0
        %1694 = vmatprep.subr.bf16.mxu0 0
        %1695 = vmatpush1.bf16.msra.mxu0 0
        %1696 = vmatprep.subr.bf16.mxu0 0
        %1697 = vmatpush1.bf16.msra.mxu0 0
        %1698 = vmatprep.subr.bf16.mxu0 0
        %1699 = vmatpush1.bf16.msra.mxu0 0
        %1700 = vmatprep.subr.bf16.mxu0 0
        %1701 = vmatpush1.bf16.msra.mxu0 0
        %1702 = vmatprep.subr.bf16.mxu0 0
        %1703 = vmatpush1.bf16.msra.mxu0 0
        %1704 = vmatprep.subr.bf16.mxu0 0
        %1705 = vmatpush1.bf16.msra.mxu0 0
        %1706 = vmatprep.subr.bf16.mxu0 0
        %1707 = vmatpush1.bf16.msra.mxu0 0
        %1708 = vmatprep.subr.bf16.mxu0 0
        %1709 = vmatpush1.bf16.msra.mxu0 0
        %1710 = vmatprep.subr.bf16.mxu0 0
        %1711 = vmatpush1.bf16.msra.mxu0 0
        %1712 = vmatprep.subr.bf16.mxu0 0
        %1713 = vmatpush1.bf16.msra.mxu0 0
        %1714 = vmatprep.subr.bf16.mxu0 0
        %1715 = vmatpush1.bf16.msra.mxu0 0
        %1716 = vmatprep.subr.bf16.mxu0 0
        %1717 = vmatpush1.bf16.msra.mxu0 0
        %1718 = vmatprep.subr.bf16.mxu0 0
        %1719 = vmatpush1.bf16.msra.mxu0 0
        %1720 = vmatprep.subr.bf16.mxu0 0
        %1721 = vmatpush1.bf16.msra.mxu0 0
        %1722 = vmatprep.mubr.bf16.mxu0 0
        %1723 = vmatmul.mubr.bf16.gmra.mrb[0].mxu0 %v1508
        %v1724 = vpop.f32.mrb[0].mxu0
        %v1725 = vadd.f32 0.0, %v1724
        %v1726 = vpop.f32.mrb[0].mxu0
        %v1727 = vpop.f32.mrb[0].mxu0
        %v1728 = vpop.f32.mrb[0].mxu0
        %1729 = vdwg.mxu0
        %v1730 = vadd.f32 %v1254, %v1725
        %v1731 = vld [vmem:[%s190] sm:$0xf]
        %v1734 = vunpack.c.l.s4 1983009808
        %v1735 = vunpack.c.0.s8 %v1734
        %v1736 = vlaneseq
        %v1737 = vshrl.u32 %v1736, 7
        %v1738 = vsub.s32 %v1735, %v1737
        %v1739 = vrot.slane %v1731, %v1738
        %v1740 = vcombine.high %v1739, %v1739
        %1741 = vrot.lane.b32.xlu0 %v1739, 116
        %v1742 = vpop.permute.xlu0 %1741
        %1743 = vrot.lane.b32.xlu0 %v1740, 116
        %v1744 = vpop.permute.xlu0 %1743
        %v1745 = vsel %vm1505, %v1742, %v1744
        %v1747 = vsel %vm218, %v1745, 0
        %1749 = vmatprep.subr.bf16.mxu0 0
        %1750 = vmatpush1.bf16.msra.mxu0 %v1747
        %1751 = vmatprep.subr.bf16.mxu0 0
        %1752 = vmatpush1.bf16.msra.mxu0 0
        %1753 = vmatprep.subr.bf16.mxu0 0
        %1754 = vmatpush1.bf16.msra.mxu0 0
        %1755 = vmatprep.subr.bf16.mxu0 0
        %1756 = vmatpush1.bf16.msra.mxu0 0
        %1757 = vmatprep.subr.bf16.mxu0 0
        %1758 = vmatpush1.bf16.msra.mxu0 0
        %1759 = vmatprep.subr.bf16.mxu0 0
        %1760 = vmatpush1.bf16.msra.mxu0 0
        %1761 = vmatprep.subr.bf16.mxu0 0
        %1762 = vmatpush1.bf16.msra.mxu0 0
        %1763 = vmatprep.subr.bf16.mxu0 0
        %1764 = vmatpush1.bf16.msra.mxu0 0
        %1765 = vmatprep.subr.bf16.mxu0 0
        %1766 = vmatpush1.bf16.msra.mxu0 0
        %1767 = vmatprep.subr.bf16.mxu0 0
        %1768 = vmatpush1.bf16.msra.mxu0 0
        %1769 = vmatprep.subr.bf16.mxu0 0
        %1770 = vmatpush1.bf16.msra.mxu0 0
        %1771 = vmatprep.subr.bf16.mxu0 0
        %1772 = vmatpush1.bf16.msra.mxu0 0
        %1773 = vmatprep.subr.bf16.mxu0 0
        %1774 = vmatpush1.bf16.msra.mxu0 0
        %1775 = vmatprep.subr.bf16.mxu0 0
        %1776 = vmatpush1.bf16.msra.mxu0 0
        %1777 = vmatprep.subr.bf16.mxu0 0
        %1778 = vmatpush1.bf16.msra.mxu0 0
        %1779 = vmatprep.subr.bf16.mxu0 0
        %1780 = vmatpush1.bf16.msra.mxu0 0
        %1781 = vmatprep.mubr.bf16.mxu0 0
        %1782 = vmatmul.mubr.bf16.gmra.mrb[0].mxu0 %v1508
        %v1783 = vpop.f32.mrb[0].mxu0
        %v1784 = vadd.f32 0.0, %v1783
        %v1785 = vpop.f32.mrb[0].mxu0
        %v1786 = vpop.f32.mrb[0].mxu0
        %v1787 = vpop.f32.mrb[0].mxu0
        %1788 = vdwg.mxu0
        %v1789 = vadd.f32 %v1313, %v1784
        %v1790 = vld [vmem:[%s192] sm:$0xf]
        %v1793 = vunpack.c.l.s4 1983009808
        %v1794 = vunpack.c.0.s8 %v1793
        %v1795 = vlaneseq
        %v1796 = vshrl.u32 %v1795, 7
        %v1797 = vsub.s32 %v1794, %v1796
        %v1798 = vrot.slane %v1790, %v1797
        %v1799 = vcombine.high %v1798, %v1798
        %1800 = vrot.lane.b32.xlu0 %v1798, 116
        %v1801 = vpop.permute.xlu0 %1800
        %1802 = vrot.lane.b32.xlu0 %v1799, 116
        %v1803 = vpop.permute.xlu0 %1802
        %v1804 = vsel %vm1505, %v1801, %v1803
        %v1806 = vsel %vm218, %v1804, 0
        %1808 = vmatprep.subr.bf16.mxu0 0
        %1809 = vmatpush1.bf16.msra.mxu0 %v1806
        %1810 = vmatprep.subr.bf16.mxu0 0
        %1811 = vmatpush1.bf16.msra.mxu0 0
        %1812 = vmatprep.subr.bf16.mxu0 0
        %1813 = vmatpush1.bf16.msra.mxu0 0
        %1814 = vmatprep.subr.bf16.mxu0 0
        %1815 = vmatpush1.bf16.msra.mxu0 0
        %1816 = vmatprep.subr.bf16.mxu0 0
        %1817 = vmatpush1.bf16.msra.mxu0 0
        %1818 = vmatprep.subr.bf16.mxu0 0
        %1819 = vmatpush1.bf16.msra.mxu0 0
        %1820 = vmatprep.subr.bf16.mxu0 0
        %1821 = vmatpush1.bf16.msra.mxu0 0
        %1822 = vmatprep.subr.bf16.mxu0 0
        %1823 = vmatpush1.bf16.msra.mxu0 0
        %1824 = vmatprep.subr.bf16.mxu0 0
        %1825 = vmatpush1.bf16.msra.mxu0 0
        %1826 = vmatprep.subr.bf16.mxu0 0
        %1827 = vmatpush1.bf16.msra.mxu0 0
        %1828 = vmatprep.subr.bf16.mxu0 0
        %1829 = vmatpush1.bf16.msra.mxu0 0
        %1830 = vmatprep.subr.bf16.mxu0 0
        %1831 = vmatpush1.bf16.msra.mxu0 0
        %1832 = vmatprep.subr.bf16.mxu0 0
        %1833 = vmatpush1.bf16.msra.mxu0 0
        %1834 = vmatprep.subr.bf16.mxu0 0
        %1835 = vmatpush1.bf16.msra.mxu0 0
        %1836 = vmatprep.subr.bf16.mxu0 0
        %1837 = vmatpush1.bf16.msra.mxu0 0
        %1838 = vmatprep.subr.bf16.mxu0 0
        %1839 = vmatpush1.bf16.msra.mxu0 0
        %1840 = vmatprep.mubr.bf16.mxu0 0
        %1841 = vmatmul.mubr.bf16.gmra.mrb[0].mxu0 %v1508
        %v1842 = vpop.f32.mrb[0].mxu0
        %v1843 = vadd.f32 0.0, %v1842
        %v1844 = vpop.f32.mrb[0].mxu0
        %v1845 = vpop.f32.mrb[0].mxu0
        %v1846 = vpop.f32.mrb[0].mxu0
        %1847 = vdwg.mxu0
        %v1848 = vadd.f32 %v1372, %v1843
        %v1849 = vld [vmem:[%s194] sm:$0xf]
        %v1852 = vunpack.c.l.s4 1983009808
        %v1853 = vunpack.c.0.s8 %v1852
        %v1854 = vlaneseq
        %v1855 = vshrl.u32 %v1854, 7
        %v1856 = vsub.s32 %v1853, %v1855
        %v1857 = vrot.slane %v1849, %v1856
        %v1858 = vcombine.high %v1857, %v1857
        %1859 = vrot.lane.b32.xlu0 %v1857, 116
        %v1860 = vpop.permute.xlu0 %1859
        %1861 = vrot.lane.b32.xlu0 %v1858, 116
        %v1862 = vpop.permute.xlu0 %1861
        %v1863 = vsel %vm1505, %v1860, %v1862
        %v1865 = vsel %vm218, %v1863, 0
        %1867 = vmatprep.subr.bf16.mxu0 0
        %1868 = vmatpush1.bf16.msra.mxu0 %v1865
        %1869 = vmatprep.subr.bf16.mxu0 0
        %1870 = vmatpush1.bf16.msra.mxu0 0
        %1871 = vmatprep.subr.bf16.mxu0 0
        %1872 = vmatpush1.bf16.msra.mxu0 0
        %1873 = vmatprep.subr.bf16.mxu0 0
        %1874 = vmatpush1.bf16.msra.mxu0 0
        %1875 = vmatprep.subr.bf16.mxu0 0
        %1876 = vmatpush1.bf16.msra.mxu0 0
        %1877 = vmatprep.subr.bf16.mxu0 0
        %1878 = vmatpush1.bf16.msra.mxu0 0
        %1879 = vmatprep.subr.bf16.mxu0 0
        %1880 = vmatpush1.bf16.msra.mxu0 0
        %1881 = vmatprep.subr.bf16.mxu0 0
        %1882 = vmatpush1.bf16.msra.mxu0 0
        %1883 = vmatprep.subr.bf16.mxu0 0
        %1884 = vmatpush1.bf16.msra.mxu0 0
        %1885 = vmatprep.subr.bf16.mxu0 0
        %1886 = vmatpush1.bf16.msra.mxu0 0
        %1887 = vmatprep.subr.bf16.mxu0 0
        %1888 = vmatpush1.bf16.msra.mxu0 0
        %1889 = vmatprep.subr.bf16.mxu0 0
        %1890 = vmatpush1.bf16.msra.mxu0 0
        %1891 = vmatprep.subr.bf16.mxu0 0
        %1892 = vmatpush1.bf16.msra.mxu0 0
        %1893 = vmatprep.subr.bf16.mxu0 0
        %1894 = vmatpush1.bf16.msra.mxu0 0
        %1895 = vmatprep.subr.bf16.mxu0 0
        %1896 = vmatpush1.bf16.msra.mxu0 0
        %1897 = vmatprep.subr.bf16.mxu0 0
        %1898 = vmatpush1.bf16.msra.mxu0 0
        %1899 = vmatprep.mubr.bf16.mxu0 0
        %1900 = vmatmul.mubr.bf16.gmra.mrb[0].mxu0 %v1508
        %v1901 = vpop.f32.mrb[0].mxu0
        %v1902 = vadd.f32 0.0, %v1901
        %v1903 = vpop.f32.mrb[0].mxu0
        %v1904 = vpop.f32.mrb[0].mxu0
        %v1905 = vpop.f32.mrb[0].mxu0
        %1906 = vdwg.mxu0
        %v1907 = vadd.f32 %v1431, %v1902
        %v1908 = vld [vmem:[%s196] sm:$0xf]
        %v1911 = vunpack.c.l.s4 1983009808
        %v1912 = vunpack.c.0.s8 %v1911
        %v1913 = vlaneseq
        %v1914 = vshrl.u32 %v1913, 7
        %v1915 = vsub.s32 %v1912, %v1914
        %v1916 = vrot.slane %v1908, %v1915
        %v1917 = vcombine.high %v1916, %v1916
        %1918 = vrot.lane.b32.xlu0 %v1916, 116
        %v1919 = vpop.permute.xlu0 %1918
        %1920 = vrot.lane.b32.xlu0 %v1917, 116
        %v1921 = vpop.permute.xlu0 %1920
        %v1922 = vsel %vm1505, %v1919, %v1921
        %v1924 = vsel %vm218, %v1922, 0
        %1926 = vmatprep.subr.bf16.mxu0 0
        %1927 = vmatpush1.bf16.msra.mxu0 %v1924
        %1928 = vmatprep.subr.bf16.mxu0 0
        %1929 = vmatpush1.bf16.msra.mxu0 0
        %1930 = vmatprep.subr.bf16.mxu0 0
        %1931 = vmatpush1.bf16.msra.mxu0 0
        %1932 = vmatprep.subr.bf16.mxu0 0
        %1933 = vmatpush1.bf16.msra.mxu0 0
        %1934 = vmatprep.subr.bf16.mxu0 0
        %1935 = vmatpush1.bf16.msra.mxu0 0
        %1936 = vmatprep.subr.bf16.mxu0 0
        %1937 = vmatpush1.bf16.msra.mxu0 0
        %1938 = vmatprep.subr.bf16.mxu0 0
        %1939 = vmatpush1.bf16.msra.mxu0 0
        %1940 = vmatprep.subr.bf16.mxu0 0
        %1941 = vmatpush1.bf16.msra.mxu0 0
        %1942 = vmatprep.subr.bf16.mxu0 0
        %1943 = vmatpush1.bf16.msra.mxu0 0
        %1944 = vmatprep.subr.bf16.mxu0 0
        %1945 = vmatpush1.bf16.msra.mxu0 0
        %1946 = vmatprep.subr.bf16.mxu0 0
        %1947 = vmatpush1.bf16.msra.mxu0 0
        %1948 = vmatprep.subr.bf16.mxu0 0
        %1949 = vmatpush1.bf16.msra.mxu0 0
        %1950 = vmatprep.subr.bf16.mxu0 0
        %1951 = vmatpush1.bf16.msra.mxu0 0
        %1952 = vmatprep.subr.bf16.mxu0 0
        %1953 = vmatpush1.bf16.msra.mxu0 0
        %1954 = vmatprep.subr.bf16.mxu0 0
        %1955 = vmatpush1.bf16.msra.mxu0 0
        %1956 = vmatprep.subr.bf16.mxu0 0
        %1957 = vmatpush1.bf16.msra.mxu0 0
        %1958 = vmatprep.mubr.bf16.mxu0 0
        %1959 = vmatmul.mubr.bf16.gmra.mrb[0].mxu0 %v1508
        %v1960 = vpop.f32.mrb[0].mxu0
        %v1961 = vadd.f32 0.0, %v1960
        %v1962 = vpop.f32.mrb[0].mxu0
        %v1963 = vpop.f32.mrb[0].mxu0
        %v1964 = vpop.f32.mrb[0].mxu0
        %1965 = vdwg.mxu0
        %v1966 = vadd.f32 %v1490, %v1961
        %v1967 = vld [vmem:[%s142] sm:$0xf]
        %v1970 = vunpack.c.l.s4 1983009808
        %v1971 = vunpack.c.0.s8 %v1970
        %v1972 = vlaneseq
        %v1973 = vshrl.u32 %v1972, 7
        %v1974 = vsub.s32 %v1971, %v1973
        %v1975 = vrot.slane %v1967, %v1974
        %v1976 = vcombine.high %v1975, %v1975
        %1977 = vrot.lane.b32.xlu0 %v1975, 115
        %v1978 = vpop.permute.xlu0 %1977
        %1979 = vrot.lane.b32.xlu0 %v1976, 115
        %v1980 = vpop.permute.xlu0 %1979
        %vm1981 = vcmask 941056
        %v1982 = vsel %vm1981, %v1978, %v1980
        %v1984 = vsel %vm214, %v174, 0
        %v1987 = vsel %vm218, %v1982, 0
        %1989 = vmatprep.subr.bf16.mxu0 0
        %1990 = vmatpush1.bf16.msra.mxu0 %v1987
        %1991 = vmatprep.subr.bf16.mxu0 0
        %1992 = vmatpush1.bf16.msra.mxu0 0
        %1993 = vmatprep.subr.bf16.mxu0 0
        %1994 = vmatpush1.bf16.msra.mxu0 0
        %1995 = vmatprep.subr.bf16.mxu0 0
        %1996 = vmatpush1.bf16.msra.mxu0 0
        %1997 = vmatprep.subr.bf16.mxu0 0
        %1998 = vmatpush1.bf16.msra.mxu0 0
        %1999 = vmatprep.subr.bf16.mxu0 0
        %2000 = vmatpush1.bf16.msra.mxu0 0
        %2001 = vmatprep.subr.bf16.mxu0 0
        %2002 = vmatpush1.bf16.msra.mxu0 0
        %2003 = vmatprep.subr.bf16.mxu0 0
        %2004 = vmatpush1.bf16.msra.mxu0 0
        %2005 = vmatprep.subr.bf16.mxu0 0
        %2006 = vmatpush1.bf16.msra.mxu0 0
        %2007 = vmatprep.subr.bf16.mxu0 0
        %2008 = vmatpush1.bf16.msra.mxu0 0
        %2009 = vmatprep.subr.bf16.mxu0 0
        %2010 = vmatpush1.bf16.msra.mxu0 0
        %2011 = vmatprep.subr.bf16.mxu0 0
        %2012 = vmatpush1.bf16.msra.mxu0 0
        %2013 = vmatprep.subr.bf16.mxu0 0
        %2014 = vmatpush1.bf16.msra.mxu0 0
        %2015 = vmatprep.subr.bf16.mxu0 0
        %2016 = vmatpush1.bf16.msra.mxu0 0
        %2017 = vmatprep.subr.bf16.mxu0 0
        %2018 = vmatpush1.bf16.msra.mxu0 0
        %2019 = vmatprep.subr.bf16.mxu0 0
        %2020 = vmatpush1.bf16.msra.mxu0 0
        %2021 = vmatprep.mubr.bf16.mxu0 0
        %2022 = vmatmul.mubr.bf16.gmra.mrb[0].mxu0 %v1984
        %v2023 = vpop.f32.mrb[0].mxu0
        %v2024 = vadd.f32 0.0, %v2023
        %v2025 = vpop.f32.mrb[0].mxu0
        %v2026 = vpop.f32.mrb[0].mxu0
        %v2027 = vpop.f32.mrb[0].mxu0
        %2028 = vdwg.mxu0
        %v2029 = vadd.f32 %v1553, %v2024
        %v2030 = vld [vmem:[%s184] sm:$0xf]
        %v2033 = vunpack.c.l.s4 1983009808
        %v2034 = vunpack.c.0.s8 %v2033
        %v2035 = vlaneseq
        %v2036 = vshrl.u32 %v2035, 7
        %v2037 = vsub.s32 %v2034, %v2036
        %v2038 = vrot.slane %v2030, %v2037
        %v2039 = vcombine.high %v2038, %v2038
        %2040 = vrot.lane.b32.xlu0 %v2038, 115
        %v2041 = vpop.permute.xlu0 %2040
        %2042 = vrot.lane.b32.xlu0 %v2039, 115
        %v2043 = vpop.permute.xlu0 %2042
        %v2044 = vsel %vm1981, %v2041, %v2043
        %v2046 = vsel %vm218, %v2044, 0
        %2048 = vmatprep.subr.bf16.mxu0 0
        %2049 = vmatpush1.bf16.msra.mxu0 %v2046
        %2050 = vmatprep.subr.bf16.mxu0 0
        %2051 = vmatpush1.bf16.msra.mxu0 0
        %2052 = vmatprep.subr.bf16.mxu0 0
        %2053 = vmatpush1.bf16.msra.mxu0 0
        %2054 = vmatprep.subr.bf16.mxu0 0
        %2055 = vmatpush1.bf16.msra.mxu0 0
        %2056 = vmatprep.subr.bf16.mxu0 0
        %2057 = vmatpush1.bf16.msra.mxu0 0
        %2058 = vmatprep.subr.bf16.mxu0 0
        %2059 = vmatpush1.bf16.msra.mxu0 0
        %2060 = vmatprep.subr.bf16.mxu0 0
        %2061 = vmatpush1.bf16.msra.mxu0 0
        %2062 = vmatprep.subr.bf16.mxu0 0
        %2063 = vmatpush1.bf16.msra.mxu0 0
        %2064 = vmatprep.subr.bf16.mxu0 0
        %2065 = vmatpush1.bf16.msra.mxu0 0
        %2066 = vmatprep.subr.bf16.mxu0 0
        %2067 = vmatpush1.bf16.msra.mxu0 0
        %2068 = vmatprep.subr.bf16.mxu0 0
        %2069 = vmatpush1.bf16.msra.mxu0 0
        %2070 = vmatprep.subr.bf16.mxu0 0
        %2071 = vmatpush1.bf16.msra.mxu0 0
        %2072 = vmatprep.subr.bf16.mxu0 0
        %2073 = vmatpush1.bf16.msra.mxu0 0
        %2074 = vmatprep.subr.bf16.mxu0 0
        %2075 = vmatpush1.bf16.msra.mxu0 0
        %2076 = vmatprep.subr.bf16.mxu0 0
        %2077 = vmatpush1.bf16.msra.mxu0 0
        %2078 = vmatprep.subr.bf16.mxu0 0
        %2079 = vmatpush1.bf16.msra.mxu0 0
        %2080 = vmatprep.mubr.bf16.mxu0 0
        %2081 = vmatmul.mubr.bf16.gmra.mrb[0].mxu0 %v1984
        %v2082 = vpop.f32.mrb[0].mxu0
        %v2083 = vadd.f32 0.0, %v2082
        %v2084 = vpop.f32.mrb[0].mxu0
        %v2085 = vpop.f32.mrb[0].mxu0
        %v2086 = vpop.f32.mrb[0].mxu0
        %2087 = vdwg.mxu0
        %v2088 = vadd.f32 %v1612, %v2083
        %v2089 = vld [vmem:[%s186] sm:$0xf]
        %v2092 = vunpack.c.l.s4 1983009808
        %v2093 = vunpack.c.0.s8 %v2092
        %v2094 = vlaneseq
        %v2095 = vshrl.u32 %v2094, 7
        %v2096 = vsub.s32 %v2093, %v2095
        %v2097 = vrot.slane %v2089, %v2096
        %v2098 = vcombine.high %v2097, %v2097
        %2099 = vrot.lane.b32.xlu0 %v2097, 115
        %v2100 = vpop.permute.xlu0 %2099
        %2101 = vrot.lane.b32.xlu0 %v2098, 115
        %v2102 = vpop.permute.xlu0 %2101
        %v2103 = vsel %vm1981, %v2100, %v2102
        %v2105 = vsel %vm218, %v2103, 0
        %2107 = vmatprep.subr.bf16.mxu0 0
        %2108 = vmatpush1.bf16.msra.mxu0 %v2105
        %2109 = vmatprep.subr.bf16.mxu0 0
        %2110 = vmatpush1.bf16.msra.mxu0 0
        %2111 = vmatprep.subr.bf16.mxu0 0
        %2112 = vmatpush1.bf16.msra.mxu0 0
        %2113 = vmatprep.subr.bf16.mxu0 0
        %2114 = vmatpush1.bf16.msra.mxu0 0
        %2115 = vmatprep.subr.bf16.mxu0 0
        %2116 = vmatpush1.bf16.msra.mxu0 0
        %2117 = vmatprep.subr.bf16.mxu0 0
        %2118 = vmatpush1.bf16.msra.mxu0 0
        %2119 = vmatprep.subr.bf16.mxu0 0
        %2120 = vmatpush1.bf16.msra.mxu0 0
        %2121 = vmatprep.subr.bf16.mxu0 0
        %2122 = vmatpush1.bf16.msra.mxu0 0
        %2123 = vmatprep.subr.bf16.mxu0 0
        %2124 = vmatpush1.bf16.msra.mxu0 0
        %2125 = vmatprep.subr.bf16.mxu0 0
        %2126 = vmatpush1.bf16.msra.mxu0 0
        %2127 = vmatprep.subr.bf16.mxu0 0
        %2128 = vmatpush1.bf16.msra.mxu0 0
        %2129 = vmatprep.subr.bf16.mxu0 0
        %2130 = vmatpush1.bf16.msra.mxu0 0
        %2131 = vmatprep.subr.bf16.mxu0 0
        %2132 = vmatpush1.bf16.msra.mxu0 0
        %2133 = vmatprep.subr.bf16.mxu0 0
        %2134 = vmatpush1.bf16.msra.mxu0 0
        %2135 = vmatprep.subr.bf16.mxu0 0
        %2136 = vmatpush1.bf16.msra.mxu0 0
        %2137 = vmatprep.subr.bf16.mxu0 0
        %2138 = vmatpush1.bf16.msra.mxu0 0
        %2139 = vmatprep.mubr.bf16.mxu0 0
        %2140 = vmatmul.mubr.bf16.gmra.mrb[0].mxu0 %v1984
        %v2141 = vpop.f32.mrb[0].mxu0
        %v2142 = vadd.f32 0.0, %v2141
        %v2143 = vpop.f32.mrb[0].mxu0
        %v2144 = vpop.f32.mrb[0].mxu0
        %v2145 = vpop.f32.mrb[0].mxu0
        %2146 = vdwg.mxu0
        %v2147 = vadd.f32 %v1671, %v2142
        %v2148 = vld [vmem:[%s188] sm:$0xf]
        %v2151 = vunpack.c.l.s4 1983009808
        %v2152 = vunpack.c.0.s8 %v2151
        %v2153 = vlaneseq
        %v2154 = vshrl.u32 %v2153, 7
        %v2155 = vsub.s32 %v2152, %v2154
        %v2156 = vrot.slane %v2148, %v2155
        %v2157 = vcombine.high %v2156, %v2156
        %2158 = vrot.lane.b32.xlu0 %v2156, 115
        %v2159 = vpop.permute.xlu0 %2158
        %2160 = vrot.lane.b32.xlu0 %v2157, 115
        %v2161 = vpop.permute.xlu0 %2160
        %v2162 = vsel %vm1981, %v2159, %v2161
        %v2164 = vsel %vm218, %v2162, 0
        %2166 = vmatprep.subr.bf16.mxu0 0
        %2167 = vmatpush1.bf16.msra.mxu0 %v2164
        %2168 = vmatprep.subr.bf16.mxu0 0
        %2169 = vmatpush1.bf16.msra.mxu0 0
        %2170 = vmatprep.subr.bf16.mxu0 0
        %2171 = vmatpush1.bf16.msra.mxu0 0
        %2172 = vmatprep.subr.bf16.mxu0 0
        %2173 = vmatpush1.bf16.msra.mxu0 0
        %2174 = vmatprep.subr.bf16.mxu0 0
        %2175 = vmatpush1.bf16.msra.mxu0 0
        %2176 = vmatprep.subr.bf16.mxu0 0
        %2177 = vmatpush1.bf16.msra.mxu0 0
        %2178 = vmatprep.subr.bf16.mxu0 0
        %2179 = vmatpush1.bf16.msra.mxu0 0
        %2180 = vmatprep.subr.bf16.mxu0 0
        %2181 = vmatpush1.bf16.msra.mxu0 0
        %2182 = vmatprep.subr.bf16.mxu0 0
        %2183 = vmatpush1.bf16.msra.mxu0 0
        %2184 = vmatprep.subr.bf16.mxu0 0
        %2185 = vmatpush1.bf16.msra.mxu0 0
        %2186 = vmatprep.subr.bf16.mxu0 0
        %2187 = vmatpush1.bf16.msra.mxu0 0
        %2188 = vmatprep.subr.bf16.mxu0 0
        %2189 = vmatpush1.bf16.msra.mxu0 0
        %2190 = vmatprep.subr.bf16.mxu0 0
        %2191 = vmatpush1.bf16.msra.mxu0 0
        %2192 = vmatprep.subr.bf16.mxu0 0
        %2193 = vmatpush1.bf16.msra.mxu0 0
        %2194 = vmatprep.subr.bf16.mxu0 0
        %2195 = vmatpush1.bf16.msra.mxu0 0
        %2196 = vmatprep.subr.bf16.mxu0 0
        %2197 = vmatpush1.bf16.msra.mxu0 0
        %2198 = vmatprep.mubr.bf16.mxu0 0
        %2199 = vmatmul.mubr.bf16.gmra.mrb[0].mxu0 %v1984
        %v2200 = vpop.f32.mrb[0].mxu0
        %v2201 = vadd.f32 0.0, %v2200
        %v2202 = vpop.f32.mrb[0].mxu0
        %v2203 = vpop.f32.mrb[0].mxu0
        %v2204 = vpop.f32.mrb[0].mxu0
        %2205 = vdwg.mxu0
        %v2206 = vadd.f32 %v1730, %v2201
        %v2207 = vld [vmem:[%s190] sm:$0xf]
        %v2210 = vunpack.c.l.s4 1983009808
        %v2211 = vunpack.c.0.s8 %v2210
        %v2212 = vlaneseq
        %v2213 = vshrl.u32 %v2212, 7
        %v2214 = vsub.s32 %v2211, %v2213
        %v2215 = vrot.slane %v2207, %v2214
        %v2216 = vcombine.high %v2215, %v2215
        %2217 = vrot.lane.b32.xlu0 %v2215, 115
        %v2218 = vpop.permute.xlu0 %2217
        %2219 = vrot.lane.b32.xlu0 %v2216, 115
        %v2220 = vpop.permute.xlu0 %2219
        %v2221 = vsel %vm1981, %v2218, %v2220
        %v2223 = vsel %vm218, %v2221, 0
        %2225 = vmatprep.subr.bf16.mxu0 0
        %2226 = vmatpush1.bf16.msra.mxu0 %v2223
        %2227 = vmatprep.subr.bf16.mxu0 0
        %2228 = vmatpush1.bf16.msra.mxu0 0
        %2229 = vmatprep.subr.bf16.mxu0 0
        %2230 = vmatpush1.bf16.msra.mxu0 0
        %2231 = vmatprep.subr.bf16.mxu0 0
        %2232 = vmatpush1.bf16.msra.mxu0 0
        %2233 = vmatprep.subr.bf16.mxu0 0
        %2234 = vmatpush1.bf16.msra.mxu0 0
        %2235 = vmatprep.subr.bf16.mxu0 0
        %2236 = vmatpush1.bf16.msra.mxu0 0
        %2237 = vmatprep.subr.bf16.mxu0 0
        %2238 = vmatpush1.bf16.msra.mxu0 0
        %2239 = vmatprep.subr.bf16.mxu0 0
        %2240 = vmatpush1.bf16.msra.mxu0 0
        %2241 = vmatprep.subr.bf16.mxu0 0
        %2242 = vmatpush1.bf16.msra.mxu0 0
        %2243 = vmatprep.subr.bf16.mxu0 0
        %2244 = vmatpush1.bf16.msra.mxu0 0
        %2245 = vmatprep.subr.bf16.mxu0 0
        %2246 = vmatpush1.bf16.msra.mxu0 0
        %2247 = vmatprep.subr.bf16.mxu0 0
        %2248 = vmatpush1.bf16.msra.mxu0 0
        %2249 = vmatprep.subr.bf16.mxu0 0
        %2250 = vmatpush1.bf16.msra.mxu0 0
        %2251 = vmatprep.subr.bf16.mxu0 0
        %2252 = vmatpush1.bf16.msra.mxu0 0
        %2253 = vmatprep.subr.bf16.mxu0 0
        %2254 = vmatpush1.bf16.msra.mxu0 0
        %2255 = vmatprep.subr.bf16.mxu0 0
        %2256 = vmatpush1.bf16.msra.mxu0 0
        %2257 = vmatprep.mubr.bf16.mxu0 0
        %2258 = vmatmul.mubr.bf16.gmra.mrb[0].mxu0 %v1984
        %v2259 = vpop.f32.mrb[0].mxu0
        %v2260 = vadd.f32 0.0, %v2259
        %v2261 = vpop.f32.mrb[0].mxu0
        %v2262 = vpop.f32.mrb[0].mxu0
        %v2263 = vpop.f32.mrb[0].mxu0
        %2264 = vdwg.mxu0
        %v2265 = vadd.f32 %v1789, %v2260
        %v2266 = vld [vmem:[%s192] sm:$0xf]
        %v2269 = vunpack.c.l.s4 1983009808
        %v2270 = vunpack.c.0.s8 %v2269
        %v2271 = vlaneseq
        %v2272 = vshrl.u32 %v2271, 7
        %v2273 = vsub.s32 %v2270, %v2272
        %v2274 = vrot.slane %v2266, %v2273
        %v2275 = vcombine.high %v2274, %v2274
        %2276 = vrot.lane.b32.xlu0 %v2274, 115
        %v2277 = vpop.permute.xlu0 %2276
        %2278 = vrot.lane.b32.xlu0 %v2275, 115
        %v2279 = vpop.permute.xlu0 %2278
        %v2280 = vsel %vm1981, %v2277, %v2279
        %v2282 = vsel %vm218, %v2280, 0
        %2284 = vmatprep.subr.bf16.mxu0 0
        %2285 = vmatpush1.bf16.msra.mxu0 %v2282
        %2286 = vmatprep.subr.bf16.mxu0 0
        %2287 = vmatpush1.bf16.msra.mxu0 0
        %2288 = vmatprep.subr.bf16.mxu0 0
        %2289 = vmatpush1.bf16.msra.mxu0 0
        %2290 = vmatprep.subr.bf16.mxu0 0
        %2291 = vmatpush1.bf16.msra.mxu0 0
        %2292 = vmatprep.subr.bf16.mxu0 0
        %2293 = vmatpush1.bf16.msra.mxu0 0
        %2294 = vmatprep.subr.bf16.mxu0 0
        %2295 = vmatpush1.bf16.msra.mxu0 0
        %2296 = vmatprep.subr.bf16.mxu0 0
        %2297 = vmatpush1.bf16.msra.mxu0 0
        %2298 = vmatprep.subr.bf16.mxu0 0
        %2299 = vmatpush1.bf16.msra.mxu0 0
        %2300 = vmatprep.subr.bf16.mxu0 0
        %2301 = vmatpush1.bf16.msra.mxu0 0
        %2302 = vmatprep.subr.bf16.mxu0 0
        %2303 = vmatpush1.bf16.msra.mxu0 0
        %2304 = vmatprep.subr.bf16.mxu0 0
        %2305 = vmatpush1.bf16.msra.mxu0 0
        %2306 = vmatprep.subr.bf16.mxu0 0
        %2307 = vmatpush1.bf16.msra.mxu0 0
        %2308 = vmatprep.subr.bf16.mxu0 0
        %2309 = vmatpush1.bf16.msra.mxu0 0
        %2310 = vmatprep.subr.bf16.mxu0 0
        %2311 = vmatpush1.bf16.msra.mxu0 0
        %2312 = vmatprep.subr.bf16.mxu0 0
        %2313 = vmatpush1.bf16.msra.mxu0 0
        %2314 = vmatprep.subr.bf16.mxu0 0
        %2315 = vmatpush1.bf16.msra.mxu0 0
        %2316 = vmatprep.mubr.bf16.mxu0 0
        %2317 = vmatmul.mubr.bf16.gmra.mrb[0].mxu0 %v1984
        %v2318 = vpop.f32.mrb[0].mxu0
        %v2319 = vadd.f32 0.0, %v2318
        %v2320 = vpop.f32.mrb[0].mxu0
        %v2321 = vpop.f32.mrb[0].mxu0
        %v2322 = vpop.f32.mrb[0].mxu0
        %2323 = vdwg.mxu0
        %v2324 = vadd.f32 %v1848, %v2319
        %v2325 = vld [vmem:[%s194] sm:$0xf]
        %v2328 = vunpack.c.l.s4 1983009808
        %v2329 = vunpack.c.0.s8 %v2328
        %v2330 = vlaneseq
        %v2331 = vshrl.u32 %v2330, 7
        %v2332 = vsub.s32 %v2329, %v2331
        %v2333 = vrot.slane %v2325, %v2332
        %v2334 = vcombine.high %v2333, %v2333
        %2335 = vrot.lane.b32.xlu0 %v2333, 115
        %v2336 = vpop.permute.xlu0 %2335
        %2337 = vrot.lane.b32.xlu0 %v2334, 115
        %v2338 = vpop.permute.xlu0 %2337
        %v2339 = vsel %vm1981, %v2336, %v2338
        %v2341 = vsel %vm218, %v2339, 0
        %2343 = vmatprep.subr.bf16.mxu0 0
        %2344 = vmatpush1.bf16.msra.mxu0 %v2341
        %2345 = vmatprep.subr.bf16.mxu0 0
        %2346 = vmatpush1.bf16.msra.mxu0 0
        %2347 = vmatprep.subr.bf16.mxu0 0
        %2348 = vmatpush1.bf16.msra.mxu0 0
        %2349 = vmatprep.subr.bf16.mxu0 0
        %2350 = vmatpush1.bf16.msra.mxu0 0
        %2351 = vmatprep.subr.bf16.mxu0 0
        %2352 = vmatpush1.bf16.msra.mxu0 0
        %2353 = vmatprep.subr.bf16.mxu0 0
        %2354 = vmatpush1.bf16.msra.mxu0 0
        %2355 = vmatprep.subr.bf16.mxu0 0
        %2356 = vmatpush1.bf16.msra.mxu0 0
        %2357 = vmatprep.subr.bf16.mxu0 0
        %2358 = vmatpush1.bf16.msra.mxu0 0
        %2359 = vmatprep.subr.bf16.mxu0 0
        %2360 = vmatpush1.bf16.msra.mxu0 0
        %2361 = vmatprep.subr.bf16.mxu0 0
        %2362 = vmatpush1.bf16.msra.mxu0 0
        %2363 = vmatprep.subr.bf16.mxu0 0
        %2364 = vmatpush1.bf16.msra.mxu0 0
        %2365 = vmatprep.subr.bf16.mxu0 0
        %2366 = vmatpush1.bf16.msra.mxu0 0
        %2367 = vmatprep.subr.bf16.mxu0 0
        %2368 = vmatpush1.bf16.msra.mxu0 0
        %2369 = vmatprep.subr.bf16.mxu0 0
        %2370 = vmatpush1.bf16.msra.mxu0 0
        %2371 = vmatprep.subr.bf16.mxu0 0
        %2372 = vmatpush1.bf16.msra.mxu0 0
        %2373 = vmatprep.subr.bf16.mxu0 0
        %2374 = vmatpush1.bf16.msra.mxu0 0
        %2375 = vmatprep.mubr.bf16.mxu0 0
        %2376 = vmatmul.mubr.bf16.gmra.mrb[0].mxu0 %v1984
        %v2377 = vpop.f32.mrb[0].mxu0
        %v2378 = vadd.f32 0.0, %v2377
        %v2379 = vpop.f32.mrb[0].mxu0
        %v2380 = vpop.f32.mrb[0].mxu0
        %v2381 = vpop.f32.mrb[0].mxu0
        %2382 = vdwg.mxu0
        %v2383 = vadd.f32 %v1907, %v2378
        %v2384 = vld [vmem:[%s196] sm:$0xf]
        %v2387 = vunpack.c.l.s4 1983009808
        %v2388 = vunpack.c.0.s8 %v2387
        %v2389 = vlaneseq
        %v2390 = vshrl.u32 %v2389, 7
        %v2391 = vsub.s32 %v2388, %v2390
        %v2392 = vrot.slane %v2384, %v2391
        %v2393 = vcombine.high %v2392, %v2392
        %2394 = vrot.lane.b32.xlu0 %v2392, 115
        %v2395 = vpop.permute.xlu0 %2394
        %2396 = vrot.lane.b32.xlu0 %v2393, 115
        %v2397 = vpop.permute.xlu0 %2396
        %v2398 = vsel %vm1981, %v2395, %v2397
        %v2400 = vsel %vm218, %v2398, 0
        %2402 = vmatprep.subr.bf16.mxu0 0
        %2403 = vmatpush1.bf16.msra.mxu0 %v2400
        %2404 = vmatprep.subr.bf16.mxu0 0
        %2405 = vmatpush1.bf16.msra.mxu0 0
        %2406 = vmatprep.subr.bf16.mxu0 0
        %2407 = vmatpush1.bf16.msra.mxu0 0
        %2408 = vmatprep.subr.bf16.mxu0 0
        %2409 = vmatpush1.bf16.msra.mxu0 0
        %2410 = vmatprep.subr.bf16.mxu0 0
        %2411 = vmatpush1.bf16.msra.mxu0 0
        %2412 = vmatprep.subr.bf16.mxu0 0
        %2413 = vmatpush1.bf16.msra.mxu0 0
        %2414 = vmatprep.subr.bf16.mxu0 0
        %2415 = vmatpush1.bf16.msra.mxu0 0
        %2416 = vmatprep.subr.bf16.mxu0 0
        %2417 = vmatpush1.bf16.msra.mxu0 0
        %2418 = vmatprep.subr.bf16.mxu0 0
        %2419 = vmatpush1.bf16.msra.mxu0 0
        %2420 = vmatprep.subr.bf16.mxu0 0
        %2421 = vmatpush1.bf16.msra.mxu0 0
        %2422 = vmatprep.subr.bf16.mxu0 0
        %2423 = vmatpush1.bf16.msra.mxu0 0
        %2424 = vmatprep.subr.bf16.mxu0 0
        %2425 = vmatpush1.bf16.msra.mxu0 0
        %2426 = vmatprep.subr.bf16.mxu0 0
        %2427 = vmatpush1.bf16.msra.mxu0 0
        %2428 = vmatprep.subr.bf16.mxu0 0
        %2429 = vmatpush1.bf16.msra.mxu0 0
        %2430 = vmatprep.subr.bf16.mxu0 0
        %2431 = vmatpush1.bf16.msra.mxu0 0
        %2432 = vmatprep.subr.bf16.mxu0 0
        %2433 = vmatpush1.bf16.msra.mxu0 0
        %2434 = vmatprep.mubr.bf16.mxu0 0
        %2435 = vmatmul.mubr.bf16.gmra.mrb[0].mxu0 %v1984
        %v2436 = vpop.f32.mrb[0].mxu0
        %v2437 = vadd.f32 0.0, %v2436
        %v2438 = vpop.f32.mrb[0].mxu0
        %v2439 = vpop.f32.mrb[0].mxu0
        %v2440 = vpop.f32.mrb[0].mxu0
        %2441 = vdwg.mxu0
        %v2442 = vadd.f32 %v1966, %v2437
        %v2443 = vld [vmem:[%s142] sm:$0xf]
        %v2446 = vunpack.c.l.s4 1983009808
        %v2447 = vunpack.c.0.s8 %v2446
        %v2448 = vlaneseq
        %v2449 = vshrl.u32 %v2448, 7
        %v2450 = vsub.s32 %v2447, %v2449
        %v2451 = vrot.slane %v2443, %v2450
        %v2452 = vcombine.high %v2451, %v2451
        %2453 = vrot.lane.b32.xlu0 %v2451, 114
        %v2454 = vpop.permute.xlu0 %2453
        %2455 = vrot.lane.b32.xlu0 %v2452, 114
        %v2456 = vpop.permute.xlu0 %2455
        %vm2457 = vcmask 932864
        %v2458 = vsel %vm2457, %v2454, %v2456
        %v2460 = vsel %vm214, %v176, 0
        %v2463 = vsel %vm218, %v2458, 0
        %2465 = vmatprep.subr.bf16.mxu0 0
        %2466 = vmatpush1.bf16.msra.mxu0 %v2463
        %2467 = vmatprep.subr.bf16.mxu0 0
        %2468 = vmatpush1.bf16.msra.mxu0 0
        %2469 = vmatprep.subr.bf16.mxu0 0
        %2470 = vmatpush1.bf16.msra.mxu0 0
        %2471 = vmatprep.subr.bf16.mxu0 0
        %2472 = vmatpush1.bf16.msra.mxu0 0
        %2473 = vmatprep.subr.bf16.mxu0 0
        %2474 = vmatpush1.bf16.msra.mxu0 0
        %2475 = vmatprep.subr.bf16.mxu0 0
        %2476 = vmatpush1.bf16.msra.mxu0 0
        %2477 = vmatprep.subr.bf16.mxu0 0
        %2478 = vmatpush1.bf16.msra.mxu0 0
        %2479 = vmatprep.subr.bf16.mxu0 0
        %2480 = vmatpush1.bf16.msra.mxu0 0
        %2481 = vmatprep.subr.bf16.mxu0 0
        %2482 = vmatpush1.bf16.msra.mxu0 0
        %2483 = vmatprep.subr.bf16.mxu0 0
        %2484 = vmatpush1.bf16.msra.mxu0 0
        %2485 = vmatprep.subr.bf16.mxu0 0
        %2486 = vmatpush1.bf16.msra.mxu0 0
        %2487 = vmatprep.subr.bf16.mxu0 0
        %2488 = vmatpush1.bf16.msra.mxu0 0
        %2489 = vmatprep.subr.bf16.mxu0 0
        %2490 = vmatpush1.bf16.msra.mxu0 0
        %2491 = vmatprep.subr.bf16.mxu0 0
        %2492 = vmatpush1.bf16.msra.mxu0 0
        %2493 = vmatprep.subr.bf16.mxu0 0
        %2494 = vmatpush1.bf16.msra.mxu0 0
        %2495 = vmatprep.subr.bf16.mxu0 0
        %2496 = vmatpush1.bf16.msra.mxu0 0
        %2497 = vmatprep.mubr.bf16.mxu0 0
        %2498 = vmatmul.mubr.bf16.gmra.mrb[0].mxu0 %v2460
        %v2499 = vpop.f32.mrb[0].mxu0
        %v2500 = vadd.f32 0.0, %v2499
        %v2501 = vpop.f32.mrb[0].mxu0
        %v2502 = vpop.f32.mrb[0].mxu0
        %v2503 = vpop.f32.mrb[0].mxu0
        %2504 = vdwg.mxu0
        %v2505 = vadd.f32 %v2029, %v2500
        %v2506 = vld [vmem:[%s184] sm:$0xf]
        %v2509 = vunpack.c.l.s4 1983009808
        %v2510 = vunpack.c.0.s8 %v2509
        %v2511 = vlaneseq
        %v2512 = vshrl.u32 %v2511, 7
        %v2513 = vsub.s32 %v2510, %v2512
        %v2514 = vrot.slane %v2506, %v2513
        %v2515 = vcombine.high %v2514, %v2514
        %2516 = vrot.lane.b32.xlu0 %v2514, 114
        %v2517 = vpop.permute.xlu0 %2516
        %2518 = vrot.lane.b32.xlu0 %v2515, 114
        %v2519 = vpop.permute.xlu0 %2518
        %v2520 = vsel %vm2457, %v2517, %v2519
        %v2522 = vsel %vm218, %v2520, 0
        %2524 = vmatprep.subr.bf16.mxu0 0
        %2525 = vmatpush1.bf16.msra.mxu0 %v2522
        %2526 = vmatprep.subr.bf16.mxu0 0
        %2527 = vmatpush1.bf16.msra.mxu0 0
        %2528 = vmatprep.subr.bf16.mxu0 0
        %2529 = vmatpush1.bf16.msra.mxu0 0
        %2530 = vmatprep.subr.bf16.mxu0 0
        %2531 = vmatpush1.bf16.msra.mxu0 0
        %2532 = vmatprep.subr.bf16.mxu0 0
        %2533 = vmatpush1.bf16.msra.mxu0 0
        %2534 = vmatprep.subr.bf16.mxu0 0
        %2535 = vmatpush1.bf16.msra.mxu0 0
        %2536 = vmatprep.subr.bf16.mxu0 0
        %2537 = vmatpush1.bf16.msra.mxu0 0
        %2538 = vmatprep.subr.bf16.mxu0 0
        %2539 = vmatpush1.bf16.msra.mxu0 0
        %2540 = vmatprep.subr.bf16.mxu0 0
        %2541 = vmatpush1.bf16.msra.mxu0 0
        %2542 = vmatprep.subr.bf16.mxu0 0
        %2543 = vmatpush1.bf16.msra.mxu0 0
        %2544 = vmatprep.subr.bf16.mxu0 0
        %2545 = vmatpush1.bf16.msra.mxu0 0
        %2546 = vmatprep.subr.bf16.mxu0 0
        %2547 = vmatpush1.bf16.msra.mxu0 0
        %2548 = vmatprep.subr.bf16.mxu0 0
        %2549 = vmatpush1.bf16.msra.mxu0 0
        %2550 = vmatprep.subr.bf16.mxu0 0
        %2551 = vmatpush1.bf16.msra.mxu0 0
        %2552 = vmatprep.subr.bf16.mxu0 0
        %2553 = vmatpush1.bf16.msra.mxu0 0
        %2554 = vmatprep.subr.bf16.mxu0 0
        %2555 = vmatpush1.bf16.msra.mxu0 0
        %2556 = vmatprep.mubr.bf16.mxu0 0
        %2557 = vmatmul.mubr.bf16.gmra.mrb[0].mxu0 %v2460
        %v2558 = vpop.f32.mrb[0].mxu0
        %v2559 = vadd.f32 0.0, %v2558
        %v2560 = vpop.f32.mrb[0].mxu0
        %v2561 = vpop.f32.mrb[0].mxu0
        %v2562 = vpop.f32.mrb[0].mxu0
        %2563 = vdwg.mxu0
        %v2564 = vadd.f32 %v2088, %v2559
        %v2565 = vld [vmem:[%s186] sm:$0xf]
        %v2568 = vunpack.c.l.s4 1983009808
        %v2569 = vunpack.c.0.s8 %v2568
        %v2570 = vlaneseq
        %v2571 = vshrl.u32 %v2570, 7
        %v2572 = vsub.s32 %v2569, %v2571
        %v2573 = vrot.slane %v2565, %v2572
        %v2574 = vcombine.high %v2573, %v2573
        %2575 = vrot.lane.b32.xlu0 %v2573, 114
        %v2576 = vpop.permute.xlu0 %2575
        %2577 = vrot.lane.b32.xlu0 %v2574, 114
        %v2578 = vpop.permute.xlu0 %2577
        %v2579 = vsel %vm2457, %v2576, %v2578
        %v2581 = vsel %vm218, %v2579, 0
        %2583 = vmatprep.subr.bf16.mxu0 0
        %2584 = vmatpush1.bf16.msra.mxu0 %v2581
        %2585 = vmatprep.subr.bf16.mxu0 0
        %2586 = vmatpush1.bf16.msra.mxu0 0
        %2587 = vmatprep.subr.bf16.mxu0 0
        %2588 = vmatpush1.bf16.msra.mxu0 0
        %2589 = vmatprep.subr.bf16.mxu0 0
        %2590 = vmatpush1.bf16.msra.mxu0 0
        %2591 = vmatprep.subr.bf16.mxu0 0
        %2592 = vmatpush1.bf16.msra.mxu0 0
        %2593 = vmatprep.subr.bf16.mxu0 0
        %2594 = vmatpush1.bf16.msra.mxu0 0
        %2595 = vmatprep.subr.bf16.mxu0 0
        %2596 = vmatpush1.bf16.msra.mxu0 0
        %2597 = vmatprep.subr.bf16.mxu0 0
        %2598 = vmatpush1.bf16.msra.mxu0 0
        %2599 = vmatprep.subr.bf16.mxu0 0
        %2600 = vmatpush1.bf16.msra.mxu0 0
        %2601 = vmatprep.subr.bf16.mxu0 0
        %2602 = vmatpush1.bf16.msra.mxu0 0
        %2603 = vmatprep.subr.bf16.mxu0 0
        %2604 = vmatpush1.bf16.msra.mxu0 0
        %2605 = vmatprep.subr.bf16.mxu0 0
        %2606 = vmatpush1.bf16.msra.mxu0 0
        %2607 = vmatprep.subr.bf16.mxu0 0
        %2608 = vmatpush1.bf16.msra.mxu0 0
        %2609 = vmatprep.subr.bf16.mxu0 0
        %2610 = vmatpush1.bf16.msra.mxu0 0
        %2611 = vmatprep.subr.bf16.mxu0 0
        %2612 = vmatpush1.bf16.msra.mxu0 0
        %2613 = vmatprep.subr.bf16.mxu0 0
        %2614 = vmatpush1.bf16.msra.mxu0 0
        %2615 = vmatprep.mubr.bf16.mxu0 0
        %2616 = vmatmul.mubr.bf16.gmra.mrb[0].mxu0 %v2460
        %v2617 = vpop.f32.mrb[0].mxu0
        %v2618 = vadd.f32 0.0, %v2617
        %v2619 = vpop.f32.mrb[0].mxu0
        %v2620 = vpop.f32.mrb[0].mxu0
        %v2621 = vpop.f32.mrb[0].mxu0
        %2622 = vdwg.mxu0
        %v2623 = vadd.f32 %v2147, %v2618
        %v2624 = vld [vmem:[%s188] sm:$0xf]
        %v2627 = vunpack.c.l.s4 1983009808
        %v2628 = vunpack.c.0.s8 %v2627
        %v2629 = vlaneseq
        %v2630 = vshrl.u32 %v2629, 7
        %v2631 = vsub.s32 %v2628, %v2630
        %v2632 = vrot.slane %v2624, %v2631
        %v2633 = vcombine.high %v2632, %v2632
        %2634 = vrot.lane.b32.xlu0 %v2632, 114
        %v2635 = vpop.permute.xlu0 %2634
        %2636 = vrot.lane.b32.xlu0 %v2633, 114
        %v2637 = vpop.permute.xlu0 %2636
        %v2638 = vsel %vm2457, %v2635, %v2637
        %v2640 = vsel %vm218, %v2638, 0
        %2642 = vmatprep.subr.bf16.mxu0 0
        %2643 = vmatpush1.bf16.msra.mxu0 %v2640
        %2644 = vmatprep.subr.bf16.mxu0 0
        %2645 = vmatpush1.bf16.msra.mxu0 0
        %2646 = vmatprep.subr.bf16.mxu0 0
        %2647 = vmatpush1.bf16.msra.mxu0 0
        %2648 = vmatprep.subr.bf16.mxu0 0
        %2649 = vmatpush1.bf16.msra.mxu0 0
        %2650 = vmatprep.subr.bf16.mxu0 0
        %2651 = vmatpush1.bf16.msra.mxu0 0
        %2652 = vmatprep.subr.bf16.mxu0 0
        %2653 = vmatpush1.bf16.msra.mxu0 0
        %2654 = vmatprep.subr.bf16.mxu0 0
        %2655 = vmatpush1.bf16.msra.mxu0 0
        %2656 = vmatprep.subr.bf16.mxu0 0
        %2657 = vmatpush1.bf16.msra.mxu0 0
        %2658 = vmatprep.subr.bf16.mxu0 0
        %2659 = vmatpush1.bf16.msra.mxu0 0
        %2660 = vmatprep.subr.bf16.mxu0 0
        %2661 = vmatpush1.bf16.msra.mxu0 0
        %2662 = vmatprep.subr.bf16.mxu0 0
        %2663 = vmatpush1.bf16.msra.mxu0 0
        %2664 = vmatprep.subr.bf16.mxu0 0
        %2665 = vmatpush1.bf16.msra.mxu0 0
        %2666 = vmatprep.subr.bf16.mxu0 0
        %2667 = vmatpush1.bf16.msra.mxu0 0
        %2668 = vmatprep.subr.bf16.mxu0 0
        %2669 = vmatpush1.bf16.msra.mxu0 0
        %2670 = vmatprep.subr.bf16.mxu0 0
        %2671 = vmatpush1.bf16.msra.mxu0 0
        %2672 = vmatprep.subr.bf16.mxu0 0
        %2673 = vmatpush1.bf16.msra.mxu0 0
        %2674 = vmatprep.mubr.bf16.mxu0 0
        %2675 = vmatmul.mubr.bf16.gmra.mrb[0].mxu0 %v2460
        %v2676 = vpop.f32.mrb[0].mxu0
        %v2677 = vadd.f32 0.0, %v2676
        %v2678 = vpop.f32.mrb[0].mxu0
        %v2679 = vpop.f32.mrb[0].mxu0
        %v2680 = vpop.f32.mrb[0].mxu0
        %2681 = vdwg.mxu0
        %v2682 = vadd.f32 %v2206, %v2677
        %v2683 = vld [vmem:[%s190] sm:$0xf]
        %v2686 = vunpack.c.l.s4 1983009808
        %v2687 = vunpack.c.0.s8 %v2686
        %v2688 = vlaneseq
        %v2689 = vshrl.u32 %v2688, 7
        %v2690 = vsub.s32 %v2687, %v2689
        %v2691 = vrot.slane %v2683, %v2690
        %v2692 = vcombine.high %v2691, %v2691
        %2693 = vrot.lane.b32.xlu0 %v2691, 114
        %v2694 = vpop.permute.xlu0 %2693
        %2695 = vrot.lane.b32.xlu0 %v2692, 114
        %v2696 = vpop.permute.xlu0 %2695
        %v2697 = vsel %vm2457, %v2694, %v2696
        %v2699 = vsel %vm218, %v2697, 0
        %2701 = vmatprep.subr.bf16.mxu0 0
        %2702 = vmatpush1.bf16.msra.mxu0 %v2699
        %2703 = vmatprep.subr.bf16.mxu0 0
        %2704 = vmatpush1.bf16.msra.mxu0 0
        %2705 = vmatprep.subr.bf16.mxu0 0
        %2706 = vmatpush1.bf16.msra.mxu0 0
        %2707 = vmatprep.subr.bf16.mxu0 0
        %2708 = vmatpush1.bf16.msra.mxu0 0
        %2709 = vmatprep.subr.bf16.mxu0 0
        %2710 = vmatpush1.bf16.msra.mxu0 0
        %2711 = vmatprep.subr.bf16.mxu0 0
        %2712 = vmatpush1.bf16.msra.mxu0 0
        %2713 = vmatprep.subr.bf16.mxu0 0
        %2714 = vmatpush1.bf16.msra.mxu0 0
        %2715 = vmatprep.subr.bf16.mxu0 0
        %2716 = vmatpush1.bf16.msra.mxu0 0
        %2717 = vmatprep.subr.bf16.mxu0 0
        %2718 = vmatpush1.bf16.msra.mxu0 0
        %2719 = vmatprep.subr.bf16.mxu0 0
        %2720 = vmatpush1.bf16.msra.mxu0 0
        %2721 = vmatprep.subr.bf16.mxu0 0
        %2722 = vmatpush1.bf16.msra.mxu0 0
        %2723 = vmatprep.subr.bf16.mxu0 0
        %2724 = vmatpush1.bf16.msra.mxu0 0
        %2725 = vmatprep.subr.bf16.mxu0 0
        %2726 = vmatpush1.bf16.msra.mxu0 0
        %2727 = vmatprep.subr.bf16.mxu0 0
        %2728 = vmatpush1.bf16.msra.mxu0 0
        %2729 = vmatprep.subr.bf16.mxu0 0
        %2730 = vmatpush1.bf16.msra.mxu0 0
        %2731 = vmatprep.subr.bf16.mxu0 0
        %2732 = vmatpush1.bf16.msra.mxu0 0
        %2733 = vmatprep.mubr.bf16.mxu0 0
        %2734 = vmatmul.mubr.bf16.gmra.mrb[0].mxu0 %v2460
        %v2735 = vpop.f32.mrb[0].mxu0
        %v2736 = vadd.f32 0.0, %v2735
        %v2737 = vpop.f32.mrb[0].mxu0
        %v2738 = vpop.f32.mrb[0].mxu0
        %v2739 = vpop.f32.mrb[0].mxu0
        %2740 = vdwg.mxu0
        %v2741 = vadd.f32 %v2265, %v2736
        %v2742 = vld [vmem:[%s192] sm:$0xf]
        %v2745 = vunpack.c.l.s4 1983009808
        %v2746 = vunpack.c.0.s8 %v2745
        %v2747 = vlaneseq
        %v2748 = vshrl.u32 %v2747, 7
        %v2749 = vsub.s32 %v2746, %v2748
        %v2750 = vrot.slane %v2742, %v2749
        %v2751 = vcombine.high %v2750, %v2750
        %2752 = vrot.lane.b32.xlu0 %v2750, 114
        %v2753 = vpop.permute.xlu0 %2752
        %2754 = vrot.lane.b32.xlu0 %v2751, 114
        %v2755 = vpop.permute.xlu0 %2754
        %v2756 = vsel %vm2457, %v2753, %v2755
        %v2758 = vsel %vm218, %v2756, 0
        %2760 = vmatprep.subr.bf16.mxu0 0
        %2761 = vmatpush1.bf16.msra.mxu0 %v2758
        %2762 = vmatprep.subr.bf16.mxu0 0
        %2763 = vmatpush1.bf16.msra.mxu0 0
        %2764 = vmatprep.subr.bf16.mxu0 0
        %2765 = vmatpush1.bf16.msra.mxu0 0
        %2766 = vmatprep.subr.bf16.mxu0 0
        %2767 = vmatpush1.bf16.msra.mxu0 0
        %2768 = vmatprep.subr.bf16.mxu0 0
        %2769 = vmatpush1.bf16.msra.mxu0 0
        %2770 = vmatprep.subr.bf16.mxu0 0
        %2771 = vmatpush1.bf16.msra.mxu0 0
        %2772 = vmatprep.subr.bf16.mxu0 0
        %2773 = vmatpush1.bf16.msra.mxu0 0
        %2774 = vmatprep.subr.bf16.mxu0 0
        %2775 = vmatpush1.bf16.msra.mxu0 0
        %2776 = vmatprep.subr.bf16.mxu0 0
        %2777 = vmatpush1.bf16.msra.mxu0 0
        %2778 = vmatprep.subr.bf16.mxu0 0
        %2779 = vmatpush1.bf16.msra.mxu0 0
        %2780 = vmatprep.subr.bf16.mxu0 0
        %2781 = vmatpush1.bf16.msra.mxu0 0
        %2782 = vmatprep.subr.bf16.mxu0 0
        %2783 = vmatpush1.bf16.msra.mxu0 0
        %2784 = vmatprep.subr.bf16.mxu0 0
        %2785 = vmatpush1.bf16.msra.mxu0 0
        %2786 = vmatprep.subr.bf16.mxu0 0
        %2787 = vmatpush1.bf16.msra.mxu0 0
        %2788 = vmatprep.subr.bf16.mxu0 0
        %2789 = vmatpush1.bf16.msra.mxu0 0
        %2790 = vmatprep.subr.bf16.mxu0 0
        %2791 = vmatpush1.bf16.msra.mxu0 0
        %2792 = vmatprep.mubr.bf16.mxu0 0
        %2793 = vmatmul.mubr.bf16.gmra.mrb[0].mxu0 %v2460
        %v2794 = vpop.f32.mrb[0].mxu0
        %v2795 = vadd.f32 0.0, %v2794
        %v2796 = vpop.f32.mrb[0].mxu0
        %v2797 = vpop.f32.mrb[0].mxu0
        %v2798 = vpop.f32.mrb[0].mxu0
        %2799 = vdwg.mxu0
        %v2800 = vadd.f32 %v2324, %v2795
        %v2801 = vld [vmem:[%s194] sm:$0xf]
        %v2804 = vunpack.c.l.s4 1983009808
        %v2805 = vunpack.c.0.s8 %v2804
        %v2806 = vlaneseq
        %v2807 = vshrl.u32 %v2806, 7
        %v2808 = vsub.s32 %v2805, %v2807
        %v2809 = vrot.slane %v2801, %v2808
        %v2810 = vcombine.high %v2809, %v2809
        %2811 = vrot.lane.b32.xlu0 %v2809, 114
        %v2812 = vpop.permute.xlu0 %2811
        %2813 = vrot.lane.b32.xlu0 %v2810, 114
        %v2814 = vpop.permute.xlu0 %2813
        %v2815 = vsel %vm2457, %v2812, %v2814
        %v2817 = vsel %vm218, %v2815, 0
        %2819 = vmatprep.subr.bf16.mxu0 0
        %2820 = vmatpush1.bf16.msra.mxu0 %v2817
        %2821 = vmatprep.subr.bf16.mxu0 0
        %2822 = vmatpush1.bf16.msra.mxu0 0
        %2823 = vmatprep.subr.bf16.mxu0 0
        %2824 = vmatpush1.bf16.msra.mxu0 0
        %2825 = vmatprep.subr.bf16.mxu0 0
        %2826 = vmatpush1.bf16.msra.mxu0 0
        %2827 = vmatprep.subr.bf16.mxu0 0
        %2828 = vmatpush1.bf16.msra.mxu0 0
        %2829 = vmatprep.subr.bf16.mxu0 0
        %2830 = vmatpush1.bf16.msra.mxu0 0
        %2831 = vmatprep.subr.bf16.mxu0 0
        %2832 = vmatpush1.bf16.msra.mxu0 0
        %2833 = vmatprep.subr.bf16.mxu0 0
        %2834 = vmatpush1.bf16.msra.mxu0 0
        %2835 = vmatprep.subr.bf16.mxu0 0
        %2836 = vmatpush1.bf16.msra.mxu0 0
        %2837 = vmatprep.subr.bf16.mxu0 0
        %2838 = vmatpush1.bf16.msra.mxu0 0
        %2839 = vmatprep.subr.bf16.mxu0 0
        %2840 = vmatpush1.bf16.msra.mxu0 0
        %2841 = vmatprep.subr.bf16.mxu0 0
        %2842 = vmatpush1.bf16.msra.mxu0 0
        %2843 = vmatprep.subr.bf16.mxu0 0
        %2844 = vmatpush1.bf16.msra.mxu0 0
        %2845 = vmatprep.subr.bf16.mxu0 0
        %2846 = vmatpush1.bf16.msra.mxu0 0
        %2847 = vmatprep.subr.bf16.mxu0 0
        %2848 = vmatpush1.bf16.msra.mxu0 0
        %2849 = vmatprep.subr.bf16.mxu0 0
        %2850 = vmatpush1.bf16.msra.mxu0 0
        %2851 = vmatprep.mubr.bf16.mxu0 0
        %2852 = vmatmul.mubr.bf16.gmra.mrb[0].mxu0 %v2460
        %v2853 = vpop.f32.mrb[0].mxu0
        %v2854 = vadd.f32 0.0, %v2853
        %v2855 = vpop.f32.mrb[0].mxu0
        %v2856 = vpop.f32.mrb[0].mxu0
        %v2857 = vpop.f32.mrb[0].mxu0
        %2858 = vdwg.mxu0
        %v2859 = vadd.f32 %v2383, %v2854
        %v2860 = vld [vmem:[%s196] sm:$0xf]
        %v2863 = vunpack.c.l.s4 1983009808
        %v2864 = vunpack.c.0.s8 %v2863
        %v2865 = vlaneseq
        %v2866 = vshrl.u32 %v2865, 7
        %v2867 = vsub.s32 %v2864, %v2866
        %v2868 = vrot.slane %v2860, %v2867
        %v2869 = vcombine.high %v2868, %v2868
        %2870 = vrot.lane.b32.xlu0 %v2868, 114
        %v2871 = vpop.permute.xlu0 %2870
        %2872 = vrot.lane.b32.xlu0 %v2869, 114
        %v2873 = vpop.permute.xlu0 %2872
        %v2874 = vsel %vm2457, %v2871, %v2873
        %v2876 = vsel %vm218, %v2874, 0
        %2878 = vmatprep.subr.bf16.mxu0 0
        %2879 = vmatpush1.bf16.msra.mxu0 %v2876
        %2880 = vmatprep.subr.bf16.mxu0 0
        %2881 = vmatpush1.bf16.msra.mxu0 0
        %2882 = vmatprep.subr.bf16.mxu0 0
        %2883 = vmatpush1.bf16.msra.mxu0 0
        %2884 = vmatprep.subr.bf16.mxu0 0
        %2885 = vmatpush1.bf16.msra.mxu0 0
        %2886 = vmatprep.subr.bf16.mxu0 0
        %2887 = vmatpush1.bf16.msra.mxu0 0
        %2888 = vmatprep.subr.bf16.mxu0 0
        %2889 = vmatpush1.bf16.msra.mxu0 0
        %2890 = vmatprep.subr.bf16.mxu0 0
        %2891 = vmatpush1.bf16.msra.mxu0 0
        %2892 = vmatprep.subr.bf16.mxu0 0
        %2893 = vmatpush1.bf16.msra.mxu0 0
        %2894 = vmatprep.subr.bf16.mxu0 0
        %2895 = vmatpush1.bf16.msra.mxu0 0
        %2896 = vmatprep.subr.bf16.mxu0 0
        %2897 = vmatpush1.bf16.msra.mxu0 0
        %2898 = vmatprep.subr.bf16.mxu0 0
        %2899 = vmatpush1.bf16.msra.mxu0 0
        %2900 = vmatprep.subr.bf16.mxu0 0
        %2901 = vmatpush1.bf16.msra.mxu0 0
        %2902 = vmatprep.subr.bf16.mxu0 0
        %2903 = vmatpush1.bf16.msra.mxu0 0
        %2904 = vmatprep.subr.bf16.mxu0 0
        %2905 = vmatpush1.bf16.msra.mxu0 0
        %2906 = vmatprep.subr.bf16.mxu0 0
        %2907 = vmatpush1.bf16.msra.mxu0 0
        %2908 = vmatprep.subr.bf16.mxu0 0
        %2909 = vmatpush1.bf16.msra.mxu0 0
        %2910 = vmatprep.mubr.bf16.mxu0 0
        %2911 = vmatmul.mubr.bf16.gmra.mrb[0].mxu0 %v2460
        %v2912 = vpop.f32.mrb[0].mxu0
        %v2913 = vadd.f32 0.0, %v2912
        %v2914 = vpop.f32.mrb[0].mxu0
        %v2915 = vpop.f32.mrb[0].mxu0
        %v2916 = vpop.f32.mrb[0].mxu0
        %2917 = vdwg.mxu0
        %v2918 = vadd.f32 %v2442, %v2913
        %v2919 = vld [vmem:[%s142] sm:$0xf]
        %v2922 = vunpack.c.l.s4 1983009808
        %v2923 = vunpack.c.0.s8 %v2922
        %v2924 = vlaneseq
        %v2925 = vshrl.u32 %v2924, 7
        %v2926 = vsub.s32 %v2923, %v2925
        %v2927 = vrot.slane %v2919, %v2926
        %v2928 = vcombine.high %v2927, %v2927
        %2929 = vrot.lane.b32.xlu0 %v2927, 104
        %v2930 = vpop.permute.xlu0 %2929
        %2931 = vrot.lane.b32.xlu0 %v2928, 104
        %v2932 = vpop.permute.xlu0 %2931
        %vm2933 = vcmask 850944
        %v2934 = vsel %vm2933, %v2930, %v2932
        %v2936 = vsel %vm214, %v178, 0
        %v2939 = vsel %vm218, %v2934, 0
        %2941 = vmatprep.subr.bf16.mxu0 0
        %2942 = vmatpush1.bf16.msra.mxu0 %v2939
        %2943 = vmatprep.subr.bf16.mxu0 0
        %2944 = vmatpush1.bf16.msra.mxu0 0
        %2945 = vmatprep.subr.bf16.mxu0 0
        %2946 = vmatpush1.bf16.msra.mxu0 0
        %2947 = vmatprep.subr.bf16.mxu0 0
        %2948 = vmatpush1.bf16.msra.mxu0 0
        %2949 = vmatprep.subr.bf16.mxu0 0
        %2950 = vmatpush1.bf16.msra.mxu0 0
        %2951 = vmatprep.subr.bf16.mxu0 0
        %2952 = vmatpush1.bf16.msra.mxu0 0
        %2953 = vmatprep.subr.bf16.mxu0 0
        %2954 = vmatpush1.bf16.msra.mxu0 0
        %2955 = vmatprep.subr.bf16.mxu0 0
        %2956 = vmatpush1.bf16.msra.mxu0 0
        %2957 = vmatprep.subr.bf16.mxu0 0
        %2958 = vmatpush1.bf16.msra.mxu0 0
        %2959 = vmatprep.subr.bf16.mxu0 0
        %2960 = vmatpush1.bf16.msra.mxu0 0
        %2961 = vmatprep.subr.bf16.mxu0 0
        %2962 = vmatpush1.bf16.msra.mxu0 0
        %2963 = vmatprep.subr.bf16.mxu0 0
        %2964 = vmatpush1.bf16.msra.mxu0 0
        %2965 = vmatprep.subr.bf16.mxu0 0
        %2966 = vmatpush1.bf16.msra.mxu0 0
        %2967 = vmatprep.subr.bf16.mxu0 0
        %2968 = vmatpush1.bf16.msra.mxu0 0
        %2969 = vmatprep.subr.bf16.mxu0 0
        %2970 = vmatpush1.bf16.msra.mxu0 0
        %2971 = vmatprep.subr.bf16.mxu0 0
        %2972 = vmatpush1.bf16.msra.mxu0 0
        %2973 = vmatprep.mubr.bf16.mxu0 0
        %2974 = vmatmul.mubr.bf16.gmra.mrb[0].mxu0 %v2936
        %v2975 = vpop.f32.mrb[0].mxu0
        %v2976 = vadd.f32 0.0, %v2975
        %v2977 = vpop.f32.mrb[0].mxu0
        %v2978 = vpop.f32.mrb[0].mxu0
        %v2979 = vpop.f32.mrb[0].mxu0
        %2980 = vdwg.mxu0
        %v2981 = vadd.f32 %v2505, %v2976
        %v2982 = vld [vmem:[%s184] sm:$0xf]
        %v2985 = vunpack.c.l.s4 1983009808
        %v2986 = vunpack.c.0.s8 %v2985
        %v2987 = vlaneseq
        %v2988 = vshrl.u32 %v2987, 7
        %v2989 = vsub.s32 %v2986, %v2988
        %v2990 = vrot.slane %v2982, %v2989
        %v2991 = vcombine.high %v2990, %v2990
        %2992 = vrot.lane.b32.xlu0 %v2990, 104
        %v2993 = vpop.permute.xlu0 %2992
        %2994 = vrot.lane.b32.xlu0 %v2991, 104
        %v2995 = vpop.permute.xlu0 %2994
        %v2996 = vsel %vm2933, %v2993, %v2995
        %v2998 = vsel %vm218, %v2996, 0
        %3000 = vmatprep.subr.bf16.mxu0 0
        %3001 = vmatpush1.bf16.msra.mxu0 %v2998
        %3002 = vmatprep.subr.bf16.mxu0 0
        %3003 = vmatpush1.bf16.msra.mxu0 0
        %3004 = vmatprep.subr.bf16.mxu0 0
        %3005 = vmatpush1.bf16.msra.mxu0 0
        %3006 = vmatprep.subr.bf16.mxu0 0
        %3007 = vmatpush1.bf16.msra.mxu0 0
        %3008 = vmatprep.subr.bf16.mxu0 0
        %3009 = vmatpush1.bf16.msra.mxu0 0
        %3010 = vmatprep.subr.bf16.mxu0 0
        %3011 = vmatpush1.bf16.msra.mxu0 0
        %3012 = vmatprep.subr.bf16.mxu0 0
        %3013 = vmatpush1.bf16.msra.mxu0 0
        %3014 = vmatprep.subr.bf16.mxu0 0
        %3015 = vmatpush1.bf16.msra.mxu0 0
        %3016 = vmatprep.subr.bf16.mxu0 0
        %3017 = vmatpush1.bf16.msra.mxu0 0
        %3018 = vmatprep.subr.bf16.mxu0 0
        %3019 = vmatpush1.bf16.msra.mxu0 0
        %3020 = vmatprep.subr.bf16.mxu0 0
        %3021 = vmatpush1.bf16.msra.mxu0 0
        %3022 = vmatprep.subr.bf16.mxu0 0
        %3023 = vmatpush1.bf16.msra.mxu0 0
        %3024 = vmatprep.subr.bf16.mxu0 0
        %3025 = vmatpush1.bf16.msra.mxu0 0
        %3026 = vmatprep.subr.bf16.mxu0 0
        %3027 = vmatpush1.bf16.msra.mxu0 0
        %3028 = vmatprep.subr.bf16.mxu0 0
        %3029 = vmatpush1.bf16.msra.mxu0 0
        %3030 = vmatprep.subr.bf16.mxu0 0
        %3031 = vmatpush1.bf16.msra.mxu0 0
        %3032 = vmatprep.mubr.bf16.mxu0 0
        %3033 = vmatmul.mubr.bf16.gmra.mrb[0].mxu0 %v2936
        %v3034 = vpop.f32.mrb[0].mxu0
        %v3035 = vadd.f32 0.0, %v3034
        %v3036 = vpop.f32.mrb[0].mxu0
        %v3037 = vpop.f32.mrb[0].mxu0
        %v3038 = vpop.f32.mrb[0].mxu0
        %3039 = vdwg.mxu0
        %v3040 = vadd.f32 %v2564, %v3035
        %v3041 = vld [vmem:[%s186] sm:$0xf]
        %v3044 = vunpack.c.l.s4 1983009808
        %v3045 = vunpack.c.0.s8 %v3044
        %v3046 = vlaneseq
        %v3047 = vshrl.u32 %v3046, 7
        %v3048 = vsub.s32 %v3045, %v3047
        %v3049 = vrot.slane %v3041, %v3048
        %v3050 = vcombine.high %v3049, %v3049
        %3051 = vrot.lane.b32.xlu0 %v3049, 104
        %v3052 = vpop.permute.xlu0 %3051
        %3053 = vrot.lane.b32.xlu0 %v3050, 104
        %v3054 = vpop.permute.xlu0 %3053
        %v3055 = vsel %vm2933, %v3052, %v3054
        %v3057 = vsel %vm218, %v3055, 0
        %3059 = vmatprep.subr.bf16.mxu0 0
        %3060 = vmatpush1.bf16.msra.mxu0 %v3057
        %3061 = vmatprep.subr.bf16.mxu0 0
        %3062 = vmatpush1.bf16.msra.mxu0 0
        %3063 = vmatprep.subr.bf16.mxu0 0
        %3064 = vmatpush1.bf16.msra.mxu0 0
        %3065 = vmatprep.subr.bf16.mxu0 0
        %3066 = vmatpush1.bf16.msra.mxu0 0
        %3067 = vmatprep.subr.bf16.mxu0 0
        %3068 = vmatpush1.bf16.msra.mxu0 0
        %3069 = vmatprep.subr.bf16.mxu0 0
        %3070 = vmatpush1.bf16.msra.mxu0 0
        %3071 = vmatprep.subr.bf16.mxu0 0
        %3072 = vmatpush1.bf16.msra.mxu0 0
        %3073 = vmatprep.subr.bf16.mxu0 0
        %3074 = vmatpush1.bf16.msra.mxu0 0
        %3075 = vmatprep.subr.bf16.mxu0 0
        %3076 = vmatpush1.bf16.msra.mxu0 0
        %3077 = vmatprep.subr.bf16.mxu0 0
        %3078 = vmatpush1.bf16.msra.mxu0 0
        %3079 = vmatprep.subr.bf16.mxu0 0
        %3080 = vmatpush1.bf16.msra.mxu0 0
        %3081 = vmatprep.subr.bf16.mxu0 0
        %3082 = vmatpush1.bf16.msra.mxu0 0
        %3083 = vmatprep.subr.bf16.mxu0 0
        %3084 = vmatpush1.bf16.msra.mxu0 0
        %3085 = vmatprep.subr.bf16.mxu0 0
        %3086 = vmatpush1.bf16.msra.mxu0 0
        %3087 = vmatprep.subr.bf16.mxu0 0
        %3088 = vmatpush1.bf16.msra.mxu0 0
        %3089 = vmatprep.subr.bf16.mxu0 0
        %3090 = vmatpush1.bf16.msra.mxu0 0
        %3091 = vmatprep.mubr.bf16.mxu0 0
        %3092 = vmatmul.mubr.bf16.gmra.mrb[0].mxu0 %v2936
        %v3093 = vpop.f32.mrb[0].mxu0
        %v3094 = vadd.f32 0.0, %v3093
        %v3095 = vpop.f32.mrb[0].mxu0
        %v3096 = vpop.f32.mrb[0].mxu0
        %v3097 = vpop.f32.mrb[0].mxu0
        %3098 = vdwg.mxu0
        %v3099 = vadd.f32 %v2623, %v3094
        %v3100 = vld [vmem:[%s188] sm:$0xf]
        %v3103 = vunpack.c.l.s4 1983009808
        %v3104 = vunpack.c.0.s8 %v3103
        %v3105 = vlaneseq
        %v3106 = vshrl.u32 %v3105, 7
        %v3107 = vsub.s32 %v3104, %v3106
        %v3108 = vrot.slane %v3100, %v3107
        %v3109 = vcombine.high %v3108, %v3108
        %3110 = vrot.lane.b32.xlu0 %v3108, 104
        %v3111 = vpop.permute.xlu0 %3110
        %3112 = vrot.lane.b32.xlu0 %v3109, 104
        %v3113 = vpop.permute.xlu0 %3112
        %v3114 = vsel %vm2933, %v3111, %v3113
        %v3116 = vsel %vm218, %v3114, 0
        %3118 = vmatprep.subr.bf16.mxu0 0
        %3119 = vmatpush1.bf16.msra.mxu0 %v3116
        %3120 = vmatprep.subr.bf16.mxu0 0
        %3121 = vmatpush1.bf16.msra.mxu0 0
        %3122 = vmatprep.subr.bf16.mxu0 0
        %3123 = vmatpush1.bf16.msra.mxu0 0
        %3124 = vmatprep.subr.bf16.mxu0 0
        %3125 = vmatpush1.bf16.msra.mxu0 0
        %3126 = vmatprep.subr.bf16.mxu0 0
        %3127 = vmatpush1.bf16.msra.mxu0 0
        %3128 = vmatprep.subr.bf16.mxu0 0
        %3129 = vmatpush1.bf16.msra.mxu0 0
        %3130 = vmatprep.subr.bf16.mxu0 0
        %3131 = vmatpush1.bf16.msra.mxu0 0
        %3132 = vmatprep.subr.bf16.mxu0 0
        %3133 = vmatpush1.bf16.msra.mxu0 0
        %3134 = vmatprep.subr.bf16.mxu0 0
        %3135 = vmatpush1.bf16.msra.mxu0 0
        %3136 = vmatprep.subr.bf16.mxu0 0
        %3137 = vmatpush1.bf16.msra.mxu0 0
        %3138 = vmatprep.subr.bf16.mxu0 0
        %3139 = vmatpush1.bf16.msra.mxu0 0
        %3140 = vmatprep.subr.bf16.mxu0 0
        %3141 = vmatpush1.bf16.msra.mxu0 0
        %3142 = vmatprep.subr.bf16.mxu0 0
        %3143 = vmatpush1.bf16.msra.mxu0 0
        %3144 = vmatprep.subr.bf16.mxu0 0
        %3145 = vmatpush1.bf16.msra.mxu0 0
        %3146 = vmatprep.subr.bf16.mxu0 0
        %3147 = vmatpush1.bf16.msra.mxu0 0
        %3148 = vmatprep.subr.bf16.mxu0 0
        %3149 = vmatpush1.bf16.msra.mxu0 0
        %3150 = vmatprep.mubr.bf16.mxu0 0
        %3151 = vmatmul.mubr.bf16.gmra.mrb[0].mxu0 %v2936
        %v3152 = vpop.f32.mrb[0].mxu0
        %v3153 = vadd.f32 0.0, %v3152
        %v3154 = vpop.f32.mrb[0].mxu0
        %v3155 = vpop.f32.mrb[0].mxu0
        %v3156 = vpop.f32.mrb[0].mxu0
        %3157 = vdwg.mxu0
        %v3158 = vadd.f32 %v2682, %v3153
        %v3159 = vld [vmem:[%s190] sm:$0xf]
        %v3162 = vunpack.c.l.s4 1983009808
        %v3163 = vunpack.c.0.s8 %v3162
        %v3164 = vlaneseq
        %v3165 = vshrl.u32 %v3164, 7
        %v3166 = vsub.s32 %v3163, %v3165
        %v3167 = vrot.slane %v3159, %v3166
        %v3168 = vcombine.high %v3167, %v3167
        %3169 = vrot.lane.b32.xlu0 %v3167, 104
        %v3170 = vpop.permute.xlu0 %3169
        %3171 = vrot.lane.b32.xlu0 %v3168, 104
        %v3172 = vpop.permute.xlu0 %3171
        %v3173 = vsel %vm2933, %v3170, %v3172
        %v3175 = vsel %vm218, %v3173, 0
        %3177 = vmatprep.subr.bf16.mxu0 0
        %3178 = vmatpush1.bf16.msra.mxu0 %v3175
        %3179 = vmatprep.subr.bf16.mxu0 0
        %3180 = vmatpush1.bf16.msra.mxu0 0
        %3181 = vmatprep.subr.bf16.mxu0 0
        %3182 = vmatpush1.bf16.msra.mxu0 0
        %3183 = vmatprep.subr.bf16.mxu0 0
        %3184 = vmatpush1.bf16.msra.mxu0 0
        %3185 = vmatprep.subr.bf16.mxu0 0
        %3186 = vmatpush1.bf16.msra.mxu0 0
        %3187 = vmatprep.subr.bf16.mxu0 0
        %3188 = vmatpush1.bf16.msra.mxu0 0
        %3189 = vmatprep.subr.bf16.mxu0 0
        %3190 = vmatpush1.bf16.msra.mxu0 0
        %3191 = vmatprep.subr.bf16.mxu0 0
        %3192 = vmatpush1.bf16.msra.mxu0 0
        %3193 = vmatprep.subr.bf16.mxu0 0
        %3194 = vmatpush1.bf16.msra.mxu0 0
        %3195 = vmatprep.subr.bf16.mxu0 0
        %3196 = vmatpush1.bf16.msra.mxu0 0
        %3197 = vmatprep.subr.bf16.mxu0 0
        %3198 = vmatpush1.bf16.msra.mxu0 0
        %3199 = vmatprep.subr.bf16.mxu0 0
        %3200 = vmatpush1.bf16.msra.mxu0 0
        %3201 = vmatprep.subr.bf16.mxu0 0
        %3202 = vmatpush1.bf16.msra.mxu0 0
        %3203 = vmatprep.subr.bf16.mxu0 0
        %3204 = vmatpush1.bf16.msra.mxu0 0
        %3205 = vmatprep.subr.bf16.mxu0 0
        %3206 = vmatpush1.bf16.msra.mxu0 0
        %3207 = vmatprep.subr.bf16.mxu0 0
        %3208 = vmatpush1.bf16.msra.mxu0 0
        %3209 = vmatprep.mubr.bf16.mxu0 0
        %3210 = vmatmul.mubr.bf16.gmra.mrb[0].mxu0 %v2936
        %v3211 = vpop.f32.mrb[0].mxu0
        %v3212 = vadd.f32 0.0, %v3211
        %v3213 = vpop.f32.mrb[0].mxu0
        %v3214 = vpop.f32.mrb[0].mxu0
        %v3215 = vpop.f32.mrb[0].mxu0
        %3216 = vdwg.mxu0
        %v3217 = vadd.f32 %v2741, %v3212
        %v3218 = vld [vmem:[%s192] sm:$0xf]
        %v3221 = vunpack.c.l.s4 1983009808
        %v3222 = vunpack.c.0.s8 %v3221
        %v3223 = vlaneseq
        %v3224 = vshrl.u32 %v3223, 7
        %v3225 = vsub.s32 %v3222, %v3224
        %v3226 = vrot.slane %v3218, %v3225
        %v3227 = vcombine.high %v3226, %v3226
        %3228 = vrot.lane.b32.xlu0 %v3226, 104
        %v3229 = vpop.permute.xlu0 %3228
        %3230 = vrot.lane.b32.xlu0 %v3227, 104
        %v3231 = vpop.permute.xlu0 %3230
        %v3232 = vsel %vm2933, %v3229, %v3231
        %v3234 = vsel %vm218, %v3232, 0
        %3236 = vmatprep.subr.bf16.mxu0 0
        %3237 = vmatpush1.bf16.msra.mxu0 %v3234
        %3238 = vmatprep.subr.bf16.mxu0 0
        %3239 = vmatpush1.bf16.msra.mxu0 0
        %3240 = vmatprep.subr.bf16.mxu0 0
        %3241 = vmatpush1.bf16.msra.mxu0 0
        %3242 = vmatprep.subr.bf16.mxu0 0
        %3243 = vmatpush1.bf16.msra.mxu0 0
        %3244 = vmatprep.subr.bf16.mxu0 0
        %3245 = vmatpush1.bf16.msra.mxu0 0
        %3246 = vmatprep.subr.bf16.mxu0 0
        %3247 = vmatpush1.bf16.msra.mxu0 0
        %3248 = vmatprep.subr.bf16.mxu0 0
        %3249 = vmatpush1.bf16.msra.mxu0 0
        %3250 = vmatprep.subr.bf16.mxu0 0
        %3251 = vmatpush1.bf16.msra.mxu0 0
        %3252 = vmatprep.subr.bf16.mxu0 0
        %3253 = vmatpush1.bf16.msra.mxu0 0
        %3254 = vmatprep.subr.bf16.mxu0 0
        %3255 = vmatpush1.bf16.msra.mxu0 0
        %3256 = vmatprep.subr.bf16.mxu0 0
        %3257 = vmatpush1.bf16.msra.mxu0 0
        %3258 = vmatprep.subr.bf16.mxu0 0
        %3259 = vmatpush1.bf16.msra.mxu0 0
        %3260 = vmatprep.subr.bf16.mxu0 0
        %3261 = vmatpush1.bf16.msra.mxu0 0
        %3262 = vmatprep.subr.bf16.mxu0 0
        %3263 = vmatpush1.bf16.msra.mxu0 0
        %3264 = vmatprep.subr.bf16.mxu0 0
        %3265 = vmatpush1.bf16.msra.mxu0 0
        %3266 = vmatprep.subr.bf16.mxu0 0
        %3267 = vmatpush1.bf16.msra.mxu0 0
        %3268 = vmatprep.mubr.bf16.mxu0 0
        %3269 = vmatmul.mubr.bf16.gmra.mrb[0].mxu0 %v2936
        %v3270 = vpop.f32.mrb[0].mxu0
        %v3271 = vadd.f32 0.0, %v3270
        %v3272 = vpop.f32.mrb[0].mxu0
        %v3273 = vpop.f32.mrb[0].mxu0
        %v3274 = vpop.f32.mrb[0].mxu0
        %3275 = vdwg.mxu0
        %v3276 = vadd.f32 %v2800, %v3271
        %v3277 = vld [vmem:[%s194] sm:$0xf]
        %v3280 = vunpack.c.l.s4 1983009808
        %v3281 = vunpack.c.0.s8 %v3280
        %v3282 = vlaneseq
        %v3283 = vshrl.u32 %v3282, 7
        %v3284 = vsub.s32 %v3281, %v3283
        %v3285 = vrot.slane %v3277, %v3284
        %v3286 = vcombine.high %v3285, %v3285
        %3287 = vrot.lane.b32.xlu0 %v3285, 104
        %v3288 = vpop.permute.xlu0 %3287
        %3289 = vrot.lane.b32.xlu0 %v3286, 104
        %v3290 = vpop.permute.xlu0 %3289
        %v3291 = vsel %vm2933, %v3288, %v3290
        %v3293 = vsel %vm218, %v3291, 0
        %3295 = vmatprep.subr.bf16.mxu0 0
        %3296 = vmatpush1.bf16.msra.mxu0 %v3293
        %3297 = vmatprep.subr.bf16.mxu0 0
        %3298 = vmatpush1.bf16.msra.mxu0 0
        %3299 = vmatprep.subr.bf16.mxu0 0
        %3300 = vmatpush1.bf16.msra.mxu0 0
        %3301 = vmatprep.subr.bf16.mxu0 0
        %3302 = vmatpush1.bf16.msra.mxu0 0
        %3303 = vmatprep.subr.bf16.mxu0 0
        %3304 = vmatpush1.bf16.msra.mxu0 0
        %3305 = vmatprep.subr.bf16.mxu0 0
        %3306 = vmatpush1.bf16.msra.mxu0 0
        %3307 = vmatprep.subr.bf16.mxu0 0
        %3308 = vmatpush1.bf16.msra.mxu0 0
        %3309 = vmatprep.subr.bf16.mxu0 0
        %3310 = vmatpush1.bf16.msra.mxu0 0
        %3311 = vmatprep.subr.bf16.mxu0 0
        %3312 = vmatpush1.bf16.msra.mxu0 0
        %3313 = vmatprep.subr.bf16.mxu0 0
        %3314 = vmatpush1.bf16.msra.mxu0 0
        %3315 = vmatprep.subr.bf16.mxu0 0
        %3316 = vmatpush1.bf16.msra.mxu0 0
        %3317 = vmatprep.subr.bf16.mxu0 0
        %3318 = vmatpush1.bf16.msra.mxu0 0
        %3319 = vmatprep.subr.bf16.mxu0 0
        %3320 = vmatpush1.bf16.msra.mxu0 0
        %3321 = vmatprep.subr.bf16.mxu0 0
        %3322 = vmatpush1.bf16.msra.mxu0 0
        %3323 = vmatprep.subr.bf16.mxu0 0
        %3324 = vmatpush1.bf16.msra.mxu0 0
        %3325 = vmatprep.subr.bf16.mxu0 0
        %3326 = vmatpush1.bf16.msra.mxu0 0
        %3327 = vmatprep.mubr.bf16.mxu0 0
        %3328 = vmatmul.mubr.bf16.gmra.mrb[0].mxu0 %v2936
        %v3329 = vpop.f32.mrb[0].mxu0
        %v3330 = vadd.f32 0.0, %v3329
        %v3331 = vpop.f32.mrb[0].mxu0
        %v3332 = vpop.f32.mrb[0].mxu0
        %v3333 = vpop.f32.mrb[0].mxu0
        %3334 = vdwg.mxu0
        %v3335 = vadd.f32 %v2859, %v3330
        %v3336 = vld [vmem:[%s196] sm:$0xf]
        %v3339 = vunpack.c.l.s4 1983009808
        %v3340 = vunpack.c.0.s8 %v3339
        %v3341 = vlaneseq
        %v3342 = vshrl.u32 %v3341, 7
        %v3343 = vsub.s32 %v3340, %v3342
        %v3344 = vrot.slane %v3336, %v3343
        %v3345 = vcombine.high %v3344, %v3344
        %3346 = vrot.lane.b32.xlu0 %v3344, 104
        %v3347 = vpop.permute.xlu0 %3346
        %3348 = vrot.lane.b32.xlu0 %v3345, 104
        %v3349 = vpop.permute.xlu0 %3348
        %v3350 = vsel %vm2933, %v3347, %v3349
        %v3352 = vsel %vm218, %v3350, 0
        %3354 = vmatprep.subr.bf16.mxu0 0
        %3355 = vmatpush1.bf16.msra.mxu0 %v3352
        %3356 = vmatprep.subr.bf16.mxu0 0
        %3357 = vmatpush1.bf16.msra.mxu0 0
        %3358 = vmatprep.subr.bf16.mxu0 0
        %3359 = vmatpush1.bf16.msra.mxu0 0
        %3360 = vmatprep.subr.bf16.mxu0 0
        %3361 = vmatpush1.bf16.msra.mxu0 0
        %3362 = vmatprep.subr.bf16.mxu0 0
        %3363 = vmatpush1.bf16.msra.mxu0 0
        %3364 = vmatprep.subr.bf16.mxu0 0
        %3365 = vmatpush1.bf16.msra.mxu0 0
        %3366 = vmatprep.subr.bf16.mxu0 0
        %3367 = vmatpush1.bf16.msra.mxu0 0
        %3368 = vmatprep.subr.bf16.mxu0 0
        %3369 = vmatpush1.bf16.msra.mxu0 0
        %3370 = vmatprep.subr.bf16.mxu0 0
        %3371 = vmatpush1.bf16.msra.mxu0 0
        %3372 = vmatprep.subr.bf16.mxu0 0
        %3373 = vmatpush1.bf16.msra.mxu0 0
        %3374 = vmatprep.subr.bf16.mxu0 0
        %3375 = vmatpush1.bf16.msra.mxu0 0
        %3376 = vmatprep.subr.bf16.mxu0 0
        %3377 = vmatpush1.bf16.msra.mxu0 0
        %3378 = vmatprep.subr.bf16.mxu0 0
        %3379 = vmatpush1.bf16.msra.mxu0 0
        %3380 = vmatprep.subr.bf16.mxu0 0
        %3381 = vmatpush1.bf16.msra.mxu0 0
        %3382 = vmatprep.subr.bf16.mxu0 0
        %3383 = vmatpush1.bf16.msra.mxu0 0
        %3384 = vmatprep.subr.bf16.mxu0 0
        %3385 = vmatpush1.bf16.msra.mxu0 0
        %3386 = vmatprep.mubr.bf16.mxu0 0
        %3387 = vmatmul.mubr.bf16.gmra.mrb[0].mxu0 %v2936
        %v3388 = vpop.f32.mrb[0].mxu0
        %v3389 = vadd.f32 0.0, %v3388
        %v3390 = vpop.f32.mrb[0].mxu0
        %v3391 = vpop.f32.mrb[0].mxu0
        %v3392 = vpop.f32.mrb[0].mxu0
        %3393 = vdwg.mxu0
        %v3394 = vadd.f32 %v2918, %v3389
        %v3395 = vld [vmem:[%s142] sm:$0xf]
        %v3398 = vunpack.c.l.s4 1983009808
        %v3399 = vunpack.c.0.s8 %v3398
        %v3400 = vlaneseq
        %v3401 = vshrl.u32 %v3400, 7
        %v3402 = vsub.s32 %v3399, %v3401
        %v3403 = vrot.slane %v3395, %v3402
        %v3404 = vcombine.high %v3403, %v3403
        %3405 = vrot.lane.b32.xlu0 %v3403, 103
        %v3406 = vpop.permute.xlu0 %3405
        %3407 = vrot.lane.b32.xlu0 %v3404, 103
        %v3408 = vpop.permute.xlu0 %3407
        %vm3409 = vcmask 842752
        %v3410 = vsel %vm3409, %v3406, %v3408
        %v3412 = vsel %vm214, %v180, 0
        %v3415 = vsel %vm218, %v3410, 0
        %3417 = vmatprep.subr.bf16.mxu0 0
        %3418 = vmatpush1.bf16.msra.mxu0 %v3415
        %3419 = vmatprep.subr.bf16.mxu0 0
        %3420 = vmatpush1.bf16.msra.mxu0 0
        %3421 = vmatprep.subr.bf16.mxu0 0
        %3422 = vmatpush1.bf16.msra.mxu0 0
        %3423 = vmatprep.subr.bf16.mxu0 0
        %3424 = vmatpush1.bf16.msra.mxu0 0
        %3425 = vmatprep.subr.bf16.mxu0 0
        %3426 = vmatpush1.bf16.msra.mxu0 0
        %3427 = vmatprep.subr.bf16.mxu0 0
        %3428 = vmatpush1.bf16.msra.mxu0 0
        %3429 = vmatprep.subr.bf16.mxu0 0
        %3430 = vmatpush1.bf16.msra.mxu0 0
        %3431 = vmatprep.subr.bf16.mxu0 0
        %3432 = vmatpush1.bf16.msra.mxu0 0
        %3433 = vmatprep.subr.bf16.mxu0 0
        %3434 = vmatpush1.bf16.msra.mxu0 0
        %3435 = vmatprep.subr.bf16.mxu0 0
        %3436 = vmatpush1.bf16.msra.mxu0 0
        %3437 = vmatprep.subr.bf16.mxu0 0
        %3438 = vmatpush1.bf16.msra.mxu0 0
        %3439 = vmatprep.subr.bf16.mxu0 0
        %3440 = vmatpush1.bf16.msra.mxu0 0
        %3441 = vmatprep.subr.bf16.mxu0 0
        %3442 = vmatpush1.bf16.msra.mxu0 0
        %3443 = vmatprep.subr.bf16.mxu0 0
        %3444 = vmatpush1.bf16.msra.mxu0 0
        %3445 = vmatprep.subr.bf16.mxu0 0
        %3446 = vmatpush1.bf16.msra.mxu0 0
        %3447 = vmatprep.subr.bf16.mxu0 0
        %3448 = vmatpush1.bf16.msra.mxu0 0
        %3449 = vmatprep.mubr.bf16.mxu0 0
        %3450 = vmatmul.mubr.bf16.gmra.mrb[0].mxu0 %v3412
        %v3451 = vpop.f32.mrb[0].mxu0
        %v3452 = vadd.f32 0.0, %v3451
        %v3453 = vpop.f32.mrb[0].mxu0
        %v3454 = vpop.f32.mrb[0].mxu0
        %v3455 = vpop.f32.mrb[0].mxu0
        %3456 = vdwg.mxu0
        %v3457 = vadd.f32 %v2981, %v3452
        %v3458 = vld [vmem:[%s184] sm:$0xf]
        %v3461 = vunpack.c.l.s4 1983009808
        %v3462 = vunpack.c.0.s8 %v3461
        %v3463 = vlaneseq
        %v3464 = vshrl.u32 %v3463, 7
        %v3465 = vsub.s32 %v3462, %v3464
        %v3466 = vrot.slane %v3458, %v3465
        %v3467 = vcombine.high %v3466, %v3466
        %3468 = vrot.lane.b32.xlu0 %v3466, 103
        %v3469 = vpop.permute.xlu0 %3468
        %3470 = vrot.lane.b32.xlu0 %v3467, 103
        %v3471 = vpop.permute.xlu0 %3470
        %v3472 = vsel %vm3409, %v3469, %v3471
        %v3474 = vsel %vm218, %v3472, 0
        %3476 = vmatprep.subr.bf16.mxu0 0
        %3477 = vmatpush1.bf16.msra.mxu0 %v3474
        %3478 = vmatprep.subr.bf16.mxu0 0
        %3479 = vmatpush1.bf16.msra.mxu0 0
        %3480 = vmatprep.subr.bf16.mxu0 0
        %3481 = vmatpush1.bf16.msra.mxu0 0
        %3482 = vmatprep.subr.bf16.mxu0 0
        %3483 = vmatpush1.bf16.msra.mxu0 0
        %3484 = vmatprep.subr.bf16.mxu0 0
        %3485 = vmatpush1.bf16.msra.mxu0 0
        %3486 = vmatprep.subr.bf16.mxu0 0
        %3487 = vmatpush1.bf16.msra.mxu0 0
        %3488 = vmatprep.subr.bf16.mxu0 0
        %3489 = vmatpush1.bf16.msra.mxu0 0
        %3490 = vmatprep.subr.bf16.mxu0 0
        %3491 = vmatpush1.bf16.msra.mxu0 0
        %3492 = vmatprep.subr.bf16.mxu0 0
        %3493 = vmatpush1.bf16.msra.mxu0 0
        %3494 = vmatprep.subr.bf16.mxu0 0
        %3495 = vmatpush1.bf16.msra.mxu0 0
        %3496 = vmatprep.subr.bf16.mxu0 0
        %3497 = vmatpush1.bf16.msra.mxu0 0
        %3498 = vmatprep.subr.bf16.mxu0 0
        %3499 = vmatpush1.bf16.msra.mxu0 0
        %3500 = vmatprep.subr.bf16.mxu0 0
        %3501 = vmatpush1.bf16.msra.mxu0 0
        %3502 = vmatprep.subr.bf16.mxu0 0
        %3503 = vmatpush1.bf16.msra.mxu0 0
        %3504 = vmatprep.subr.bf16.mxu0 0
        %3505 = vmatpush1.bf16.msra.mxu0 0
        %3506 = vmatprep.subr.bf16.mxu0 0
        %3507 = vmatpush1.bf16.msra.mxu0 0
        %3508 = vmatprep.mubr.bf16.mxu0 0
        %3509 = vmatmul.mubr.bf16.gmra.mrb[0].mxu0 %v3412
        %v3510 = vpop.f32.mrb[0].mxu0
        %v3511 = vadd.f32 0.0, %v3510
        %v3512 = vpop.f32.mrb[0].mxu0
        %v3513 = vpop.f32.mrb[0].mxu0
        %v3514 = vpop.f32.mrb[0].mxu0
        %3515 = vdwg.mxu0
        %v3516 = vadd.f32 %v3040, %v3511
        %v3517 = vld [vmem:[%s186] sm:$0xf]
        %v3520 = vunpack.c.l.s4 1983009808
        %v3521 = vunpack.c.0.s8 %v3520
        %v3522 = vlaneseq
        %v3523 = vshrl.u32 %v3522, 7
        %v3524 = vsub.s32 %v3521, %v3523
        %v3525 = vrot.slane %v3517, %v3524
        %v3526 = vcombine.high %v3525, %v3525
        %3527 = vrot.lane.b32.xlu0 %v3525, 103
        %v3528 = vpop.permute.xlu0 %3527
        %3529 = vrot.lane.b32.xlu0 %v3526, 103
        %v3530 = vpop.permute.xlu0 %3529
        %v3531 = vsel %vm3409, %v3528, %v3530
        %v3533 = vsel %vm218, %v3531, 0
        %3535 = vmatprep.subr.bf16.mxu0 0
        %3536 = vmatpush1.bf16.msra.mxu0 %v3533
        %3537 = vmatprep.subr.bf16.mxu0 0
        %3538 = vmatpush1.bf16.msra.mxu0 0
        %3539 = vmatprep.subr.bf16.mxu0 0
        %3540 = vmatpush1.bf16.msra.mxu0 0
        %3541 = vmatprep.subr.bf16.mxu0 0
        %3542 = vmatpush1.bf16.msra.mxu0 0
        %3543 = vmatprep.subr.bf16.mxu0 0
        %3544 = vmatpush1.bf16.msra.mxu0 0
        %3545 = vmatprep.subr.bf16.mxu0 0
        %3546 = vmatpush1.bf16.msra.mxu0 0
        %3547 = vmatprep.subr.bf16.mxu0 0
        %3548 = vmatpush1.bf16.msra.mxu0 0
        %3549 = vmatprep.subr.bf16.mxu0 0
        %3550 = vmatpush1.bf16.msra.mxu0 0
        %3551 = vmatprep.subr.bf16.mxu0 0
        %3552 = vmatpush1.bf16.msra.mxu0 0
        %3553 = vmatprep.subr.bf16.mxu0 0
        %3554 = vmatpush1.bf16.msra.mxu0 0
        %3555 = vmatprep.subr.bf16.mxu0 0
        %3556 = vmatpush1.bf16.msra.mxu0 0
        %3557 = vmatprep.subr.bf16.mxu0 0
        %3558 = vmatpush1.bf16.msra.mxu0 0
        %3559 = vmatprep.subr.bf16.mxu0 0
        %3560 = vmatpush1.bf16.msra.mxu0 0
        %3561 = vmatprep.subr.bf16.mxu0 0
        %3562 = vmatpush1.bf16.msra.mxu0 0
        %3563 = vmatprep.subr.bf16.mxu0 0
        %3564 = vmatpush1.bf16.msra.mxu0 0
        %3565 = vmatprep.subr.bf16.mxu0 0
        %3566 = vmatpush1.bf16.msra.mxu0 0
        %3567 = vmatprep.mubr.bf16.mxu0 0
        %3568 = vmatmul.mubr.bf16.gmra.mrb[0].mxu0 %v3412
        %v3569 = vpop.f32.mrb[0].mxu0
        %v3570 = vadd.f32 0.0, %v3569
        %v3571 = vpop.f32.mrb[0].mxu0
        %v3572 = vpop.f32.mrb[0].mxu0
        %v3573 = vpop.f32.mrb[0].mxu0
        %3574 = vdwg.mxu0
        %v3575 = vadd.f32 %v3099, %v3570
        %v3576 = vld [vmem:[%s188] sm:$0xf]
        %v3579 = vunpack.c.l.s4 1983009808
        %v3580 = vunpack.c.0.s8 %v3579
        %v3581 = vlaneseq
        %v3582 = vshrl.u32 %v3581, 7
        %v3583 = vsub.s32 %v3580, %v3582
        %v3584 = vrot.slane %v3576, %v3583
        %v3585 = vcombine.high %v3584, %v3584
        %3586 = vrot.lane.b32.xlu0 %v3584, 103
        %v3587 = vpop.permute.xlu0 %3586
        %3588 = vrot.lane.b32.xlu0 %v3585, 103
        %v3589 = vpop.permute.xlu0 %3588
        %v3590 = vsel %vm3409, %v3587, %v3589
        %v3592 = vsel %vm218, %v3590, 0
        %3594 = vmatprep.subr.bf16.mxu0 0
        %3595 = vmatpush1.bf16.msra.mxu0 %v3592
        %3596 = vmatprep.subr.bf16.mxu0 0
        %3597 = vmatpush1.bf16.msra.mxu0 0
        %3598 = vmatprep.subr.bf16.mxu0 0
        %3599 = vmatpush1.bf16.msra.mxu0 0
        %3600 = vmatprep.subr.bf16.mxu0 0
        %3601 = vmatpush1.bf16.msra.mxu0 0
        %3602 = vmatprep.subr.bf16.mxu0 0
        %3603 = vmatpush1.bf16.msra.mxu0 0
        %3604 = vmatprep.subr.bf16.mxu0 0
        %3605 = vmatpush1.bf16.msra.mxu0 0
        %3606 = vmatprep.subr.bf16.mxu0 0
        %3607 = vmatpush1.bf16.msra.mxu0 0
        %3608 = vmatprep.subr.bf16.mxu0 0
        %3609 = vmatpush1.bf16.msra.mxu0 0
        %3610 = vmatprep.subr.bf16.mxu0 0
        %3611 = vmatpush1.bf16.msra.mxu0 0
        %3612 = vmatprep.subr.bf16.mxu0 0
        %3613 = vmatpush1.bf16.msra.mxu0 0
        %3614 = vmatprep.subr.bf16.mxu0 0
        %3615 = vmatpush1.bf16.msra.mxu0 0
        %3616 = vmatprep.subr.bf16.mxu0 0
        %3617 = vmatpush1.bf16.msra.mxu0 0
        %3618 = vmatprep.subr.bf16.mxu0 0
        %3619 = vmatpush1.bf16.msra.mxu0 0
        %3620 = vmatprep.subr.bf16.mxu0 0
        %3621 = vmatpush1.bf16.msra.mxu0 0
        %3622 = vmatprep.subr.bf16.mxu0 0
        %3623 = vmatpush1.bf16.msra.mxu0 0
        %3624 = vmatprep.subr.bf16.mxu0 0
        %3625 = vmatpush1.bf16.msra.mxu0 0
        %3626 = vmatprep.mubr.bf16.mxu0 0
        %3627 = vmatmul.mubr.bf16.gmra.mrb[0].mxu0 %v3412
        %v3628 = vpop.f32.mrb[0].mxu0
        %v3629 = vadd.f32 0.0, %v3628
        %v3630 = vpop.f32.mrb[0].mxu0
        %v3631 = vpop.f32.mrb[0].mxu0
        %v3632 = vpop.f32.mrb[0].mxu0
        %3633 = vdwg.mxu0
        %v3634 = vadd.f32 %v3158, %v3629
        %v3635 = vld [vmem:[%s190] sm:$0xf]
        %v3638 = vunpack.c.l.s4 1983009808
        %v3639 = vunpack.c.0.s8 %v3638
        %v3640 = vlaneseq
        %v3641 = vshrl.u32 %v3640, 7
        %v3642 = vsub.s32 %v3639, %v3641
        %v3643 = vrot.slane %v3635, %v3642
        %v3644 = vcombine.high %v3643, %v3643
        %3645 = vrot.lane.b32.xlu0 %v3643, 103
        %v3646 = vpop.permute.xlu0 %3645
        %3647 = vrot.lane.b32.xlu0 %v3644, 103
        %v3648 = vpop.permute.xlu0 %3647
        %v3649 = vsel %vm3409, %v3646, %v3648
        %v3651 = vsel %vm218, %v3649, 0
        %3653 = vmatprep.subr.bf16.mxu0 0
        %3654 = vmatpush1.bf16.msra.mxu0 %v3651
        %3655 = vmatprep.subr.bf16.mxu0 0
        %3656 = vmatpush1.bf16.msra.mxu0 0
        %3657 = vmatprep.subr.bf16.mxu0 0
        %3658 = vmatpush1.bf16.msra.mxu0 0
        %3659 = vmatprep.subr.bf16.mxu0 0
        %3660 = vmatpush1.bf16.msra.mxu0 0
        %3661 = vmatprep.subr.bf16.mxu0 0
        %3662 = vmatpush1.bf16.msra.mxu0 0
        %3663 = vmatprep.subr.bf16.mxu0 0
        %3664 = vmatpush1.bf16.msra.mxu0 0
        %3665 = vmatprep.subr.bf16.mxu0 0
        %3666 = vmatpush1.bf16.msra.mxu0 0
        %3667 = vmatprep.subr.bf16.mxu0 0
        %3668 = vmatpush1.bf16.msra.mxu0 0
        %3669 = vmatprep.subr.bf16.mxu0 0
        %3670 = vmatpush1.bf16.msra.mxu0 0
        %3671 = vmatprep.subr.bf16.mxu0 0
        %3672 = vmatpush1.bf16.msra.mxu0 0
        %3673 = vmatprep.subr.bf16.mxu0 0
        %3674 = vmatpush1.bf16.msra.mxu0 0
        %3675 = vmatprep.subr.bf16.mxu0 0
        %3676 = vmatpush1.bf16.msra.mxu0 0
        %3677 = vmatprep.subr.bf16.mxu0 0
        %3678 = vmatpush1.bf16.msra.mxu0 0
        %3679 = vmatprep.subr.bf16.mxu0 0
        %3680 = vmatpush1.bf16.msra.mxu0 0
        %3681 = vmatprep.subr.bf16.mxu0 0
        %3682 = vmatpush1.bf16.msra.mxu0 0
        %3683 = vmatprep.subr.bf16.mxu0 0
        %3684 = vmatpush1.bf16.msra.mxu0 0
        %3685 = vmatprep.mubr.bf16.mxu0 0
        %3686 = vmatmul.mubr.bf16.gmra.mrb[0].mxu0 %v3412
        %v3687 = vpop.f32.mrb[0].mxu0
        %v3688 = vadd.f32 0.0, %v3687
        %v3689 = vpop.f32.mrb[0].mxu0
        %v3690 = vpop.f32.mrb[0].mxu0
        %v3691 = vpop.f32.mrb[0].mxu0
        %3692 = vdwg.mxu0
        %v3693 = vadd.f32 %v3217, %v3688
        %v3694 = vld [vmem:[%s192] sm:$0xf]
        %v3697 = vunpack.c.l.s4 1983009808
        %v3698 = vunpack.c.0.s8 %v3697
        %v3699 = vlaneseq
        %v3700 = vshrl.u32 %v3699, 7
        %v3701 = vsub.s32 %v3698, %v3700
        %v3702 = vrot.slane %v3694, %v3701
        %v3703 = vcombine.high %v3702, %v3702
        %3704 = vrot.lane.b32.xlu0 %v3702, 103
        %v3705 = vpop.permute.xlu0 %3704
        %3706 = vrot.lane.b32.xlu0 %v3703, 103
        %v3707 = vpop.permute.xlu0 %3706
        %v3708 = vsel %vm3409, %v3705, %v3707
        %v3710 = vsel %vm218, %v3708, 0
        %3712 = vmatprep.subr.bf16.mxu0 0
        %3713 = vmatpush1.bf16.msra.mxu0 %v3710
        %3714 = vmatprep.subr.bf16.mxu0 0
        %3715 = vmatpush1.bf16.msra.mxu0 0
        %3716 = vmatprep.subr.bf16.mxu0 0
        %3717 = vmatpush1.bf16.msra.mxu0 0
        %3718 = vmatprep.subr.bf16.mxu0 0
        %3719 = vmatpush1.bf16.msra.mxu0 0
        %3720 = vmatprep.subr.bf16.mxu0 0
        %3721 = vmatpush1.bf16.msra.mxu0 0
        %3722 = vmatprep.subr.bf16.mxu0 0
        %3723 = vmatpush1.bf16.msra.mxu0 0
        %3724 = vmatprep.subr.bf16.mxu0 0
        %3725 = vmatpush1.bf16.msra.mxu0 0
        %3726 = vmatprep.subr.bf16.mxu0 0
        %3727 = vmatpush1.bf16.msra.mxu0 0
        %3728 = vmatprep.subr.bf16.mxu0 0
        %3729 = vmatpush1.bf16.msra.mxu0 0
        %3730 = vmatprep.subr.bf16.mxu0 0
        %3731 = vmatpush1.bf16.msra.mxu0 0
        %3732 = vmatprep.subr.bf16.mxu0 0
        %3733 = vmatpush1.bf16.msra.mxu0 0
        %3734 = vmatprep.subr.bf16.mxu0 0
        %3735 = vmatpush1.bf16.msra.mxu0 0
        %3736 = vmatprep.subr.bf16.mxu0 0
        %3737 = vmatpush1.bf16.msra.mxu0 0
        %3738 = vmatprep.subr.bf16.mxu0 0
        %3739 = vmatpush1.bf16.msra.mxu0 0
        %3740 = vmatprep.subr.bf16.mxu0 0
        %3741 = vmatpush1.bf16.msra.mxu0 0
        %3742 = vmatprep.subr.bf16.mxu0 0
        %3743 = vmatpush1.bf16.msra.mxu0 0
        %3744 = vmatprep.mubr.bf16.mxu0 0
        %3745 = vmatmul.mubr.bf16.gmra.mrb[0].mxu0 %v3412
        %v3746 = vpop.f32.mrb[0].mxu0
        %v3747 = vadd.f32 0.0, %v3746
        %v3748 = vpop.f32.mrb[0].mxu0
        %v3749 = vpop.f32.mrb[0].mxu0
        %v3750 = vpop.f32.mrb[0].mxu0
        %3751 = vdwg.mxu0
        %v3752 = vadd.f32 %v3276, %v3747
        %v3753 = vld [vmem:[%s194] sm:$0xf]
        %v3756 = vunpack.c.l.s4 1983009808
        %v3757 = vunpack.c.0.s8 %v3756
        %v3758 = vlaneseq
        %v3759 = vshrl.u32 %v3758, 7
        %v3760 = vsub.s32 %v3757, %v3759
        %v3761 = vrot.slane %v3753, %v3760
        %v3762 = vcombine.high %v3761, %v3761
        %3763 = vrot.lane.b32.xlu0 %v3761, 103
        %v3764 = vpop.permute.xlu0 %3763
        %3765 = vrot.lane.b32.xlu0 %v3762, 103
        %v3766 = vpop.permute.xlu0 %3765
        %v3767 = vsel %vm3409, %v3764, %v3766
        %v3769 = vsel %vm218, %v3767, 0
        %3771 = vmatprep.subr.bf16.mxu0 0
        %3772 = vmatpush1.bf16.msra.mxu0 %v3769
        %3773 = vmatprep.subr.bf16.mxu0 0
        %3774 = vmatpush1.bf16.msra.mxu0 0
        %3775 = vmatprep.subr.bf16.mxu0 0
        %3776 = vmatpush1.bf16.msra.mxu0 0
        %3777 = vmatprep.subr.bf16.mxu0 0
        %3778 = vmatpush1.bf16.msra.mxu0 0
        %3779 = vmatprep.subr.bf16.mxu0 0
        %3780 = vmatpush1.bf16.msra.mxu0 0
        %3781 = vmatprep.subr.bf16.mxu0 0
        %3782 = vmatpush1.bf16.msra.mxu0 0
        %3783 = vmatprep.subr.bf16.mxu0 0
        %3784 = vmatpush1.bf16.msra.mxu0 0
        %3785 = vmatprep.subr.bf16.mxu0 0
        %3786 = vmatpush1.bf16.msra.mxu0 0
        %3787 = vmatprep.subr.bf16.mxu0 0
        %3788 = vmatpush1.bf16.msra.mxu0 0
        %3789 = vmatprep.subr.bf16.mxu0 0
        %3790 = vmatpush1.bf16.msra.mxu0 0
        %3791 = vmatprep.subr.bf16.mxu0 0
        %3792 = vmatpush1.bf16.msra.mxu0 0
        %3793 = vmatprep.subr.bf16.mxu0 0
        %3794 = vmatpush1.bf16.msra.mxu0 0
        %3795 = vmatprep.subr.bf16.mxu0 0
        %3796 = vmatpush1.bf16.msra.mxu0 0
        %3797 = vmatprep.subr.bf16.mxu0 0
        %3798 = vmatpush1.bf16.msra.mxu0 0
        %3799 = vmatprep.subr.bf16.mxu0 0
        %3800 = vmatpush1.bf16.msra.mxu0 0
        %3801 = vmatprep.subr.bf16.mxu0 0
        %3802 = vmatpush1.bf16.msra.mxu0 0
        %3803 = vmatprep.mubr.bf16.mxu0 0
        %3804 = vmatmul.mubr.bf16.gmra.mrb[0].mxu0 %v3412
        %v3805 = vpop.f32.mrb[0].mxu0
        %v3806 = vadd.f32 0.0, %v3805
        %v3807 = vpop.f32.mrb[0].mxu0
        %v3808 = vpop.f32.mrb[0].mxu0
        %v3809 = vpop.f32.mrb[0].mxu0
        %3810 = vdwg.mxu0
        %v3811 = vadd.f32 %v3335, %v3806
        %v3812 = vld [vmem:[%s196] sm:$0xf]
        %v3815 = vunpack.c.l.s4 1983009808
        %v3816 = vunpack.c.0.s8 %v3815
        %v3817 = vlaneseq
        %v3818 = vshrl.u32 %v3817, 7
        %v3819 = vsub.s32 %v3816, %v3818
        %v3820 = vrot.slane %v3812, %v3819
        %v3821 = vcombine.high %v3820, %v3820
        %3822 = vrot.lane.b32.xlu0 %v3820, 103
        %v3823 = vpop.permute.xlu0 %3822
        %3824 = vrot.lane.b32.xlu0 %v3821, 103
        %v3825 = vpop.permute.xlu0 %3824
        %v3826 = vsel %vm3409, %v3823, %v3825
        %v3828 = vsel %vm218, %v3826, 0
        %3830 = vmatprep.subr.bf16.mxu0 0
        %3831 = vmatpush1.bf16.msra.mxu0 %v3828
        %3832 = vmatprep.subr.bf16.mxu0 0
        %3833 = vmatpush1.bf16.msra.mxu0 0
        %3834 = vmatprep.subr.bf16.mxu0 0
        %3835 = vmatpush1.bf16.msra.mxu0 0
        %3836 = vmatprep.subr.bf16.mxu0 0
        %3837 = vmatpush1.bf16.msra.mxu0 0
        %3838 = vmatprep.subr.bf16.mxu0 0
        %3839 = vmatpush1.bf16.msra.mxu0 0
        %3840 = vmatprep.subr.bf16.mxu0 0
        %3841 = vmatpush1.bf16.msra.mxu0 0
        %3842 = vmatprep.subr.bf16.mxu0 0
        %3843 = vmatpush1.bf16.msra.mxu0 0
        %3844 = vmatprep.subr.bf16.mxu0 0
        %3845 = vmatpush1.bf16.msra.mxu0 0
        %3846 = vmatprep.subr.bf16.mxu0 0
        %3847 = vmatpush1.bf16.msra.mxu0 0
        %3848 = vmatprep.subr.bf16.mxu0 0
        %3849 = vmatpush1.bf16.msra.mxu0 0
        %3850 = vmatprep.subr.bf16.mxu0 0
        %3851 = vmatpush1.bf16.msra.mxu0 0
        %3852 = vmatprep.subr.bf16.mxu0 0
        %3853 = vmatpush1.bf16.msra.mxu0 0
        %3854 = vmatprep.subr.bf16.mxu0 0
        %3855 = vmatpush1.bf16.msra.mxu0 0
        %3856 = vmatprep.subr.bf16.mxu0 0
        %3857 = vmatpush1.bf16.msra.mxu0 0
        %3858 = vmatprep.subr.bf16.mxu0 0
        %3859 = vmatpush1.bf16.msra.mxu0 0
        %3860 = vmatprep.subr.bf16.mxu0 0
        %3861 = vmatpush1.bf16.msra.mxu0 0
        %3862 = vmatprep.mubr.bf16.mxu0 0
        %3863 = vmatmul.mubr.bf16.gmra.mrb[0].mxu0 %v3412
        %v3864 = vpop.f32.mrb[0].mxu0
        %v3865 = vadd.f32 0.0, %v3864
        %v3866 = vpop.f32.mrb[0].mxu0
        %v3867 = vpop.f32.mrb[0].mxu0
        %v3868 = vpop.f32.mrb[0].mxu0
        %3869 = vdwg.mxu0
        %v3870 = vadd.f32 %v3394, %v3865
        %v3871 = vld [vmem:[%s142] sm:$0xf]
        %v3874 = vunpack.c.l.s4 1983009808
        %v3875 = vunpack.c.0.s8 %v3874
        %v3876 = vlaneseq
        %v3877 = vshrl.u32 %v3876, 7
        %v3878 = vsub.s32 %v3875, %v3877
        %v3879 = vrot.slane %v3871, %v3878
        %v3880 = vcombine.high %v3879, %v3879
        %3881 = vrot.lane.b32.xlu0 %v3879, 102
        %v3882 = vpop.permute.xlu0 %3881
        %3883 = vrot.lane.b32.xlu0 %v3880, 102
        %v3884 = vpop.permute.xlu0 %3883
        %vm3885 = vcmask 834560
        %v3886 = vsel %vm3885, %v3882, %v3884
        %v3888 = vsel %vm214, %v182, 0
        %v3891 = vsel %vm218, %v3886, 0
        %3893 = vmatprep.subr.bf16.mxu0 0
        %3894 = vmatpush1.bf16.msra.mxu0 %v3891
        %3895 = vmatprep.subr.bf16.mxu0 0
        %3896 = vmatpush1.bf16.msra.mxu0 0
        %3897 = vmatprep.subr.bf16.mxu0 0
        %3898 = vmatpush1.bf16.msra.mxu0 0
        %3899 = vmatprep.subr.bf16.mxu0 0
        %3900 = vmatpush1.bf16.msra.mxu0 0
        %3901 = vmatprep.subr.bf16.mxu0 0
        %3902 = vmatpush1.bf16.msra.mxu0 0
        %3903 = vmatprep.subr.bf16.mxu0 0
        %3904 = vmatpush1.bf16.msra.mxu0 0
        %3905 = vmatprep.subr.bf16.mxu0 0
        %3906 = vmatpush1.bf16.msra.mxu0 0
        %3907 = vmatprep.subr.bf16.mxu0 0
        %3908 = vmatpush1.bf16.msra.mxu0 0
        %3909 = vmatprep.subr.bf16.mxu0 0
        %3910 = vmatpush1.bf16.msra.mxu0 0
        %3911 = vmatprep.subr.bf16.mxu0 0
        %3912 = vmatpush1.bf16.msra.mxu0 0
        %3913 = vmatprep.subr.bf16.mxu0 0
        %3914 = vmatpush1.bf16.msra.mxu0 0
        %3915 = vmatprep.subr.bf16.mxu0 0
        %3916 = vmatpush1.bf16.msra.mxu0 0
        %3917 = vmatprep.subr.bf16.mxu0 0
        %3918 = vmatpush1.bf16.msra.mxu0 0
        %3919 = vmatprep.subr.bf16.mxu0 0
        %3920 = vmatpush1.bf16.msra.mxu0 0
        %3921 = vmatprep.subr.bf16.mxu0 0
        %3922 = vmatpush1.bf16.msra.mxu0 0
        %3923 = vmatprep.subr.bf16.mxu0 0
        %3924 = vmatpush1.bf16.msra.mxu0 0
        %3925 = vmatprep.mubr.bf16.mxu0 0
        %3926 = vmatmul.mubr.bf16.gmra.mrb[0].mxu0 %v3888
        %v3927 = vpop.f32.mrb[0].mxu0
        %v3928 = vadd.f32 0.0, %v3927
        %v3929 = vpop.f32.mrb[0].mxu0
        %v3930 = vpop.f32.mrb[0].mxu0
        %v3931 = vpop.f32.mrb[0].mxu0
        %3932 = vdwg.mxu0
        %v3933 = vadd.f32 %v3457, %v3928
        %v3934 = vld [vmem:[%s184] sm:$0xf]
        %v3937 = vunpack.c.l.s4 1983009808
        %v3938 = vunpack.c.0.s8 %v3937
        %v3939 = vlaneseq
        %v3940 = vshrl.u32 %v3939, 7
        %v3941 = vsub.s32 %v3938, %v3940
        %v3942 = vrot.slane %v3934, %v3941
        %v3943 = vcombine.high %v3942, %v3942
        %3944 = vrot.lane.b32.xlu0 %v3942, 102
        %v3945 = vpop.permute.xlu0 %3944
        %3946 = vrot.lane.b32.xlu0 %v3943, 102
        %v3947 = vpop.permute.xlu0 %3946
        %v3948 = vsel %vm3885, %v3945, %v3947
        %v3950 = vsel %vm218, %v3948, 0
        %3952 = vmatprep.subr.bf16.mxu0 0
        %3953 = vmatpush1.bf16.msra.mxu0 %v3950
        %3954 = vmatprep.subr.bf16.mxu0 0
        %3955 = vmatpush1.bf16.msra.mxu0 0
        %3956 = vmatprep.subr.bf16.mxu0 0
        %3957 = vmatpush1.bf16.msra.mxu0 0
        %3958 = vmatprep.subr.bf16.mxu0 0
        %3959 = vmatpush1.bf16.msra.mxu0 0
        %3960 = vmatprep.subr.bf16.mxu0 0
        %3961 = vmatpush1.bf16.msra.mxu0 0
        %3962 = vmatprep.subr.bf16.mxu0 0
        %3963 = vmatpush1.bf16.msra.mxu0 0
        %3964 = vmatprep.subr.bf16.mxu0 0
        %3965 = vmatpush1.bf16.msra.mxu0 0
        %3966 = vmatprep.subr.bf16.mxu0 0
        %3967 = vmatpush1.bf16.msra.mxu0 0
        %3968 = vmatprep.subr.bf16.mxu0 0
        %3969 = vmatpush1.bf16.msra.mxu0 0
        %3970 = vmatprep.subr.bf16.mxu0 0
        %3971 = vmatpush1.bf16.msra.mxu0 0
        %3972 = vmatprep.subr.bf16.mxu0 0
        %3973 = vmatpush1.bf16.msra.mxu0 0
        %3974 = vmatprep.subr.bf16.mxu0 0
        %3975 = vmatpush1.bf16.msra.mxu0 0
        %3976 = vmatprep.subr.bf16.mxu0 0
        %3977 = vmatpush1.bf16.msra.mxu0 0
        %3978 = vmatprep.subr.bf16.mxu0 0
        %3979 = vmatpush1.bf16.msra.mxu0 0
        %3980 = vmatprep.subr.bf16.mxu0 0
        %3981 = vmatpush1.bf16.msra.mxu0 0
        %3982 = vmatprep.subr.bf16.mxu0 0
        %3983 = vmatpush1.bf16.msra.mxu0 0
        %3984 = vmatprep.mubr.bf16.mxu0 0
        %3985 = vmatmul.mubr.bf16.gmra.mrb[0].mxu0 %v3888
        %v3986 = vpop.f32.mrb[0].mxu0
        %v3987 = vadd.f32 0.0, %v3986
        %v3988 = vpop.f32.mrb[0].mxu0
        %v3989 = vpop.f32.mrb[0].mxu0
        %v3990 = vpop.f32.mrb[0].mxu0
        %3991 = vdwg.mxu0
        %v3992 = vadd.f32 %v3516, %v3987
        %v3993 = vld [vmem:[%s186] sm:$0xf]
        %v3996 = vunpack.c.l.s4 1983009808
        %v3997 = vunpack.c.0.s8 %v3996
        %v3998 = vlaneseq
        %v3999 = vshrl.u32 %v3998, 7
        %v4000 = vsub.s32 %v3997, %v3999
        %v4001 = vrot.slane %v3993, %v4000
        %v4002 = vcombine.high %v4001, %v4001
        %4003 = vrot.lane.b32.xlu0 %v4001, 102
        %v4004 = vpop.permute.xlu0 %4003
        %4005 = vrot.lane.b32.xlu0 %v4002, 102
        %v4006 = vpop.permute.xlu0 %4005
        %v4007 = vsel %vm3885, %v4004, %v4006
        %v4009 = vsel %vm218, %v4007, 0
        %4011 = vmatprep.subr.bf16.mxu0 0
        %4012 = vmatpush1.bf16.msra.mxu0 %v4009
        %4013 = vmatprep.subr.bf16.mxu0 0
        %4014 = vmatpush1.bf16.msra.mxu0 0
        %4015 = vmatprep.subr.bf16.mxu0 0
        %4016 = vmatpush1.bf16.msra.mxu0 0
        %4017 = vmatprep.subr.bf16.mxu0 0
        %4018 = vmatpush1.bf16.msra.mxu0 0
        %4019 = vmatprep.subr.bf16.mxu0 0
        %4020 = vmatpush1.bf16.msra.mxu0 0
        %4021 = vmatprep.subr.bf16.mxu0 0
        %4022 = vmatpush1.bf16.msra.mxu0 0
        %4023 = vmatprep.subr.bf16.mxu0 0
        %4024 = vmatpush1.bf16.msra.mxu0 0
        %4025 = vmatprep.subr.bf16.mxu0 0
        %4026 = vmatpush1.bf16.msra.mxu0 0
        %4027 = vmatprep.subr.bf16.mxu0 0
        %4028 = vmatpush1.bf16.msra.mxu0 0
        %4029 = vmatprep.subr.bf16.mxu0 0
        %4030 = vmatpush1.bf16.msra.mxu0 0
        %4031 = vmatprep.subr.bf16.mxu0 0
        %4032 = vmatpush1.bf16.msra.mxu0 0
        %4033 = vmatprep.subr.bf16.mxu0 0
        %4034 = vmatpush1.bf16.msra.mxu0 0
        %4035 = vmatprep.subr.bf16.mxu0 0
        %4036 = vmatpush1.bf16.msra.mxu0 0
        %4037 = vmatprep.subr.bf16.mxu0 0
        %4038 = vmatpush1.bf16.msra.mxu0 0
        %4039 = vmatprep.subr.bf16.mxu0 0
        %4040 = vmatpush1.bf16.msra.mxu0 0
        %4041 = vmatprep.subr.bf16.mxu0 0
        %4042 = vmatpush1.bf16.msra.mxu0 0
        %4043 = vmatprep.mubr.bf16.mxu0 0
        %4044 = vmatmul.mubr.bf16.gmra.mrb[0].mxu0 %v3888
        %v4045 = vpop.f32.mrb[0].mxu0
        %v4046 = vadd.f32 0.0, %v4045
        %v4047 = vpop.f32.mrb[0].mxu0
        %v4048 = vpop.f32.mrb[0].mxu0
        %v4049 = vpop.f32.mrb[0].mxu0
        %4050 = vdwg.mxu0
        %v4051 = vadd.f32 %v3575, %v4046
        %v4052 = vld [vmem:[%s188] sm:$0xf]
        %v4055 = vunpack.c.l.s4 1983009808
        %v4056 = vunpack.c.0.s8 %v4055
        %v4057 = vlaneseq
        %v4058 = vshrl.u32 %v4057, 7
        %v4059 = vsub.s32 %v4056, %v4058
        %v4060 = vrot.slane %v4052, %v4059
        %v4061 = vcombine.high %v4060, %v4060
        %4062 = vrot.lane.b32.xlu0 %v4060, 102
        %v4063 = vpop.permute.xlu0 %4062
        %4064 = vrot.lane.b32.xlu0 %v4061, 102
        %v4065 = vpop.permute.xlu0 %4064
        %v4066 = vsel %vm3885, %v4063, %v4065
        %v4068 = vsel %vm218, %v4066, 0
        %4070 = vmatprep.subr.bf16.mxu0 0
        %4071 = vmatpush1.bf16.msra.mxu0 %v4068
        %4072 = vmatprep.subr.bf16.mxu0 0
        %4073 = vmatpush1.bf16.msra.mxu0 0
        %4074 = vmatprep.subr.bf16.mxu0 0
        %4075 = vmatpush1.bf16.msra.mxu0 0
        %4076 = vmatprep.subr.bf16.mxu0 0
        %4077 = vmatpush1.bf16.msra.mxu0 0
        %4078 = vmatprep.subr.bf16.mxu0 0
        %4079 = vmatpush1.bf16.msra.mxu0 0
        %4080 = vmatprep.subr.bf16.mxu0 0
        %4081 = vmatpush1.bf16.msra.mxu0 0
        %4082 = vmatprep.subr.bf16.mxu0 0
        %4083 = vmatpush1.bf16.msra.mxu0 0
        %4084 = vmatprep.subr.bf16.mxu0 0
        %4085 = vmatpush1.bf16.msra.mxu0 0
        %4086 = vmatprep.subr.bf16.mxu0 0
        %4087 = vmatpush1.bf16.msra.mxu0 0
        %4088 = vmatprep.subr.bf16.mxu0 0
        %4089 = vmatpush1.bf16.msra.mxu0 0
        %4090 = vmatprep.subr.bf16.mxu0 0
        %4091 = vmatpush1.bf16.msra.mxu0 0
        %4092 = vmatprep.subr.bf16.mxu0 0
        %4093 = vmatpush1.bf16.msra.mxu0 0
        %4094 = vmatprep.subr.bf16.mxu0 0
        %4095 = vmatpush1.bf16.msra.mxu0 0
        %4096 = vmatprep.subr.bf16.mxu0 0
        %4097 = vmatpush1.bf16.msra.mxu0 0
        %4098 = vmatprep.subr.bf16.mxu0 0
        %4099 = vmatpush1.bf16.msra.mxu0 0
        %4100 = vmatprep.subr.bf16.mxu0 0
        %4101 = vmatpush1.bf16.msra.mxu0 0
        %4102 = vmatprep.mubr.bf16.mxu0 0
        %4103 = vmatmul.mubr.bf16.gmra.mrb[0].mxu0 %v3888
        %v4104 = vpop.f32.mrb[0].mxu0
        %v4105 = vadd.f32 0.0, %v4104
        %v4106 = vpop.f32.mrb[0].mxu0
        %v4107 = vpop.f32.mrb[0].mxu0
        %v4108 = vpop.f32.mrb[0].mxu0
        %4109 = vdwg.mxu0
        %v4110 = vadd.f32 %v3634, %v4105
        %v4111 = vld [vmem:[%s190] sm:$0xf]
        %v4114 = vunpack.c.l.s4 1983009808
        %v4115 = vunpack.c.0.s8 %v4114
        %v4116 = vlaneseq
        %v4117 = vshrl.u32 %v4116, 7
        %v4118 = vsub.s32 %v4115, %v4117
        %v4119 = vrot.slane %v4111, %v4118
        %v4120 = vcombine.high %v4119, %v4119
        %4121 = vrot.lane.b32.xlu0 %v4119, 102
        %v4122 = vpop.permute.xlu0 %4121
        %4123 = vrot.lane.b32.xlu0 %v4120, 102
        %v4124 = vpop.permute.xlu0 %4123
        %v4125 = vsel %vm3885, %v4122, %v4124
        %v4127 = vsel %vm218, %v4125, 0
        %4129 = vmatprep.subr.bf16.mxu0 0
        %4130 = vmatpush1.bf16.msra.mxu0 %v4127
        %4131 = vmatprep.subr.bf16.mxu0 0
        %4132 = vmatpush1.bf16.msra.mxu0 0
        %4133 = vmatprep.subr.bf16.mxu0 0
        %4134 = vmatpush1.bf16.msra.mxu0 0
        %4135 = vmatprep.subr.bf16.mxu0 0
        %4136 = vmatpush1.bf16.msra.mxu0 0
        %4137 = vmatprep.subr.bf16.mxu0 0
        %4138 = vmatpush1.bf16.msra.mxu0 0
        %4139 = vmatprep.subr.bf16.mxu0 0
        %4140 = vmatpush1.bf16.msra.mxu0 0
        %4141 = vmatprep.subr.bf16.mxu0 0
        %4142 = vmatpush1.bf16.msra.mxu0 0
        %4143 = vmatprep.subr.bf16.mxu0 0
        %4144 = vmatpush1.bf16.msra.mxu0 0
        %4145 = vmatprep.subr.bf16.mxu0 0
        %4146 = vmatpush1.bf16.msra.mxu0 0
        %4147 = vmatprep.subr.bf16.mxu0 0
        %4148 = vmatpush1.bf16.msra.mxu0 0
        %4149 = vmatprep.subr.bf16.mxu0 0
        %4150 = vmatpush1.bf16.msra.mxu0 0
        %4151 = vmatprep.subr.bf16.mxu0 0
        %4152 = vmatpush1.bf16.msra.mxu0 0
        %4153 = vmatprep.subr.bf16.mxu0 0
        %4154 = vmatpush1.bf16.msra.mxu0 0
        %4155 = vmatprep.subr.bf16.mxu0 0
        %4156 = vmatpush1.bf16.msra.mxu0 0
        %4157 = vmatprep.subr.bf16.mxu0 0
        %4158 = vmatpush1.bf16.msra.mxu0 0
        %4159 = vmatprep.subr.bf16.mxu0 0
        %4160 = vmatpush1.bf16.msra.mxu0 0
        %4161 = vmatprep.mubr.bf16.mxu0 0
        %4162 = vmatmul.mubr.bf16.gmra.mrb[0].mxu0 %v3888
        %v4163 = vpop.f32.mrb[0].mxu0
        %v4164 = vadd.f32 0.0, %v4163
        %v4165 = vpop.f32.mrb[0].mxu0
        %v4166 = vpop.f32.mrb[0].mxu0
        %v4167 = vpop.f32.mrb[0].mxu0
        %4168 = vdwg.mxu0
        %v4169 = vadd.f32 %v3693, %v4164
        %v4170 = vld [vmem:[%s192] sm:$0xf]
        %v4173 = vunpack.c.l.s4 1983009808
        %v4174 = vunpack.c.0.s8 %v4173
        %v4175 = vlaneseq
        %v4176 = vshrl.u32 %v4175, 7
        %v4177 = vsub.s32 %v4174, %v4176
        %v4178 = vrot.slane %v4170, %v4177
        %v4179 = vcombine.high %v4178, %v4178
        %4180 = vrot.lane.b32.xlu0 %v4178, 102
        %v4181 = vpop.permute.xlu0 %4180
        %4182 = vrot.lane.b32.xlu0 %v4179, 102
        %v4183 = vpop.permute.xlu0 %4182
        %v4184 = vsel %vm3885, %v4181, %v4183
        %v4186 = vsel %vm218, %v4184, 0
        %4188 = vmatprep.subr.bf16.mxu0 0
        %4189 = vmatpush1.bf16.msra.mxu0 %v4186
        %4190 = vmatprep.subr.bf16.mxu0 0
        %4191 = vmatpush1.bf16.msra.mxu0 0
        %4192 = vmatprep.subr.bf16.mxu0 0
        %4193 = vmatpush1.bf16.msra.mxu0 0
        %4194 = vmatprep.subr.bf16.mxu0 0
        %4195 = vmatpush1.bf16.msra.mxu0 0
        %4196 = vmatprep.subr.bf16.mxu0 0
        %4197 = vmatpush1.bf16.msra.mxu0 0
        %4198 = vmatprep.subr.bf16.mxu0 0
        %4199 = vmatpush1.bf16.msra.mxu0 0
        %4200 = vmatprep.subr.bf16.mxu0 0
        %4201 = vmatpush1.bf16.msra.mxu0 0
        %4202 = vmatprep.subr.bf16.mxu0 0
        %4203 = vmatpush1.bf16.msra.mxu0 0
        %4204 = vmatprep.subr.bf16.mxu0 0
        %4205 = vmatpush1.bf16.msra.mxu0 0
        %4206 = vmatprep.subr.bf16.mxu0 0
        %4207 = vmatpush1.bf16.msra.mxu0 0
        %4208 = vmatprep.subr.bf16.mxu0 0
        %4209 = vmatpush1.bf16.msra.mxu0 0
        %4210 = vmatprep.subr.bf16.mxu0 0
        %4211 = vmatpush1.bf16.msra.mxu0 0
        %4212 = vmatprep.subr.bf16.mxu0 0
        %4213 = vmatpush1.bf16.msra.mxu0 0
        %4214 = vmatprep.subr.bf16.mxu0 0
        %4215 = vmatpush1.bf16.msra.mxu0 0
        %4216 = vmatprep.subr.bf16.mxu0 0
        %4217 = vmatpush1.bf16.msra.mxu0 0
        %4218 = vmatprep.subr.bf16.mxu0 0
        %4219 = vmatpush1.bf16.msra.mxu0 0
        %4220 = vmatprep.mubr.bf16.mxu0 0
        %4221 = vmatmul.mubr.bf16.gmra.mrb[0].mxu0 %v3888
        %v4222 = vpop.f32.mrb[0].mxu0
        %v4223 = vadd.f32 0.0, %v4222
        %v4224 = vpop.f32.mrb[0].mxu0
        %v4225 = vpop.f32.mrb[0].mxu0
        %v4226 = vpop.f32.mrb[0].mxu0
        %4227 = vdwg.mxu0
        %v4228 = vadd.f32 %v3752, %v4223
        %v4229 = vld [vmem:[%s194] sm:$0xf]
        %v4232 = vunpack.c.l.s4 1983009808
        %v4233 = vunpack.c.0.s8 %v4232
        %v4234 = vlaneseq
        %v4235 = vshrl.u32 %v4234, 7
        %v4236 = vsub.s32 %v4233, %v4235
        %v4237 = vrot.slane %v4229, %v4236
        %v4238 = vcombine.high %v4237, %v4237
        %4239 = vrot.lane.b32.xlu0 %v4237, 102
        %v4240 = vpop.permute.xlu0 %4239
        %4241 = vrot.lane.b32.xlu0 %v4238, 102
        %v4242 = vpop.permute.xlu0 %4241
        %v4243 = vsel %vm3885, %v4240, %v4242
        %v4245 = vsel %vm218, %v4243, 0
        %4247 = vmatprep.subr.bf16.mxu0 0
        %4248 = vmatpush1.bf16.msra.mxu0 %v4245
        %4249 = vmatprep.subr.bf16.mxu0 0
        %4250 = vmatpush1.bf16.msra.mxu0 0
        %4251 = vmatprep.subr.bf16.mxu0 0
        %4252 = vmatpush1.bf16.msra.mxu0 0
        %4253 = vmatprep.subr.bf16.mxu0 0
        %4254 = vmatpush1.bf16.msra.mxu0 0
        %4255 = vmatprep.subr.bf16.mxu0 0
        %4256 = vmatpush1.bf16.msra.mxu0 0
        %4257 = vmatprep.subr.bf16.mxu0 0
        %4258 = vmatpush1.bf16.msra.mxu0 0
        %4259 = vmatprep.subr.bf16.mxu0 0
        %4260 = vmatpush1.bf16.msra.mxu0 0
        %4261 = vmatprep.subr.bf16.mxu0 0
        %4262 = vmatpush1.bf16.msra.mxu0 0
        %4263 = vmatprep.subr.bf16.mxu0 0
        %4264 = vmatpush1.bf16.msra.mxu0 0
        %4265 = vmatprep.subr.bf16.mxu0 0
        %4266 = vmatpush1.bf16.msra.mxu0 0
        %4267 = vmatprep.subr.bf16.mxu0 0
        %4268 = vmatpush1.bf16.msra.mxu0 0
        %4269 = vmatprep.subr.bf16.mxu0 0
        %4270 = vmatpush1.bf16.msra.mxu0 0
        %4271 = vmatprep.subr.bf16.mxu0 0
        %4272 = vmatpush1.bf16.msra.mxu0 0
        %4273 = vmatprep.subr.bf16.mxu0 0
        %4274 = vmatpush1.bf16.msra.mxu0 0
        %4275 = vmatprep.subr.bf16.mxu0 0
        %4276 = vmatpush1.bf16.msra.mxu0 0
        %4277 = vmatprep.subr.bf16.mxu0 0
        %4278 = vmatpush1.bf16.msra.mxu0 0
        %4279 = vmatprep.mubr.bf16.mxu0 0
        %4280 = vmatmul.mubr.bf16.gmra.mrb[0].mxu0 %v3888
        %v4281 = vpop.f32.mrb[0].mxu0
        %v4282 = vadd.f32 0.0, %v4281
        %v4283 = vpop.f32.mrb[0].mxu0
        %v4284 = vpop.f32.mrb[0].mxu0
        %v4285 = vpop.f32.mrb[0].mxu0
        %4286 = vdwg.mxu0
        %v4287 = vadd.f32 %v3811, %v4282
        %v4288 = vld [vmem:[%s196] sm:$0xf]
        %v4291 = vunpack.c.l.s4 1983009808
        %v4292 = vunpack.c.0.s8 %v4291
        %v4293 = vlaneseq
        %v4294 = vshrl.u32 %v4293, 7
        %v4295 = vsub.s32 %v4292, %v4294
        %v4296 = vrot.slane %v4288, %v4295
        %v4297 = vcombine.high %v4296, %v4296
        %4298 = vrot.lane.b32.xlu0 %v4296, 102
        %v4299 = vpop.permute.xlu0 %4298
        %4300 = vrot.lane.b32.xlu0 %v4297, 102
        %v4301 = vpop.permute.xlu0 %4300
        %v4302 = vsel %vm3885, %v4299, %v4301
        %v4304 = vsel %vm218, %v4302, 0
        %4306 = vmatprep.subr.bf16.mxu0 0
        %4307 = vmatpush1.bf16.msra.mxu0 %v4304
        %4308 = vmatprep.subr.bf16.mxu0 0
        %4309 = vmatpush1.bf16.msra.mxu0 0
        %4310 = vmatprep.subr.bf16.mxu0 0
        %4311 = vmatpush1.bf16.msra.mxu0 0
        %4312 = vmatprep.subr.bf16.mxu0 0
        %4313 = vmatpush1.bf16.msra.mxu0 0
        %4314 = vmatprep.subr.bf16.mxu0 0
        %4315 = vmatpush1.bf16.msra.mxu0 0
        %4316 = vmatprep.subr.bf16.mxu0 0
        %4317 = vmatpush1.bf16.msra.mxu0 0
        %4318 = vmatprep.subr.bf16.mxu0 0
        %4319 = vmatpush1.bf16.msra.mxu0 0
        %4320 = vmatprep.subr.bf16.mxu0 0
        %4321 = vmatpush1.bf16.msra.mxu0 0
        %4322 = vmatprep.subr.bf16.mxu0 0
        %4323 = vmatpush1.bf16.msra.mxu0 0
        %4324 = vmatprep.subr.bf16.mxu0 0
        %4325 = vmatpush1.bf16.msra.mxu0 0
        %4326 = vmatprep.subr.bf16.mxu0 0
        %4327 = vmatpush1.bf16.msra.mxu0 0
        %4328 = vmatprep.subr.bf16.mxu0 0
        %4329 = vmatpush1.bf16.msra.mxu0 0
        %4330 = vmatprep.subr.bf16.mxu0 0
        %4331 = vmatpush1.bf16.msra.mxu0 0
        %4332 = vmatprep.subr.bf16.mxu0 0
        %4333 = vmatpush1.bf16.msra.mxu0 0
        %4334 = vmatprep.subr.bf16.mxu0 0
        %4335 = vmatpush1.bf16.msra.mxu0 0
        %4336 = vmatprep.subr.bf16.mxu0 0
        %4337 = vmatpush1.bf16.msra.mxu0 0
        %4338 = vmatprep.mubr.bf16.mxu0 0
        %4339 = vmatmul.mubr.bf16.gmra.mrb[0].mxu0 %v3888
        %v4340 = vpop.f32.mrb[0].mxu0
        %v4341 = vadd.f32 0.0, %v4340
        %v4342 = vpop.f32.mrb[0].mxu0
        %v4343 = vpop.f32.mrb[0].mxu0
        %v4344 = vpop.f32.mrb[0].mxu0
        %4345 = vdwg.mxu0
        %v4346 = vadd.f32 %v3870, %v4341
        %4347 = vst [vmem:[%s162] sm:$0xff] %v3933
        %s4348 = scalar_lea.vmem %s162, 8 [#allocation5]
        %4349 = vst [vmem:[%s4348] sm:$0xff] %v3992
        %s4350 = scalar_lea.vmem %s162, 16 [#allocation5]
        %4351 = vst [vmem:[%s4350] sm:$0xff] %v4051
        %s4352 = scalar_lea.vmem %s162, 24 [#allocation5]
        %4353 = vst [vmem:[%s4352] sm:$0xff] %v4110
        %s4354 = scalar_lea.vmem %s162, 32 [#allocation5]
        %4355 = vst [vmem:[%s4354] sm:$0xff] %v4169
        %s4356 = scalar_lea.vmem %s162, 40 [#allocation5]
        %4357 = vst [vmem:[%s4356] sm:$0xff] %v4228
        %s4358 = scalar_lea.vmem %s162, 48 [#allocation5]
        %4359 = vst [vmem:[%s4358] sm:$0xff] %v4287
        %s4360 = scalar_lea.vmem %s162, 56 [#allocation5]
        %4361 = vst [vmem:[%s4360] sm:$0xff] %v4346
        %s4362 = sand.u32 %s74, 1
        %s4363 = scalar_lea.sflag [#allocation4], %s4362
        %s4364 = sand.u32 %s74, 1
        %s4365 = smul.addr %s4364, 64
        %s4366 = scalar_lea.vmem [#allocation5], %s4365
        // Predicated region
        $region33: #{tpu_custom_call.1} parent=27 // pred_check
          %p4367 = pneg %p84
        $region34: #{tpu_custom_call.1} parent=27 // pred_check_branch
          %4369 = sbr.rel (%p4367) target = $region36
        $region35: #{tpu_custom_call.1} parent=27 // pred_region
          %s4370 = smul.u32 8, %s19
          %s4372 = ssub.s32 1024, 1024
          %4373 = vsyncadd %s4363, %s4372
          %s4374 = smul.addr %s4370, 128
          %s4375 = scalar_lea.hbm %s2, %s4374
          %s4376 = sshll.u32 %s4366, 4
          %s4377 = int_to_ptr.vmem [resolvable:$true] %s4376
          %4382 = dma.vmem_to_hbm [thread:$0]  %s4377, 1024, %s4375, %s4363, 128, 128, 8
        $region36: #{tpu_custom_call.1} parent=27 // pred_fallthru
          _
      $region28: #{tpu_custom_call.1} parent=5 // pred_fallthru
        _
      %p4383 = scmp.le.s32.totalorder 2, %s14
      // Predicated region
      $region37: #{tpu_custom_call.1} parent=5 // pred_check
        %p4384 = pneg %p4383
      $region38: #{tpu_custom_call.1} parent=5 // pred_check_branch
        %4386 = sbr.rel (%p4384) target = $region40
      $region39: #{tpu_custom_call.1} parent=5 // pred_region
        %s4387 = ssub.s32 %s14, 2
        // Predicated region
        $region41: #{tpu_custom_call.1} parent=39 // pred_check
          %p4388 = pneg %p90
        $region42: #{tpu_custom_call.1} parent=39 // pred_check_branch
          %4390 = sbr.rel (%p4388) target = $region44
        $region43: #{tpu_custom_call.1} parent=39 // pred_region
          %s4391 = sand.u32 %s75, 1
          %s4392 = scalar_lea.sflag [#allocation4], %s4391
          %s4393 = sand.u32 %s75, 1
          %s4394 = smul.addr %s4393, 64
          %s4395 = scalar_lea.vmem [#allocation5], %s4394
          %4396 = dma.done %s4392, 1024
        $region44: #{tpu_custom_call.1} parent=39 // pred_fallthru
          _
      $region40: #{tpu_custom_call.1} parent=5 // pred_fallthru
        _
    $region6: #{tpu_custom_call.1} parent=1 // loop_footer
      %s18 = sadd.s32 1, %s14
    $region7: #{tpu_custom_call.1} parent=1 // loop_footer_branch
      %13 = sbr.rel target = $region3
    $region8: #{tpu_custom_call.1} parent=1 // loop_exit
      _
    %4397 = vsyncpa [#allocation3], 1
    %s4398 = scalar_lea.sflag [#allocation3], 1
    %4399 = vsyncpa %s4398, 1
    %4400 = vsyncpa [#allocation4], 1
    %s4401 = scalar_lea.sflag [#allocation4], 1
    %4402 = vsyncpa %s4401, 1

</llo_original>
